<compile_context>
chip_gen: v7x
topology: tpu7x:2x2x1
jax: 0.10.0
libtpu: 0.0.40
codegen_flags: <defaults>
</compile_context>

<pallas_src>
import functools

import jax
import jax.numpy as jnp
from jax.experimental import pallas as pl
from jax.experimental.pallas import tpu as pltpu

IN_DIM = 32 * 32 * 3          # 3072
H1 = 64                       # num_filters (logical)
H1_PAD = 128                  # zero-padded width of layer 1 (exact after ReLU)
H2 = 128                      # num_filters * 2
TILE_B = 512                  # max batch-tile rows (multiple of 8)
N_SPLIT = 2                   # layer-3 output computed in 2 column chunks (VMEM temp pressure)


def _round_up(n, m):
    return ((n + m - 1) // m) * m


def _score_mlp_kernel(x_ref, w1_ref, b1_ref, w2_ref, b2_ref, w3_ref, b3_ref, o_ref):
    """One batch tile of the full MLP (bf16 MXU operands, f32 accumulation).

    x_ref : (TB, 3072) f32
    w1    : (3072, 128) bf16   b1: (1, 128) f32     (layer-1 zero-padded 64 -> 128)
    w2    : (128, 128)  bf16   b2: (1, 128) f32     (extra rows of w2 are zero)
    w3    : (128, 3072) bf16   b3: (1, 3072) f32
    o_ref : (TB, 3072) f32
    """
    x = x_ref[...].astype(jnp.bfloat16)

    h1 = jnp.dot(x, w1_ref[...], preferred_element_type=jnp.float32) + b1_ref[...]
    h1 = jnp.maximum(h1, 0.0).astype(jnp.bfloat16)          # ReLU (padded lanes stay 0)

    h2 = jnp.dot(h1, w2_ref[...], preferred_element_type=jnp.float32) + b2_ref[...]
    h2 = jnp.maximum(h2, 0.0).astype(jnp.bfloat16)          # ReLU

    # Layer 3 in column chunks: halves the (TB, 3072) f32 temp; stores stay
    # lane-dense (1536 = 12 * 128).
    cols = IN_DIM // N_SPLIT
    for c in range(N_SPLIT):
        sl = pl.ds(c * cols, cols)
        h3 = jnp.dot(h2, w3_ref[:, sl], preferred_element_type=jnp.float32) + b3_ref[:, sl]
        o_ref[:, sl] = jnp.tanh(h3)                         # Tanh


def _pad_params(params):
    """Zero-pad layer 1 from 64 to 128 outputs and cast weights to bf16.
    Exact: padded b1 entries are 0, so after ReLU the padded h1 lanes are 0,
    and the matching (zero) w2 rows contribute nothing."""
    w1, b1, w2, b2, w3, b3 = params
    pad = H1_PAD - H1
    w1p = jnp.pad(w1, ((0, 0), (0, pad))).astype(jnp.bfloat16)
    b1p = jnp.pad(b1, ((0, 0), (0, pad)))
    w2p = jnp.pad(w2, ((0, pad), (0, 0))).astype(jnp.bfloat16)
    w3p = w3.astype(jnp.bfloat16)
    return w1p, b1p, w2p, b2, w3p, b3


def _choose_tile(batch, max_tile):
    """Pick (tile_rows, num_tiles).  Minimizes padding (there is none — ragged
    trailing blocks are masked by Pallas) and prefers an even number of >=2
    grid steps for large batches so the parallel axis spans both TCs on v7x."""
    nt = pl.cdiv(batch, max_tile)
    if nt == 1 and batch >= 256:
        nt = 2                      # >=2 steps -> both TensorCores on v7x
    if nt > 1 and nt % 2 == 1:
        nt += 1                     # even step count splits cleanly across 2 TCs
    if nt == 1:
        return batch, 1             # single exact full-array block (no masking)
    tb = min(max_tile, _round_up(pl.cdiv(batch, nt), 8))
    return tb, pl.cdiv(batch, tb)


@functools.partial(jax.jit, static_argnames=("max_tile_b",))
def score_based_model_forward(x_nchw, params, max_tile_b=TILE_B):
    """Forward pass matching ScoreBasedModel.forward.

    x_nchw: (B, 3, 32, 32) float32  ->  returns (B, 3, 32, 32) float32
    """
    B = x_nchw.shape[0]
    x_flat = x_nchw.reshape(B, IN_DIM)              # same semantics as torch .view

    tb, num_tiles = _choose_tile(B, max_tile_b)

    w1, b1, w2, b2, w3, b3 = _pad_params(params)

    # x / o stream per grid step (double-buffered DMA); weights/biases get
    # constant index_maps -> copied once, VMEM-resident across steps.
    x_spec = pl.BlockSpec((tb, IN_DIM), lambda i: (i, 0))
    o_spec = pl.BlockSpec((tb, IN_DIM), lambda i: (i, 0))

    def const_spec(arr):
        return pl.BlockSpec(arr.shape, lambda i: (0, 0))

    weight_bytes = 2 * (w1.size + w2.size + w3.size) + 4 * (b1.size + b2.size + b3.size)
    cost = pl.CostEstimate(
        flops=2 * B * (IN_DIM * H1_PAD + H1_PAD * H2 + H2 * IN_DIM),
        transcendentals=B * IN_DIM,                         # tanh
        bytes_accessed=B * 2 * IN_DIM * 4 + weight_bytes,
    )

    out_flat = pl.pallas_call(
        _score_mlp_kernel,
        out_shape=jax.ShapeDtypeStruct((B, IN_DIM), jnp.float32),
        grid=(num_tiles,),
        in_specs=[
            x_spec,
            const_spec(w1), const_spec(b1),
            const_spec(w2), const_spec(b2),
            const_spec(w3), const_spec(b3),
        ],
        out_specs=o_spec,
        compiler_params=pltpu.CompilerParams(
            dimension_semantics=("parallel",),        # megacore sharding on v7x
            vmem_limit_bytes=48 * 1024 * 1024,        # fits 512-row bf16-weight tiles, <=64 MiB v7x VMEM
        ),
        cost_estimate=cost,
    )(x_flat, w1, b1, w2, b2, w3, b3)

    return out_flat.reshape(B, 3, 32, 32)


def init_params(key):
    """Deterministic init, shapes per nn.Linear (fan_in-scaled uniform).
    Stored transposed relative to torch: (in, out) so the kernel does x @ W."""
    k1, k2, k3, k4, k5, k6 = jax.random.split(key, 6)

    def lin(kw, kb, fan_in, fan_out):
        bound = 1.0 / jnp.sqrt(jnp.float32(fan_in))
        w = jax.random.uniform(kw, (fan_in, fan_out), jnp.float32, -bound, bound)
        b = jax.random.uniform(kb, (1, fan_out), jnp.float32, -bound, bound)
        return w, b

    w1, b1 = lin(k1, k2, IN_DIM, H1)
    w2, b2 = lin(k3, k4, H1, H2)
    w3, b3 = lin(k5, k6, H2, IN_DIM)
    return (w1, b1, w2, b2, w3, b3)


def _ref_forward(x_nchw, params):
    """Pure-JAX f32 reference (same math, unpadded) for correctness checking."""
    w1, b1, w2, b2, w3, b3 = params
    xf = x_nchw.reshape(x_nchw.shape[0], IN_DIM)
    h1 = jnp.maximum(xf @ w1 + b1, 0.0)
    h2 = jnp.maximum(h1 @ w2 + b2, 0.0)
    return jnp.tanh(h2 @ w3 + b3).reshape(-1, 3, 32, 32)


if __name__ == "__main__":
    key = jax.random.PRNGKey(0)
    k_params, k_x = jax.random.split(key)

    params = init_params(k_params)
    # Small batch; the model is hard-wired to 3x32x32 images.
    x = jax.random.normal(k_x, (2, 3, 32, 32), dtype=jnp.float32)

    out = score_based_model_forward(x, params)
    out = jax.block_until_ready(out)

    assert out.shape == (2, 3, 32, 32)
    assert out.dtype == jnp.float32
    # tanh output range sanity check
    assert bool(jnp.all(jnp.abs(out) <= 1.0))

    # Numerical check vs. the f32 reference (bf16 MXU operands, f32 accumulation).
    ref = jax.block_until_ready(_ref_forward(x, params))
    assert bool(jnp.allclose(out, ref, rtol=2e-2, atol=2e-2)), "mismatch vs reference"

    print("KERNEL_OK")
</pallas_src>

<mosaic_0001>
module attributes {stable_mosaic.version = 11 : i64} {
  func.func @_score_mlp_kernel(%arg0: i32, %arg1: memref<2x3072xf32, #tpu.memory_space<vmem>>, %arg2: memref<3072x128xbf16, #tpu.memory_space<vmem>>, %arg3: memref<1x128xf32, #tpu.memory_space<vmem>>, %arg4: memref<128x128xbf16, #tpu.memory_space<vmem>>, %arg5: memref<1x128xf32, #tpu.memory_space<vmem>>, %arg6: memref<128x3072xbf16, #tpu.memory_space<vmem>>, %arg7: memref<1x3072xf32, #tpu.memory_space<vmem>>, %arg8: memref<2x3072xf32, #tpu.memory_space<vmem>>) attributes {dimension_semantics = [#tpu.dimension_semantics<parallel>], iteration_bounds = array<i64: 1>, scalar_prefetch = 0 : i64, scratch_operands = 0 : i64, tpu.core_type = #tpu.core_type<tc>, window_params = [{transform_indices = @transform_0, window_bounds = array<i64: 2, 3072>}, {pipeline_mode = #tpu.pipeline_mode<synchronous>, transform_indices = @transform_1, window_bounds = array<i64: 3072, 128>}, {pipeline_mode = #tpu.pipeline_mode<synchronous>, transform_indices = @transform_2, window_bounds = array<i64: 1, 128>}, {pipeline_mode = #tpu.pipeline_mode<synchronous>, transform_indices = @transform_3, window_bounds = array<i64: 128, 128>}, {pipeline_mode = #tpu.pipeline_mode<synchronous>, transform_indices = @transform_4, window_bounds = array<i64: 1, 128>}, {pipeline_mode = #tpu.pipeline_mode<synchronous>, transform_indices = @transform_5, window_bounds = array<i64: 128, 3072>}, {pipeline_mode = #tpu.pipeline_mode<synchronous>, transform_indices = @transform_6, window_bounds = array<i64: 1, 3072>}, {transform_indices = @transform_7, window_bounds = array<i64: 2, 3072>}]} {
    %c0 = arith.constant 0 : index
    %c0_0 = arith.constant 0 : index
    %0 = vector.load %arg1[%c0, %c0_0] : memref<2x3072xf32, #tpu.memory_space<vmem>>, vector<2x3072xf32>
    %1 = arith.truncf %0 : vector<2x3072xf32> to vector<2x3072xbf16>
    %c0_1 = arith.constant 0 : index
    %c0_2 = arith.constant 0 : index
    %2 = vector.load %arg2[%c0_1, %c0_2] : memref<3072x128xbf16, #tpu.memory_space<vmem>>, vector<3072x128xbf16>
    %cst = arith.constant dense<0.000000e+00> : vector<2x128xf32>
    %3 = tpu.matmul %1, %2, %cst {dimension_numbers = #tpu.dot_dimension_numbers<[1], [0], [0], [1], [0, 0, 1, 1], [], []>} : vector<2x3072xbf16>, vector<3072x128xbf16>, vector<2x128xf32> -> vector<2x128xf32>
    %c0_3 = arith.constant 0 : index
    %c0_4 = arith.constant 0 : index
    %4 = vector.load %arg3[%c0_3, %c0_4] : memref<1x128xf32, #tpu.memory_space<vmem>>, vector<1x128xf32>
    %5 = vector.broadcast %4 : vector<1x128xf32> to vector<2x128xf32>
    %6 = arith.addf %3, %5 : vector<2x128xf32>
    %cst_5 = arith.constant 0.000000e+00 : f32
    %7 = vector.broadcast %cst_5 : f32 to vector<2x128xf32>
    %8 = arith.maximumf %6, %7 : vector<2x128xf32>
    %9 = arith.truncf %8 : vector<2x128xf32> to vector<2x128xbf16>
    %c0_6 = arith.constant 0 : index
    %c0_7 = arith.constant 0 : index
    %10 = vector.load %arg4[%c0_6, %c0_7] : memref<128x128xbf16, #tpu.memory_space<vmem>>, vector<128x128xbf16>
    %cst_8 = arith.constant dense<0.000000e+00> : vector<2x128xf32>
    %11 = tpu.matmul %9, %10, %cst_8 {dimension_numbers = #tpu.dot_dimension_numbers<[1], [0], [0], [1], [0, 0, 1, 1], [], []>} : vector<2x128xbf16>, vector<128x128xbf16>, vector<2x128xf32> -> vector<2x128xf32>
    %c0_9 = arith.constant 0 : index
    %c0_10 = arith.constant 0 : index
    %12 = vector.load %arg5[%c0_9, %c0_10] : memref<1x128xf32, #tpu.memory_space<vmem>>, vector<1x128xf32>
    %13 = vector.broadcast %12 : vector<1x128xf32> to vector<2x128xf32>
    %14 = arith.addf %11, %13 : vector<2x128xf32>
    %cst_11 = arith.constant 0.000000e+00 : f32
    %15 = vector.broadcast %cst_11 : f32 to vector<2x128xf32>
    %16 = arith.maximumf %14, %15 : vector<2x128xf32>
    %17 = arith.truncf %16 : vector<2x128xf32> to vector<2x128xbf16>
    %c0_12 = arith.constant 0 : index
    %c0_13 = arith.constant 0 : index
    %18 = vector.load %arg6[%c0_12, %c0_13] : memref<128x3072xbf16, #tpu.memory_space<vmem>>, vector<128x1536xbf16>
    %cst_14 = arith.constant dense<0.000000e+00> : vector<2x1536xf32>
    %19 = tpu.matmul %17, %18, %cst_14 {dimension_numbers = #tpu.dot_dimension_numbers<[1], [0], [0], [1], [0, 0, 1, 1], [], []>} : vector<2x128xbf16>, vector<128x1536xbf16>, vector<2x1536xf32> -> vector<2x1536xf32>
    %c0_15 = arith.constant 0 : index
    %c0_16 = arith.constant 0 : index
    %20 = vector.load %arg7[%c0_15, %c0_16] : memref<1x3072xf32, #tpu.memory_space<vmem>>, vector<1x1536xf32>
    %21 = vector.broadcast %20 : vector<1x1536xf32> to vector<2x1536xf32>
    %22 = arith.addf %19, %21 : vector<2x1536xf32>
    %23 = math.tanh %22 : vector<2x1536xf32>
    %c0_17 = arith.constant 0 : index
    %c0_18 = arith.constant 0 : index
    %24 = vector.load %arg8[%c0_17, %c0_18] : memref<2x3072xf32, #tpu.memory_space<vmem>>, vector<2x1536xf32>
    tpu.vector_store %arg8[%c0_17, %c0_18], %23 {strides = array<i32>} : memref<2x3072xf32, #tpu.memory_space<vmem>>, vector<2x1536xf32>,
    %c0_19 = arith.constant 0 : index
    %c1536 = arith.constant 1536 : index
    %25 = vector.load %arg6[%c0_19, %c1536] : memref<128x3072xbf16, #tpu.memory_space<vmem>>, vector<128x1536xbf16>
    %cst_20 = arith.constant dense<0.000000e+00> : vector<2x1536xf32>
    %26 = tpu.matmul %17, %25, %cst_20 {dimension_numbers = #tpu.dot_dimension_numbers<[1], [0], [0], [1], [0, 0, 1, 1], [], []>} : vector<2x128xbf16>, vector<128x1536xbf16>, vector<2x1536xf32> -> vector<2x1536xf32>
    %c0_21 = arith.constant 0 : index
    %c1536_22 = arith.constant 1536 : index
    %27 = vector.load %arg7[%c0_21, %c1536_22] : memref<1x3072xf32, #tpu.memory_space<vmem>>, vector<1x1536xf32>
    %28 = vector.broadcast %27 : vector<1x1536xf32> to vector<2x1536xf32>
    %29 = arith.addf %26, %28 : vector<2x1536xf32>
    %30 = math.tanh %29 : vector<2x1536xf32>
    %c0_23 = arith.constant 0 : index
    %c1536_24 = arith.constant 1536 : index
    %31 = vector.load %arg8[%c0_23, %c1536_24] : memref<2x3072xf32, #tpu.memory_space<vmem>>, vector<2x1536xf32>
    tpu.vector_store %arg8[%c0_23, %c1536_24], %30 {strides = array<i32>} : memref<2x3072xf32, #tpu.memory_space<vmem>>, vector<2x1536xf32>,
    return
  }
  func.func @transform_0(%arg0: i32) -> (i32, i32) {
    %c0_i32 = arith.constant 0 : i32
    %c0_i32_0 = arith.constant 0 : i32
    return %arg0, %c0_i32 : i32, i32
  }
  func.func @transform_1(%arg0: i32) -> (i32, i32) {
    %c0_i32 = arith.constant 0 : i32
    %c0_i32_0 = arith.constant 0 : i32
    %c0_i32_1 = arith.constant 0 : i32
    return %c0_i32, %c0_i32_0 : i32, i32
  }
  func.func @transform_2(%arg0: i32) -> (i32, i32) {
    %c0_i32 = arith.constant 0 : i32
    %c0_i32_0 = arith.constant 0 : i32
    %c0_i32_1 = arith.constant 0 : i32
    return %c0_i32, %c0_i32_0 : i32, i32
  }
  func.func @transform_3(%arg0: i32) -> (i32, i32) {
    %c0_i32 = arith.constant 0 : i32
    %c0_i32_0 = arith.constant 0 : i32
    %c0_i32_1 = arith.constant 0 : i32
    return %c0_i32, %c0_i32_0 : i32, i32
  }
  func.func @transform_4(%arg0: i32) -> (i32, i32) {
    %c0_i32 = arith.constant 0 : i32
    %c0_i32_0 = arith.constant 0 : i32
    %c0_i32_1 = arith.constant 0 : i32
    return %c0_i32, %c0_i32_0 : i32, i32
  }
  func.func @transform_5(%arg0: i32) -> (i32, i32) {
    %c0_i32 = arith.constant 0 : i32
    %c0_i32_0 = arith.constant 0 : i32
    %c0_i32_1 = arith.constant 0 : i32
    return %c0_i32, %c0_i32_0 : i32, i32
  }
  func.func @transform_6(%arg0: i32) -> (i32, i32) {
    %c0_i32 = arith.constant 0 : i32
    %c0_i32_0 = arith.constant 0 : i32
    %c0_i32_1 = arith.constant 0 : i32
    return %c0_i32, %c0_i32_0 : i32, i32
  }
  func.func @transform_7(%arg0: i32) -> (i32, i32) {
    %c0_i32 = arith.constant 0 : i32
    %c0_i32_0 = arith.constant 0 : i32
    return %arg0, %c0_i32 : i32, i32
  }
}

</mosaic_0001>

<llo_original>
// kernel: score_based_model_forward.1
$region0: #{score_based_model_forward.1}
  #allocation0 [shape = 'u32[]', space=smem, size = 0x4, offset = 0x4, fixed_abs, tag = 'smem constant byte address 0x4 - core index']
  #allocation1 [shape = 'u32[144,128]{1,0:T(1,128)}', space=vmem, size = 0x12000, scoped, tag = 'internal scratch']
  %s0 = inlined_call_operand.vmem [shape: f32[2,3072], index: 0, kind: input, shape index: {}]
  %s1 = inlined_call_operand.vmem [shape: bf16[3072,128], index: 1, kind: input, shape index: {}]
  %s2 = inlined_call_operand.vmem [shape: f32[1,128], index: 2, kind: input, shape index: {}]
  %s3 = inlined_call_operand.vmem [shape: bf16[128,128], index: 3, kind: input, shape index: {}]
  %s4 = inlined_call_operand.vmem [shape: f32[1,128], index: 4, kind: input, shape index: {}]
  %s5 = inlined_call_operand.vmem [shape: bf16[128,3072], index: 5, kind: input, shape index: {}]
  %s6 = inlined_call_operand.vmem [shape: f32[1,3072], index: 6, kind: input, shape index: {}]
  %s7 = inlined_call_operand.vmem [shape: f32[2,3072], index: 7, kind: output, shape index: {}]
  %s8 = sld [smem:[#allocation0]]
  $region38: #{score_based_model_forward.1} parent=0
    _
  %s10 = ssub.s32 1, %s8
  %s11 = scalar_select 0, %s10, %s8
  // Predicated region
  $region2: #{score_based_model_forward.1} parent=0 // pred_check
    _
  $region3: #{score_based_model_forward.1} parent=0 // pred_check_branch
    %13 = sbr.rel (0) target = $region5
  $region4: #{score_based_model_forward.1} parent=0 // pred_region
    _
  $region5: #{score_based_model_forward.1} parent=0 // pred_fallthru
    _
  // Predicated region
  $region6: #{score_based_model_forward.1} parent=0 // pred_check
    _
  $region7: #{score_based_model_forward.1} parent=0 // pred_check_branch
    %15 = sbr.rel (0) target = $region9
  $region8: #{score_based_model_forward.1} parent=0 // pred_region
    _
  $region9: #{score_based_model_forward.1} parent=0 // pred_fallthru
    _
  // Predicated region
  $region10: #{score_based_model_forward.1} parent=0 // pred_check
    _
  $region11: #{score_based_model_forward.1} parent=0 // pred_check_branch
    %17 = sbr.rel (0) target = $region13
  $region12: #{score_based_model_forward.1} parent=0 // pred_region
    _
  $region13: #{score_based_model_forward.1} parent=0 // pred_fallthru
    _
  // Predicated region
  $region14: #{score_based_model_forward.1} parent=0 // pred_check
    _
  $region15: #{score_based_model_forward.1} parent=0 // pred_check_branch
    %19 = sbr.rel (0) target = $region17
  $region16: #{score_based_model_forward.1} parent=0 // pred_region
    _
  $region17: #{score_based_model_forward.1} parent=0 // pred_fallthru
    _
  // Predicated region
  $region18: #{score_based_model_forward.1} parent=0 // pred_check
    _
  $region19: #{score_based_model_forward.1} parent=0 // pred_check_branch
    %21 = sbr.rel (0) target = $region21
  $region20: #{score_based_model_forward.1} parent=0 // pred_region
    _
  $region21: #{score_based_model_forward.1} parent=0 // pred_fallthru
    _
  // Predicated region
  $region22: #{score_based_model_forward.1} parent=0 // pred_check
    _
  $region23: #{score_based_model_forward.1} parent=0 // pred_check_branch
    %23 = sbr.rel (0) target = $region25
  $region24: #{score_based_model_forward.1} parent=0 // pred_region
    _
  $region25: #{score_based_model_forward.1} parent=0 // pred_fallthru
    _
  // Predicated region
  $region26: #{score_based_model_forward.1} parent=0 // pred_check
    _
  $region27: #{score_based_model_forward.1} parent=0 // pred_check_branch
    %25 = sbr.rel (0) target = $region29
  $region28: #{score_based_model_forward.1} parent=0 // pred_region
    _
  $region29: #{score_based_model_forward.1} parent=0 // pred_fallthru
    _
  %v27 = vld [vmem:[%s0] sm:$0xff]
  %v28 = vld [vmem:[%s0 + $0x8] sm:$0xff]
  %v29 = vld [vmem:[%s0 + $0x10] sm:$0xff]
  %v30 = vld [vmem:[%s0 + $0x18] sm:$0xff]
  %v31 = vld [vmem:[%s0 + $0x20] sm:$0xff]
  %v32 = vld [vmem:[%s0 + $0x28] sm:$0xff]
  %v39 = vcombine.high %v27, %v27
  %v41 = vunpack.c.l.s4 1983009808
  %v42 = vunpack.c.0.s8 %v41
  %v43 = vlaneseq
  %v44 = vshrl.u32 %v43, 7
  %v45 = vsub.s32 %v42, %v44
  %v46 = vrot.slane %v27, %v45
  %v48 = vunpack.c.l.s4 1983009808
  %v49 = vunpack.c.0.s8 %v48
  %v50 = vlaneseq
  %v51 = vshrl.u32 %v50, 7
  %v52 = vsub.s32 %v49, %v51
  %v53 = vrot.slane %v39, %v52
  %v54 = vcombine.high %v46, %v46
  %v55 = vcombine.high %v53, %v53
  %v56 = vcombine.high %v28, %v28
  %v58 = vunpack.c.l.s4 1983009808
  %v59 = vunpack.c.0.s8 %v58
  %v60 = vlaneseq
  %v61 = vshrl.u32 %v60, 7
  %v62 = vsub.s32 %v59, %v61
  %v63 = vrot.slane %v28, %v62
  %v65 = vunpack.c.l.s4 1983009808
  %v66 = vunpack.c.0.s8 %v65
  %v67 = vlaneseq
  %v68 = vshrl.u32 %v67, 7
  %v69 = vsub.s32 %v66, %v68
  %v70 = vrot.slane %v56, %v69
  %v71 = vcombine.high %v63, %v63
  %v72 = vcombine.high %v70, %v70
  %v73 = vcombine.high %v29, %v29
  %v75 = vunpack.c.l.s4 1983009808
  %v76 = vunpack.c.0.s8 %v75
  %v77 = vlaneseq
  %v78 = vshrl.u32 %v77, 7
  %v79 = vsub.s32 %v76, %v78
  %v80 = vrot.slane %v29, %v79
  %v82 = vunpack.c.l.s4 1983009808
  %v83 = vunpack.c.0.s8 %v82
  %v84 = vlaneseq
  %v85 = vshrl.u32 %v84, 7
  %v86 = vsub.s32 %v83, %v85
  %v87 = vrot.slane %v73, %v86
  %v88 = vcombine.high %v80, %v80
  %v89 = vcombine.high %v87, %v87
  %v90 = vcombine.high %v30, %v30
  %v92 = vunpack.c.l.s4 1983009808
  %v93 = vunpack.c.0.s8 %v92
  %v94 = vlaneseq
  %v95 = vshrl.u32 %v94, 7
  %v96 = vsub.s32 %v93, %v95
  %v97 = vrot.slane %v30, %v96
  %v99 = vunpack.c.l.s4 1983009808
  %v100 = vunpack.c.0.s8 %v99
  %v101 = vlaneseq
  %v102 = vshrl.u32 %v101, 7
  %v103 = vsub.s32 %v100, %v102
  %v104 = vrot.slane %v90, %v103
  %v105 = vcombine.high %v97, %v97
  %v106 = vcombine.high %v104, %v104
  %v107 = vcombine.high %v31, %v31
  %v109 = vunpack.c.l.s4 1983009808
  %v110 = vunpack.c.0.s8 %v109
  %v111 = vlaneseq
  %v112 = vshrl.u32 %v111, 7
  %v113 = vsub.s32 %v110, %v112
  %v114 = vrot.slane %v31, %v113
  %v116 = vunpack.c.l.s4 1983009808
  %v117 = vunpack.c.0.s8 %v116
  %v118 = vlaneseq
  %v119 = vshrl.u32 %v118, 7
  %v120 = vsub.s32 %v117, %v119
  %v121 = vrot.slane %v107, %v120
  %v122 = vcombine.high %v114, %v114
  %v123 = vcombine.high %v121, %v121
  %v124 = vcombine.high %v32, %v32
  %v126 = vunpack.c.l.s4 1983009808
  %v127 = vunpack.c.0.s8 %v126
  %v128 = vlaneseq
  %v129 = vshrl.u32 %v128, 7
  %v130 = vsub.s32 %v127, %v129
  %v131 = vrot.slane %v32, %v130
  %v133 = vunpack.c.l.s4 1983009808
  %v134 = vunpack.c.0.s8 %v133
  %v135 = vlaneseq
  %v136 = vshrl.u32 %v135, 7
  %v137 = vsub.s32 %v134, %v136
  %v138 = vrot.slane %v124, %v137
  %v139 = vcombine.high %v131, %v131
  %v140 = vcombine.high %v138, %v138
  %v165 = vpack.c.bf16 %v46, %v46
  %v166 = vpack.c.bf16 %v54, %v54
  %v167 = vpack.c.bf16 %v53, %v53
  %v168 = vpack.c.bf16 %v55, %v55
  %v169 = vpack.c.bf16 %v63, %v63
  %v170 = vpack.c.bf16 %v71, %v71
  %v171 = vpack.c.bf16 %v70, %v70
  %v172 = vpack.c.bf16 %v72, %v72
  %v173 = vpack.c.bf16 %v80, %v80
  %v174 = vpack.c.bf16 %v88, %v88
  %v175 = vpack.c.bf16 %v87, %v87
  %v176 = vpack.c.bf16 %v89, %v89
  %v177 = vpack.c.bf16 %v97, %v97
  %v178 = vpack.c.bf16 %v105, %v105
  %v179 = vpack.c.bf16 %v104, %v104
  %v180 = vpack.c.bf16 %v106, %v106
  %v181 = vpack.c.bf16 %v114, %v114
  %v182 = vpack.c.bf16 %v122, %v122
  %v183 = vpack.c.bf16 %v121, %v121
  %v184 = vpack.c.bf16 %v123, %v123
  %v185 = vpack.c.bf16 %v131, %v131
  %v186 = vpack.c.bf16 %v139, %v139
  %v187 = vpack.c.bf16 %v138, %v138
  %v188 = vpack.c.bf16 %v140, %v140
  %v189 = vld [vmem:[%s1] sm:$0xf]
  %v190 = vld [vmem:[%s1 + $0x4] sm:$0xf]
  %v191 = vld [vmem:[%s1 + $0x8] sm:$0xf]
  %v192 = vld [vmem:[%s1 + $0xc] sm:$0xf]
  %v193 = vld [vmem:[%s1 + $0x10] sm:$0xf]
  %v194 = vld [vmem:[%s1 + $0x14] sm:$0xf]
  %v195 = vld [vmem:[%s1 + $0x18] sm:$0xf]
  %v196 = vld [vmem:[%s1 + $0x1c] sm:$0xf]
  %v197 = vld [vmem:[%s1 + $0x20] sm:$0xf]
  %v198 = vld [vmem:[%s1 + $0x24] sm:$0xf]
  %v199 = vld [vmem:[%s1 + $0x28] sm:$0xf]
  %v200 = vld [vmem:[%s1 + $0x2c] sm:$0xf]
  %v201 = vld [vmem:[%s1 + $0x30] sm:$0xf]
  %v202 = vld [vmem:[%s1 + $0x34] sm:$0xf]
  %v203 = vld [vmem:[%s1 + $0x38] sm:$0xf]
  %v204 = vld [vmem:[%s1 + $0x3c] sm:$0xf]
  %v205 = vld [vmem:[%s1 + $0x40] sm:$0xf]
  %v206 = vld [vmem:[%s1 + $0x44] sm:$0xf]
  %v207 = vld [vmem:[%s1 + $0x48] sm:$0xf]
  %v208 = vld [vmem:[%s1 + $0x4c] sm:$0xf]
  %v209 = vld [vmem:[%s1 + $0x50] sm:$0xf]
  %v210 = vld [vmem:[%s1 + $0x54] sm:$0xf]
  %v211 = vld [vmem:[%s1 + $0x58] sm:$0xf]
  %v212 = vld [vmem:[%s1 + $0x5c] sm:$0xf]
  %v213 = vld [vmem:[%s1 + $0x60] sm:$0xf]
  %v214 = vld [vmem:[%s1 + $0x64] sm:$0xf]
  %v215 = vld [vmem:[%s1 + $0x68] sm:$0xf]
  %v216 = vld [vmem:[%s1 + $0x6c] sm:$0xf]
  %v217 = vld [vmem:[%s1 + $0x70] sm:$0xf]
  %v218 = vld [vmem:[%s1 + $0x74] sm:$0xf]
  %v219 = vld [vmem:[%s1 + $0x78] sm:$0xf]
  %v220 = vld [vmem:[%s1 + $0x7c] sm:$0xf]
  %v221 = vld [vmem:[%s1 + $0x80] sm:$0xf]
  %v222 = vld [vmem:[%s1 + $0x84] sm:$0xf]
  %v223 = vld [vmem:[%s1 + $0x88] sm:$0xf]
  %v224 = vld [vmem:[%s1 + $0x8c] sm:$0xf]
  %v225 = vld [vmem:[%s1 + $0x90] sm:$0xf]
  %v226 = vld [vmem:[%s1 + $0x94] sm:$0xf]
  %v227 = vld [vmem:[%s1 + $0x98] sm:$0xf]
  %v228 = vld [vmem:[%s1 + $0x9c] sm:$0xf]
  %v229 = vld [vmem:[%s1 + $0xa0] sm:$0xf]
  %v230 = vld [vmem:[%s1 + $0xa4] sm:$0xf]
  %v231 = vld [vmem:[%s1 + $0xa8] sm:$0xf]
  %v232 = vld [vmem:[%s1 + $0xac] sm:$0xf]
  %v233 = vld [vmem:[%s1 + $0xb0] sm:$0xf]
  %v234 = vld [vmem:[%s1 + $0xb4] sm:$0xf]
  %v235 = vld [vmem:[%s1 + $0xb8] sm:$0xf]
  %v236 = vld [vmem:[%s1 + $0xbc] sm:$0xf]
  %v237 = vld [vmem:[%s1 + $0xc0] sm:$0xf]
  %v238 = vld [vmem:[%s1 + $0xc4] sm:$0xf]
  %v239 = vld [vmem:[%s1 + $0xc8] sm:$0xf]
  %v240 = vld [vmem:[%s1 + $0xcc] sm:$0xf]
  %v241 = vld [vmem:[%s1 + $0xd0] sm:$0xf]
  %v242 = vld [vmem:[%s1 + $0xd4] sm:$0xf]
  %v243 = vld [vmem:[%s1 + $0xd8] sm:$0xf]
  %v244 = vld [vmem:[%s1 + $0xdc] sm:$0xf]
  %v245 = vld [vmem:[%s1 + $0xe0] sm:$0xf]
  %v246 = vld [vmem:[%s1 + $0xe4] sm:$0xf]
  %v247 = vld [vmem:[%s1 + $0xe8] sm:$0xf]
  %v248 = vld [vmem:[%s1 + $0xec] sm:$0xf]
  %v249 = vld [vmem:[%s1 + $0xf0] sm:$0xf]
  %v250 = vld [vmem:[%s1 + $0xf4] sm:$0xf]
  %v251 = vld [vmem:[%s1 + $0xf8] sm:$0xf]
  %v252 = vld [vmem:[%s1 + $0xfc] sm:$0xf]
  %v253 = vld [vmem:[%s1 + $0x100] sm:$0xf]
  %v254 = vld [vmem:[%s1 + $0x104] sm:$0xf]
  %v255 = vld [vmem:[%s1 + $0x108] sm:$0xf]
  %v256 = vld [vmem:[%s1 + $0x10c] sm:$0xf]
  %v257 = vld [vmem:[%s1 + $0x110] sm:$0xf]
  %v258 = vld [vmem:[%s1 + $0x114] sm:$0xf]
  %v259 = vld [vmem:[%s1 + $0x118] sm:$0xf]
  %v260 = vld [vmem:[%s1 + $0x11c] sm:$0xf]
  %v261 = vld [vmem:[%s1 + $0x120] sm:$0xf]
  %v262 = vld [vmem:[%s1 + $0x124] sm:$0xf]
  %v263 = vld [vmem:[%s1 + $0x128] sm:$0xf]
  %v264 = vld [vmem:[%s1 + $0x12c] sm:$0xf]
  %v265 = vld [vmem:[%s1 + $0x130] sm:$0xf]
  %v266 = vld [vmem:[%s1 + $0x134] sm:$0xf]
  %v267 = vld [vmem:[%s1 + $0x138] sm:$0xf]
  %v268 = vld [vmem:[%s1 + $0x13c] sm:$0xf]
  %v269 = vld [vmem:[%s1 + $0x140] sm:$0xf]
  %v270 = vld [vmem:[%s1 + $0x144] sm:$0xf]
  %v271 = vld [vmem:[%s1 + $0x148] sm:$0xf]
  %v272 = vld [vmem:[%s1 + $0x14c] sm:$0xf]
  %v273 = vld [vmem:[%s1 + $0x150] sm:$0xf]
  %v274 = vld [vmem:[%s1 + $0x154] sm:$0xf]
  %v275 = vld [vmem:[%s1 + $0x158] sm:$0xf]
  %v276 = vld [vmem:[%s1 + $0x15c] sm:$0xf]
  %v277 = vld [vmem:[%s1 + $0x160] sm:$0xf]
  %v278 = vld [vmem:[%s1 + $0x164] sm:$0xf]
  %v279 = vld [vmem:[%s1 + $0x168] sm:$0xf]
  %v280 = vld [vmem:[%s1 + $0x16c] sm:$0xf]
  %v281 = vld [vmem:[%s1 + $0x170] sm:$0xf]
  %v282 = vld [vmem:[%s1 + $0x174] sm:$0xf]
  %v283 = vld [vmem:[%s1 + $0x178] sm:$0xf]
  %v284 = vld [vmem:[%s1 + $0x17c] sm:$0xf]
  %v285 = vld [vmem:[%s1 + $0x180] sm:$0xf]
  %v286 = vld [vmem:[%s1 + $0x184] sm:$0xf]
  %v287 = vld [vmem:[%s1 + $0x188] sm:$0xf]
  %v288 = vld [vmem:[%s1 + $0x18c] sm:$0xf]
  %v289 = vld [vmem:[%s1 + $0x190] sm:$0xf]
  %v290 = vld [vmem:[%s1 + $0x194] sm:$0xf]
  %v291 = vld [vmem:[%s1 + $0x198] sm:$0xf]
  %v292 = vld [vmem:[%s1 + $0x19c] sm:$0xf]
  %v293 = vld [vmem:[%s1 + $0x1a0] sm:$0xf]
  %v294 = vld [vmem:[%s1 + $0x1a4] sm:$0xf]
  %v295 = vld [vmem:[%s1 + $0x1a8] sm:$0xf]
  %v296 = vld [vmem:[%s1 + $0x1ac] sm:$0xf]
  %v297 = vld [vmem:[%s1 + $0x1b0] sm:$0xf]
  %v298 = vld [vmem:[%s1 + $0x1b4] sm:$0xf]
  %v299 = vld [vmem:[%s1 + $0x1b8] sm:$0xf]
  %v300 = vld [vmem:[%s1 + $0x1bc] sm:$0xf]
  %v301 = vld [vmem:[%s1 + $0x1c0] sm:$0xf]
  %v302 = vld [vmem:[%s1 + $0x1c4] sm:$0xf]
  %v303 = vld [vmem:[%s1 + $0x1c8] sm:$0xf]
  %v304 = vld [vmem:[%s1 + $0x1cc] sm:$0xf]
  %v305 = vld [vmem:[%s1 + $0x1d0] sm:$0xf]
  %v306 = vld [vmem:[%s1 + $0x1d4] sm:$0xf]
  %v307 = vld [vmem:[%s1 + $0x1d8] sm:$0xf]
  %v308 = vld [vmem:[%s1 + $0x1dc] sm:$0xf]
  %v309 = vld [vmem:[%s1 + $0x1e0] sm:$0xf]
  %v310 = vld [vmem:[%s1 + $0x1e4] sm:$0xf]
  %v311 = vld [vmem:[%s1 + $0x1e8] sm:$0xf]
  %v312 = vld [vmem:[%s1 + $0x1ec] sm:$0xf]
  %v313 = vld [vmem:[%s1 + $0x1f0] sm:$0xf]
  %v314 = vld [vmem:[%s1 + $0x1f4] sm:$0xf]
  %v315 = vld [vmem:[%s1 + $0x1f8] sm:$0xf]
  %v316 = vld [vmem:[%s1 + $0x1fc] sm:$0xf]
  %v317 = vld [vmem:[%s1 + $0x200] sm:$0xf]
  %v318 = vld [vmem:[%s1 + $0x204] sm:$0xf]
  %v319 = vld [vmem:[%s1 + $0x208] sm:$0xf]
  %v320 = vld [vmem:[%s1 + $0x20c] sm:$0xf]
  %v321 = vld [vmem:[%s1 + $0x210] sm:$0xf]
  %v322 = vld [vmem:[%s1 + $0x214] sm:$0xf]
  %v323 = vld [vmem:[%s1 + $0x218] sm:$0xf]
  %v324 = vld [vmem:[%s1 + $0x21c] sm:$0xf]
  %v325 = vld [vmem:[%s1 + $0x220] sm:$0xf]
  %v326 = vld [vmem:[%s1 + $0x224] sm:$0xf]
  %v327 = vld [vmem:[%s1 + $0x228] sm:$0xf]
  %v328 = vld [vmem:[%s1 + $0x22c] sm:$0xf]
  %v329 = vld [vmem:[%s1 + $0x230] sm:$0xf]
  %v330 = vld [vmem:[%s1 + $0x234] sm:$0xf]
  %v331 = vld [vmem:[%s1 + $0x238] sm:$0xf]
  %v332 = vld [vmem:[%s1 + $0x23c] sm:$0xf]
  %v333 = vld [vmem:[%s1 + $0x240] sm:$0xf]
  %v334 = vld [vmem:[%s1 + $0x244] sm:$0xf]
  %v335 = vld [vmem:[%s1 + $0x248] sm:$0xf]
  %v336 = vld [vmem:[%s1 + $0x24c] sm:$0xf]
  %v337 = vld [vmem:[%s1 + $0x250] sm:$0xf]
  %v338 = vld [vmem:[%s1 + $0x254] sm:$0xf]
  %v339 = vld [vmem:[%s1 + $0x258] sm:$0xf]
  %v340 = vld [vmem:[%s1 + $0x25c] sm:$0xf]
  %v341 = vld [vmem:[%s1 + $0x260] sm:$0xf]
  %v342 = vld [vmem:[%s1 + $0x264] sm:$0xf]
  %v343 = vld [vmem:[%s1 + $0x268] sm:$0xf]
  %v344 = vld [vmem:[%s1 + $0x26c] sm:$0xf]
  %v345 = vld [vmem:[%s1 + $0x270] sm:$0xf]
  %v346 = vld [vmem:[%s1 + $0x274] sm:$0xf]
  %v347 = vld [vmem:[%s1 + $0x278] sm:$0xf]
  %v348 = vld [vmem:[%s1 + $0x27c] sm:$0xf]
  %v349 = vld [vmem:[%s1 + $0x280] sm:$0xf]
  %v350 = vld [vmem:[%s1 + $0x284] sm:$0xf]
  %v351 = vld [vmem:[%s1 + $0x288] sm:$0xf]
  %v352 = vld [vmem:[%s1 + $0x28c] sm:$0xf]
  %v353 = vld [vmem:[%s1 + $0x290] sm:$0xf]
  %v354 = vld [vmem:[%s1 + $0x294] sm:$0xf]
  %v355 = vld [vmem:[%s1 + $0x298] sm:$0xf]
  %v356 = vld [vmem:[%s1 + $0x29c] sm:$0xf]
  %v357 = vld [vmem:[%s1 + $0x2a0] sm:$0xf]
  %v358 = vld [vmem:[%s1 + $0x2a4] sm:$0xf]
  %v359 = vld [vmem:[%s1 + $0x2a8] sm:$0xf]
  %v360 = vld [vmem:[%s1 + $0x2ac] sm:$0xf]
  %v361 = vld [vmem:[%s1 + $0x2b0] sm:$0xf]
  %v362 = vld [vmem:[%s1 + $0x2b4] sm:$0xf]
  %v363 = vld [vmem:[%s1 + $0x2b8] sm:$0xf]
  %v364 = vld [vmem:[%s1 + $0x2bc] sm:$0xf]
  %v365 = vld [vmem:[%s1 + $0x2c0] sm:$0xf]
  %v366 = vld [vmem:[%s1 + $0x2c4] sm:$0xf]
  %v367 = vld [vmem:[%s1 + $0x2c8] sm:$0xf]
  %v368 = vld [vmem:[%s1 + $0x2cc] sm:$0xf]
  %v369 = vld [vmem:[%s1 + $0x2d0] sm:$0xf]
  %v370 = vld [vmem:[%s1 + $0x2d4] sm:$0xf]
  %v371 = vld [vmem:[%s1 + $0x2d8] sm:$0xf]
  %v372 = vld [vmem:[%s1 + $0x2dc] sm:$0xf]
  %v373 = vld [vmem:[%s1 + $0x2e0] sm:$0xf]
  %v374 = vld [vmem:[%s1 + $0x2e4] sm:$0xf]
  %v375 = vld [vmem:[%s1 + $0x2e8] sm:$0xf]
  %v376 = vld [vmem:[%s1 + $0x2ec] sm:$0xf]
  %v377 = vld [vmem:[%s1 + $0x2f0] sm:$0xf]
  %v378 = vld [vmem:[%s1 + $0x2f4] sm:$0xf]
  %v379 = vld [vmem:[%s1 + $0x2f8] sm:$0xf]
  %v380 = vld [vmem:[%s1 + $0x2fc] sm:$0xf]
  %v381 = vld [vmem:[%s1 + $0x300] sm:$0xf]
  %v382 = vld [vmem:[%s1 + $0x304] sm:$0xf]
  %v383 = vld [vmem:[%s1 + $0x308] sm:$0xf]
  %v384 = vld [vmem:[%s1 + $0x30c] sm:$0xf]
  %v385 = vld [vmem:[%s1 + $0x310] sm:$0xf]
  %v386 = vld [vmem:[%s1 + $0x314] sm:$0xf]
  %v387 = vld [vmem:[%s1 + $0x318] sm:$0xf]
  %v388 = vld [vmem:[%s1 + $0x31c] sm:$0xf]
  %v389 = vld [vmem:[%s1 + $0x320] sm:$0xf]
  %v390 = vld [vmem:[%s1 + $0x324] sm:$0xf]
  %v391 = vld [vmem:[%s1 + $0x328] sm:$0xf]
  %v392 = vld [vmem:[%s1 + $0x32c] sm:$0xf]
  %v393 = vld [vmem:[%s1 + $0x330] sm:$0xf]
  %v394 = vld [vmem:[%s1 + $0x334] sm:$0xf]
  %v395 = vld [vmem:[%s1 + $0x338] sm:$0xf]
  %v396 = vld [vmem:[%s1 + $0x33c] sm:$0xf]
  %v397 = vld [vmem:[%s1 + $0x340] sm:$0xf]
  %v398 = vld [vmem:[%s1 + $0x344] sm:$0xf]
  %v399 = vld [vmem:[%s1 + $0x348] sm:$0xf]
  %v400 = vld [vmem:[%s1 + $0x34c] sm:$0xf]
  %v401 = vld [vmem:[%s1 + $0x350] sm:$0xf]
  %v402 = vld [vmem:[%s1 + $0x354] sm:$0xf]
  %v403 = vld [vmem:[%s1 + $0x358] sm:$0xf]
  %v404 = vld [vmem:[%s1 + $0x35c] sm:$0xf]
  %v405 = vld [vmem:[%s1 + $0x360] sm:$0xf]
  %v406 = vld [vmem:[%s1 + $0x364] sm:$0xf]
  %v407 = vld [vmem:[%s1 + $0x368] sm:$0xf]
  %v408 = vld [vmem:[%s1 + $0x36c] sm:$0xf]
  %v409 = vld [vmem:[%s1 + $0x370] sm:$0xf]
  %v410 = vld [vmem:[%s1 + $0x374] sm:$0xf]
  %v411 = vld [vmem:[%s1 + $0x378] sm:$0xf]
  %v412 = vld [vmem:[%s1 + $0x37c] sm:$0xf]
  %v413 = vld [vmem:[%s1 + $0x380] sm:$0xf]
  %v414 = vld [vmem:[%s1 + $0x384] sm:$0xf]
  %v415 = vld [vmem:[%s1 + $0x388] sm:$0xf]
  %v416 = vld [vmem:[%s1 + $0x38c] sm:$0xf]
  %v417 = vld [vmem:[%s1 + $0x390] sm:$0xf]
  %v418 = vld [vmem:[%s1 + $0x394] sm:$0xf]
  %v419 = vld [vmem:[%s1 + $0x398] sm:$0xf]
  %v420 = vld [vmem:[%s1 + $0x39c] sm:$0xf]
  %v421 = vld [vmem:[%s1 + $0x3a0] sm:$0xf]
  %v422 = vld [vmem:[%s1 + $0x3a4] sm:$0xf]
  %v423 = vld [vmem:[%s1 + $0x3a8] sm:$0xf]
  %v424 = vld [vmem:[%s1 + $0x3ac] sm:$0xf]
  %v425 = vld [vmem:[%s1 + $0x3b0] sm:$0xf]
  %v426 = vld [vmem:[%s1 + $0x3b4] sm:$0xf]
  %v427 = vld [vmem:[%s1 + $0x3b8] sm:$0xf]
  %v428 = vld [vmem:[%s1 + $0x3bc] sm:$0xf]
  %v429 = vld [vmem:[%s1 + $0x3c0] sm:$0xf]
  %v430 = vld [vmem:[%s1 + $0x3c4] sm:$0xf]
  %v431 = vld [vmem:[%s1 + $0x3c8] sm:$0xf]
  %v432 = vld [vmem:[%s1 + $0x3cc] sm:$0xf]
  %v433 = vld [vmem:[%s1 + $0x3d0] sm:$0xf]
  %v434 = vld [vmem:[%s1 + $0x3d4] sm:$0xf]
  %v435 = vld [vmem:[%s1 + $0x3d8] sm:$0xf]
  %v436 = vld [vmem:[%s1 + $0x3dc] sm:$0xf]
  %v437 = vld [vmem:[%s1 + $0x3e0] sm:$0xf]
  %v438 = vld [vmem:[%s1 + $0x3e4] sm:$0xf]
  %v439 = vld [vmem:[%s1 + $0x3e8] sm:$0xf]
  %v440 = vld [vmem:[%s1 + $0x3ec] sm:$0xf]
  %v441 = vld [vmem:[%s1 + $0x3f0] sm:$0xf]
  %v442 = vld [vmem:[%s1 + $0x3f4] sm:$0xf]
  %v443 = vld [vmem:[%s1 + $0x3f8] sm:$0xf]
  %v444 = vld [vmem:[%s1 + $0x3fc] sm:$0xf]
  %v445 = vld [vmem:[%s1 + $0x400] sm:$0xf]
  %v446 = vld [vmem:[%s1 + $0x404] sm:$0xf]
  %v447 = vld [vmem:[%s1 + $0x408] sm:$0xf]
  %v448 = vld [vmem:[%s1 + $0x40c] sm:$0xf]
  %v449 = vld [vmem:[%s1 + $0x410] sm:$0xf]
  %v450 = vld [vmem:[%s1 + $0x414] sm:$0xf]
  %v451 = vld [vmem:[%s1 + $0x418] sm:$0xf]
  %v452 = vld [vmem:[%s1 + $0x41c] sm:$0xf]
  %v453 = vld [vmem:[%s1 + $0x420] sm:$0xf]
  %v454 = vld [vmem:[%s1 + $0x424] sm:$0xf]
  %v455 = vld [vmem:[%s1 + $0x428] sm:$0xf]
  %v456 = vld [vmem:[%s1 + $0x42c] sm:$0xf]
  %v457 = vld [vmem:[%s1 + $0x430] sm:$0xf]
  %v458 = vld [vmem:[%s1 + $0x434] sm:$0xf]
  %v459 = vld [vmem:[%s1 + $0x438] sm:$0xf]
  %v460 = vld [vmem:[%s1 + $0x43c] sm:$0xf]
  %v461 = vld [vmem:[%s1 + $0x440] sm:$0xf]
  %v462 = vld [vmem:[%s1 + $0x444] sm:$0xf]
  %v463 = vld [vmem:[%s1 + $0x448] sm:$0xf]
  %v464 = vld [vmem:[%s1 + $0x44c] sm:$0xf]
  %v465 = vld [vmem:[%s1 + $0x450] sm:$0xf]
  %v466 = vld [vmem:[%s1 + $0x454] sm:$0xf]
  %v467 = vld [vmem:[%s1 + $0x458] sm:$0xf]
  %v468 = vld [vmem:[%s1 + $0x45c] sm:$0xf]
  %v469 = vld [vmem:[%s1 + $0x460] sm:$0xf]
  %v470 = vld [vmem:[%s1 + $0x464] sm:$0xf]
  %v471 = vld [vmem:[%s1 + $0x468] sm:$0xf]
  %v472 = vld [vmem:[%s1 + $0x46c] sm:$0xf]
  %v473 = vld [vmem:[%s1 + $0x470] sm:$0xf]
  %v474 = vld [vmem:[%s1 + $0x474] sm:$0xf]
  %v475 = vld [vmem:[%s1 + $0x478] sm:$0xf]
  %v476 = vld [vmem:[%s1 + $0x47c] sm:$0xf]
  %v477 = vld [vmem:[%s1 + $0x480] sm:$0xf]
  %v478 = vld [vmem:[%s1 + $0x484] sm:$0xf]
  %v479 = vld [vmem:[%s1 + $0x488] sm:$0xf]
  %v480 = vld [vmem:[%s1 + $0x48c] sm:$0xf]
  %v481 = vld [vmem:[%s1 + $0x490] sm:$0xf]
  %v482 = vld [vmem:[%s1 + $0x494] sm:$0xf]
  %v483 = vld [vmem:[%s1 + $0x498] sm:$0xf]
  %v484 = vld [vmem:[%s1 + $0x49c] sm:$0xf]
  %v485 = vld [vmem:[%s1 + $0x4a0] sm:$0xf]
  %v486 = vld [vmem:[%s1 + $0x4a4] sm:$0xf]
  %v487 = vld [vmem:[%s1 + $0x4a8] sm:$0xf]
  %v488 = vld [vmem:[%s1 + $0x4ac] sm:$0xf]
  %v489 = vld [vmem:[%s1 + $0x4b0] sm:$0xf]
  %v490 = vld [vmem:[%s1 + $0x4b4] sm:$0xf]
  %v491 = vld [vmem:[%s1 + $0x4b8] sm:$0xf]
  %v492 = vld [vmem:[%s1 + $0x4bc] sm:$0xf]
  %v493 = vld [vmem:[%s1 + $0x4c0] sm:$0xf]
  %v494 = vld [vmem:[%s1 + $0x4c4] sm:$0xf]
  %v495 = vld [vmem:[%s1 + $0x4c8] sm:$0xf]
  %v496 = vld [vmem:[%s1 + $0x4cc] sm:$0xf]
  %v497 = vld [vmem:[%s1 + $0x4d0] sm:$0xf]
  %v498 = vld [vmem:[%s1 + $0x4d4] sm:$0xf]
  %v499 = vld [vmem:[%s1 + $0x4d8] sm:$0xf]
  %v500 = vld [vmem:[%s1 + $0x4dc] sm:$0xf]
  %v501 = vld [vmem:[%s1 + $0x4e0] sm:$0xf]
  %v502 = vld [vmem:[%s1 + $0x4e4] sm:$0xf]
  %v503 = vld [vmem:[%s1 + $0x4e8] sm:$0xf]
  %v504 = vld [vmem:[%s1 + $0x4ec] sm:$0xf]
  %v505 = vld [vmem:[%s1 + $0x4f0] sm:$0xf]
  %v506 = vld [vmem:[%s1 + $0x4f4] sm:$0xf]
  %v507 = vld [vmem:[%s1 + $0x4f8] sm:$0xf]
  %v508 = vld [vmem:[%s1 + $0x4fc] sm:$0xf]
  %v509 = vld [vmem:[%s1 + $0x500] sm:$0xf]
  %v510 = vld [vmem:[%s1 + $0x504] sm:$0xf]
  %v511 = vld [vmem:[%s1 + $0x508] sm:$0xf]
  %v512 = vld [vmem:[%s1 + $0x50c] sm:$0xf]
  %v513 = vld [vmem:[%s1 + $0x510] sm:$0xf]
  %v514 = vld [vmem:[%s1 + $0x514] sm:$0xf]
  %v515 = vld [vmem:[%s1 + $0x518] sm:$0xf]
  %v516 = vld [vmem:[%s1 + $0x51c] sm:$0xf]
  %v517 = vld [vmem:[%s1 + $0x520] sm:$0xf]
  %v518 = vld [vmem:[%s1 + $0x524] sm:$0xf]
  %v519 = vld [vmem:[%s1 + $0x528] sm:$0xf]
  %v520 = vld [vmem:[%s1 + $0x52c] sm:$0xf]
  %v521 = vld [vmem:[%s1 + $0x530] sm:$0xf]
  %v522 = vld [vmem:[%s1 + $0x534] sm:$0xf]
  %v523 = vld [vmem:[%s1 + $0x538] sm:$0xf]
  %v524 = vld [vmem:[%s1 + $0x53c] sm:$0xf]
  %v525 = vld [vmem:[%s1 + $0x540] sm:$0xf]
  %v526 = vld [vmem:[%s1 + $0x544] sm:$0xf]
  %v527 = vld [vmem:[%s1 + $0x548] sm:$0xf]
  %v528 = vld [vmem:[%s1 + $0x54c] sm:$0xf]
  %v529 = vld [vmem:[%s1 + $0x550] sm:$0xf]
  %v530 = vld [vmem:[%s1 + $0x554] sm:$0xf]
  %v531 = vld [vmem:[%s1 + $0x558] sm:$0xf]
  %v532 = vld [vmem:[%s1 + $0x55c] sm:$0xf]
  %v533 = vld [vmem:[%s1 + $0x560] sm:$0xf]
  %v534 = vld [vmem:[%s1 + $0x564] sm:$0xf]
  %v535 = vld [vmem:[%s1 + $0x568] sm:$0xf]
  %v536 = vld [vmem:[%s1 + $0x56c] sm:$0xf]
  %v537 = vld [vmem:[%s1 + $0x570] sm:$0xf]
  %v538 = vld [vmem:[%s1 + $0x574] sm:$0xf]
  %v539 = vld [vmem:[%s1 + $0x578] sm:$0xf]
  %v540 = vld [vmem:[%s1 + $0x57c] sm:$0xf]
  %v541 = vld [vmem:[%s1 + $0x580] sm:$0xf]
  %v542 = vld [vmem:[%s1 + $0x584] sm:$0xf]
  %v543 = vld [vmem:[%s1 + $0x588] sm:$0xf]
  %v544 = vld [vmem:[%s1 + $0x58c] sm:$0xf]
  %v545 = vld [vmem:[%s1 + $0x590] sm:$0xf]
  %v546 = vld [vmem:[%s1 + $0x594] sm:$0xf]
  %v547 = vld [vmem:[%s1 + $0x598] sm:$0xf]
  %v548 = vld [vmem:[%s1 + $0x59c] sm:$0xf]
  %v549 = vld [vmem:[%s1 + $0x5a0] sm:$0xf]
  %v550 = vld [vmem:[%s1 + $0x5a4] sm:$0xf]
  %v551 = vld [vmem:[%s1 + $0x5a8] sm:$0xf]
  %v552 = vld [vmem:[%s1 + $0x5ac] sm:$0xf]
  %v553 = vld [vmem:[%s1 + $0x5b0] sm:$0xf]
  %v554 = vld [vmem:[%s1 + $0x5b4] sm:$0xf]
  %v555 = vld [vmem:[%s1 + $0x5b8] sm:$0xf]
  %v556 = vld [vmem:[%s1 + $0x5bc] sm:$0xf]
  %v557 = vld [vmem:[%s1 + $0x5c0] sm:$0xf]
  %v558 = vld [vmem:[%s1 + $0x5c4] sm:$0xf]
  %v559 = vld [vmem:[%s1 + $0x5c8] sm:$0xf]
  %v560 = vld [vmem:[%s1 + $0x5cc] sm:$0xf]
  %v561 = vld [vmem:[%s1 + $0x5d0] sm:$0xf]
  %v562 = vld [vmem:[%s1 + $0x5d4] sm:$0xf]
  %v563 = vld [vmem:[%s1 + $0x5d8] sm:$0xf]
  %v564 = vld [vmem:[%s1 + $0x5dc] sm:$0xf]
  %v565 = vld [vmem:[%s1 + $0x5e0] sm:$0xf]
  %v566 = vld [vmem:[%s1 + $0x5e4] sm:$0xf]
  %v567 = vld [vmem:[%s1 + $0x5e8] sm:$0xf]
  %v568 = vld [vmem:[%s1 + $0x5ec] sm:$0xf]
  %v569 = vld [vmem:[%s1 + $0x5f0] sm:$0xf]
  %v570 = vld [vmem:[%s1 + $0x5f4] sm:$0xf]
  %v571 = vld [vmem:[%s1 + $0x5f8] sm:$0xf]
  %v572 = vld [vmem:[%s1 + $0x5fc] sm:$0xf]
  %v573 = vld [vmem:[%s2] sm:$0x1]
  %v575 = vlaneseq
  %v576 = vshrl.u32 %v575, 7
  %v577 = vsub.s32 0, %v576
  %v578 = vrot.slane %v573, %v577
  %v964 = vunpack.c.l.b16 %v189
  %v965 = vunpack.c.l.b16 %v190
  %v966 = vunpack.c.l.b16 %v191
  %v967 = vunpack.c.l.b16 %v192
  %v968 = vunpack.c.l.b16 %v193
  %v969 = vunpack.c.l.b16 %v194
  %v970 = vunpack.c.l.b16 %v195
  %v971 = vunpack.c.l.b16 %v196
  %v972 = vunpack.c.l.b16 %v197
  %v973 = vunpack.c.l.b16 %v198
  %v974 = vunpack.c.l.b16 %v199
  %v975 = vunpack.c.l.b16 %v200
  %v976 = vunpack.c.l.b16 %v201
  %v977 = vunpack.c.l.b16 %v202
  %v978 = vunpack.c.l.b16 %v203
  %v979 = vunpack.c.l.b16 %v204
  %v980 = vunpack.c.l.b16 %v205
  %v981 = vunpack.c.l.b16 %v206
  %v982 = vunpack.c.l.b16 %v207
  %v983 = vunpack.c.l.b16 %v208
  %v984 = vunpack.c.l.b16 %v209
  %v985 = vunpack.c.l.b16 %v210
  %v986 = vunpack.c.l.b16 %v211
  %v987 = vunpack.c.l.b16 %v212
  %v988 = vunpack.c.l.b16 %v213
  %v989 = vunpack.c.l.b16 %v214
  %v990 = vunpack.c.l.b16 %v215
  %v991 = vunpack.c.l.b16 %v216
  %v992 = vunpack.c.l.b16 %v217
  %v993 = vunpack.c.l.b16 %v218
  %v994 = vunpack.c.l.b16 %v219
  %v995 = vunpack.c.l.b16 %v220
  %v996 = vunpack.c.l.b16 %v221
  %v997 = vunpack.c.l.b16 %v222
  %v998 = vunpack.c.l.b16 %v223
  %v999 = vunpack.c.l.b16 %v224
  %v1000 = vunpack.c.l.b16 %v225
  %v1001 = vunpack.c.l.b16 %v226
  %v1002 = vunpack.c.l.b16 %v227
  %v1003 = vunpack.c.l.b16 %v228
  %v1004 = vunpack.c.l.b16 %v229
  %v1005 = vunpack.c.l.b16 %v230
  %v1006 = vunpack.c.l.b16 %v231
  %v1007 = vunpack.c.l.b16 %v232
  %v1008 = vunpack.c.l.b16 %v233
  %v1009 = vunpack.c.l.b16 %v234
  %v1010 = vunpack.c.l.b16 %v235
  %v1011 = vunpack.c.l.b16 %v236
  %v1012 = vunpack.c.l.b16 %v237
  %v1013 = vunpack.c.l.b16 %v238
  %v1014 = vunpack.c.l.b16 %v239
  %v1015 = vunpack.c.l.b16 %v240
  %v1016 = vunpack.c.l.b16 %v241
  %v1017 = vunpack.c.l.b16 %v242
  %v1018 = vunpack.c.l.b16 %v243
  %v1019 = vunpack.c.l.b16 %v244
  %v1020 = vunpack.c.l.b16 %v245
  %v1021 = vunpack.c.l.b16 %v246
  %v1022 = vunpack.c.l.b16 %v247
  %v1023 = vunpack.c.l.b16 %v248
  %v1024 = vunpack.c.l.b16 %v249
  %v1025 = vunpack.c.l.b16 %v250
  %v1026 = vunpack.c.l.b16 %v251
  %v1027 = vunpack.c.l.b16 %v252
  %v1028 = vunpack.c.l.b16 %v253
  %v1029 = vunpack.c.l.b16 %v254
  %v1030 = vunpack.c.l.b16 %v255
  %v1031 = vunpack.c.l.b16 %v256
  %v1032 = vunpack.c.l.b16 %v257
  %v1033 = vunpack.c.l.b16 %v258
  %v1034 = vunpack.c.l.b16 %v259
  %v1035 = vunpack.c.l.b16 %v260
  %v1036 = vunpack.c.l.b16 %v261
  %v1037 = vunpack.c.l.b16 %v262
  %v1038 = vunpack.c.l.b16 %v263
  %v1039 = vunpack.c.l.b16 %v264
  %v1040 = vunpack.c.l.b16 %v265
  %v1041 = vunpack.c.l.b16 %v266
  %v1042 = vunpack.c.l.b16 %v267
  %v1043 = vunpack.c.l.b16 %v268
  %v1044 = vunpack.c.l.b16 %v269
  %v1045 = vunpack.c.l.b16 %v270
  %v1046 = vunpack.c.l.b16 %v271
  %v1047 = vunpack.c.l.b16 %v272
  %v1048 = vunpack.c.l.b16 %v273
  %v1049 = vunpack.c.l.b16 %v274
  %v1050 = vunpack.c.l.b16 %v275
  %v1051 = vunpack.c.l.b16 %v276
  %v1052 = vunpack.c.l.b16 %v277
  %v1053 = vunpack.c.l.b16 %v278
  %v1054 = vunpack.c.l.b16 %v279
  %v1055 = vunpack.c.l.b16 %v280
  %v1056 = vunpack.c.l.b16 %v281
  %v1057 = vunpack.c.l.b16 %v282
  %v1058 = vunpack.c.l.b16 %v283
  %v1059 = vunpack.c.l.b16 %v284
  %v1060 = vunpack.c.l.b16 %v285
  %v1061 = vunpack.c.l.b16 %v286
  %v1062 = vunpack.c.l.b16 %v287
  %v1063 = vunpack.c.l.b16 %v288
  %v1064 = vunpack.c.l.b16 %v289
  %v1065 = vunpack.c.l.b16 %v290
  %v1066 = vunpack.c.l.b16 %v291
  %v1067 = vunpack.c.l.b16 %v292
  %v1068 = vunpack.c.l.b16 %v293
  %v1069 = vunpack.c.l.b16 %v294
  %v1070 = vunpack.c.l.b16 %v295
  %v1071 = vunpack.c.l.b16 %v296
  %v1072 = vunpack.c.l.b16 %v297
  %v1073 = vunpack.c.l.b16 %v298
  %v1074 = vunpack.c.l.b16 %v299
  %v1075 = vunpack.c.l.b16 %v300
  %v1076 = vunpack.c.l.b16 %v301
  %v1077 = vunpack.c.l.b16 %v302
  %v1078 = vunpack.c.l.b16 %v303
  %v1079 = vunpack.c.l.b16 %v304
  %v1080 = vunpack.c.l.b16 %v305
  %v1081 = vunpack.c.l.b16 %v306
  %v1082 = vunpack.c.l.b16 %v307
  %v1083 = vunpack.c.l.b16 %v308
  %v1084 = vunpack.c.l.b16 %v309
  %v1085 = vunpack.c.l.b16 %v310
  %v1086 = vunpack.c.l.b16 %v311
  %v1087 = vunpack.c.l.b16 %v312
  %v1088 = vunpack.c.l.b16 %v313
  %v1089 = vunpack.c.l.b16 %v314
  %v1090 = vunpack.c.l.b16 %v315
  %v1091 = vunpack.c.l.b16 %v316
  %v1092 = vunpack.c.l.b16 %v317
  %v1093 = vunpack.c.l.b16 %v318
  %v1094 = vunpack.c.l.b16 %v319
  %v1095 = vunpack.c.l.b16 %v320
  %v1096 = vunpack.c.l.b16 %v321
  %v1097 = vunpack.c.l.b16 %v322
  %v1098 = vunpack.c.l.b16 %v323
  %v1099 = vunpack.c.l.b16 %v324
  %v1100 = vunpack.c.l.b16 %v325
  %v1101 = vunpack.c.l.b16 %v326
  %v1102 = vunpack.c.l.b16 %v327
  %v1103 = vunpack.c.l.b16 %v328
  %v1104 = vunpack.c.l.b16 %v329
  %v1105 = vunpack.c.l.b16 %v330
  %v1106 = vunpack.c.l.b16 %v331
  %v1107 = vunpack.c.l.b16 %v332
  %v1108 = vunpack.c.l.b16 %v333
  %v1109 = vunpack.c.l.b16 %v334
  %v1110 = vunpack.c.l.b16 %v335
  %v1111 = vunpack.c.l.b16 %v336
  %v1112 = vunpack.c.l.b16 %v337
  %v1113 = vunpack.c.l.b16 %v338
  %v1114 = vunpack.c.l.b16 %v339
  %v1115 = vunpack.c.l.b16 %v340
  %v1116 = vunpack.c.l.b16 %v341
  %v1117 = vunpack.c.l.b16 %v342
  %v1118 = vunpack.c.l.b16 %v343
  %v1119 = vunpack.c.l.b16 %v344
  %v1120 = vunpack.c.l.b16 %v345
  %v1121 = vunpack.c.l.b16 %v346
  %v1122 = vunpack.c.l.b16 %v347
  %v1123 = vunpack.c.l.b16 %v348
  %v1124 = vunpack.c.l.b16 %v349
  %v1125 = vunpack.c.l.b16 %v350
  %v1126 = vunpack.c.l.b16 %v351
  %v1127 = vunpack.c.l.b16 %v352
  %v1128 = vunpack.c.l.b16 %v353
  %v1129 = vunpack.c.l.b16 %v354
  %v1130 = vunpack.c.l.b16 %v355
  %v1131 = vunpack.c.l.b16 %v356
  %v1132 = vunpack.c.l.b16 %v357
  %v1133 = vunpack.c.l.b16 %v358
  %v1134 = vunpack.c.l.b16 %v359
  %v1135 = vunpack.c.l.b16 %v360
  %v1136 = vunpack.c.l.b16 %v361
  %v1137 = vunpack.c.l.b16 %v362
  %v1138 = vunpack.c.l.b16 %v363
  %v1139 = vunpack.c.l.b16 %v364
  %v1140 = vunpack.c.l.b16 %v365
  %v1141 = vunpack.c.l.b16 %v366
  %v1142 = vunpack.c.l.b16 %v367
  %v1143 = vunpack.c.l.b16 %v368
  %v1144 = vunpack.c.l.b16 %v369
  %v1145 = vunpack.c.l.b16 %v370
  %v1146 = vunpack.c.l.b16 %v371
  %v1147 = vunpack.c.l.b16 %v372
  %v1148 = vunpack.c.l.b16 %v373
  %v1149 = vunpack.c.l.b16 %v374
  %v1150 = vunpack.c.l.b16 %v375
  %v1151 = vunpack.c.l.b16 %v376
  %v1152 = vunpack.c.l.b16 %v377
  %v1153 = vunpack.c.l.b16 %v378
  %v1154 = vunpack.c.l.b16 %v379
  %v1155 = vunpack.c.l.b16 %v380
  %v1156 = vunpack.c.l.b16 %v381
  %v1157 = vunpack.c.l.b16 %v382
  %v1158 = vunpack.c.l.b16 %v383
  %v1159 = vunpack.c.l.b16 %v384
  %v1160 = vunpack.c.l.b16 %v385
  %v1161 = vunpack.c.l.b16 %v386
  %v1162 = vunpack.c.l.b16 %v387
  %v1163 = vunpack.c.l.b16 %v388
  %v1164 = vunpack.c.l.b16 %v389
  %v1165 = vunpack.c.l.b16 %v390
  %v1166 = vunpack.c.l.b16 %v391
  %v1167 = vunpack.c.l.b16 %v392
  %v1168 = vunpack.c.l.b16 %v393
  %v1169 = vunpack.c.l.b16 %v394
  %v1170 = vunpack.c.l.b16 %v395
  %v1171 = vunpack.c.l.b16 %v396
  %v1172 = vunpack.c.l.b16 %v397
  %v1173 = vunpack.c.l.b16 %v398
  %v1174 = vunpack.c.l.b16 %v399
  %v1175 = vunpack.c.l.b16 %v400
  %v1176 = vunpack.c.l.b16 %v401
  %v1177 = vunpack.c.l.b16 %v402
  %v1178 = vunpack.c.l.b16 %v403
  %v1179 = vunpack.c.l.b16 %v404
  %v1180 = vunpack.c.l.b16 %v405
  %v1181 = vunpack.c.l.b16 %v406
  %v1182 = vunpack.c.l.b16 %v407
  %v1183 = vunpack.c.l.b16 %v408
  %v1184 = vunpack.c.l.b16 %v409
  %v1185 = vunpack.c.l.b16 %v410
  %v1186 = vunpack.c.l.b16 %v411
  %v1187 = vunpack.c.l.b16 %v412
  %v1188 = vunpack.c.l.b16 %v413
  %v1189 = vunpack.c.l.b16 %v414
  %v1190 = vunpack.c.l.b16 %v415
  %v1191 = vunpack.c.l.b16 %v416
  %v1192 = vunpack.c.l.b16 %v417
  %v1193 = vunpack.c.l.b16 %v418
  %v1194 = vunpack.c.l.b16 %v419
  %v1195 = vunpack.c.l.b16 %v420
  %v1196 = vunpack.c.l.b16 %v421
  %v1197 = vunpack.c.l.b16 %v422
  %v1198 = vunpack.c.l.b16 %v423
  %v1199 = vunpack.c.l.b16 %v424
  %v1200 = vunpack.c.l.b16 %v425
  %v1201 = vunpack.c.l.b16 %v426
  %v1202 = vunpack.c.l.b16 %v427
  %v1203 = vunpack.c.l.b16 %v428
  %v1204 = vunpack.c.l.b16 %v429
  %v1205 = vunpack.c.l.b16 %v430
  %v1206 = vunpack.c.l.b16 %v431
  %v1207 = vunpack.c.l.b16 %v432
  %v1208 = vunpack.c.l.b16 %v433
  %v1209 = vunpack.c.l.b16 %v434
  %v1210 = vunpack.c.l.b16 %v435
  %v1211 = vunpack.c.l.b16 %v436
  %v1212 = vunpack.c.l.b16 %v437
  %v1213 = vunpack.c.l.b16 %v438
  %v1214 = vunpack.c.l.b16 %v439
  %v1215 = vunpack.c.l.b16 %v440
  %v1216 = vunpack.c.l.b16 %v441
  %v1217 = vunpack.c.l.b16 %v442
  %v1218 = vunpack.c.l.b16 %v443
  %v1219 = vunpack.c.l.b16 %v444
  %v1220 = vunpack.c.l.b16 %v445
  %v1221 = vunpack.c.l.b16 %v446
  %v1222 = vunpack.c.l.b16 %v447
  %v1223 = vunpack.c.l.b16 %v448
  %v1224 = vunpack.c.l.b16 %v449
  %v1225 = vunpack.c.l.b16 %v450
  %v1226 = vunpack.c.l.b16 %v451
  %v1227 = vunpack.c.l.b16 %v452
  %v1228 = vunpack.c.l.b16 %v453
  %v1229 = vunpack.c.l.b16 %v454
  %v1230 = vunpack.c.l.b16 %v455
  %v1231 = vunpack.c.l.b16 %v456
  %v1232 = vunpack.c.l.b16 %v457
  %v1233 = vunpack.c.l.b16 %v458
  %v1234 = vunpack.c.l.b16 %v459
  %v1235 = vunpack.c.l.b16 %v460
  %v1236 = vunpack.c.l.b16 %v461
  %v1237 = vunpack.c.l.b16 %v462
  %v1238 = vunpack.c.l.b16 %v463
  %v1239 = vunpack.c.l.b16 %v464
  %v1240 = vunpack.c.l.b16 %v465
  %v1241 = vunpack.c.l.b16 %v466
  %v1242 = vunpack.c.l.b16 %v467
  %v1243 = vunpack.c.l.b16 %v468
  %v1244 = vunpack.c.l.b16 %v469
  %v1245 = vunpack.c.l.b16 %v470
  %v1246 = vunpack.c.l.b16 %v471
  %v1247 = vunpack.c.l.b16 %v472
  %v1248 = vunpack.c.l.b16 %v473
  %v1249 = vunpack.c.l.b16 %v474
  %v1250 = vunpack.c.l.b16 %v475
  %v1251 = vunpack.c.l.b16 %v476
  %v1252 = vunpack.c.l.b16 %v477
  %v1253 = vunpack.c.l.b16 %v478
  %v1254 = vunpack.c.l.b16 %v479
  %v1255 = vunpack.c.l.b16 %v480
  %v1256 = vunpack.c.l.b16 %v481
  %v1257 = vunpack.c.l.b16 %v482
  %v1258 = vunpack.c.l.b16 %v483
  %v1259 = vunpack.c.l.b16 %v484
  %v1260 = vunpack.c.l.b16 %v485
  %v1261 = vunpack.c.l.b16 %v486
  %v1262 = vunpack.c.l.b16 %v487
  %v1263 = vunpack.c.l.b16 %v488
  %v1264 = vunpack.c.l.b16 %v489
  %v1265 = vunpack.c.l.b16 %v490
  %v1266 = vunpack.c.l.b16 %v491
  %v1267 = vunpack.c.l.b16 %v492
  %v1268 = vunpack.c.l.b16 %v493
  %v1269 = vunpack.c.l.b16 %v494
  %v1270 = vunpack.c.l.b16 %v495
  %v1271 = vunpack.c.l.b16 %v496
  %v1272 = vunpack.c.l.b16 %v497
  %v1273 = vunpack.c.l.b16 %v498
  %v1274 = vunpack.c.l.b16 %v499
  %v1275 = vunpack.c.l.b16 %v500
  %v1276 = vunpack.c.l.b16 %v501
  %v1277 = vunpack.c.l.b16 %v502
  %v1278 = vunpack.c.l.b16 %v503
  %v1279 = vunpack.c.l.b16 %v504
  %v1280 = vunpack.c.l.b16 %v505
  %v1281 = vunpack.c.l.b16 %v506
  %v1282 = vunpack.c.l.b16 %v507
  %v1283 = vunpack.c.l.b16 %v508
  %v1284 = vunpack.c.l.b16 %v509
  %v1285 = vunpack.c.l.b16 %v510
  %v1286 = vunpack.c.l.b16 %v511
  %v1287 = vunpack.c.l.b16 %v512
  %v1288 = vunpack.c.l.b16 %v513
  %v1289 = vunpack.c.l.b16 %v514
  %v1290 = vunpack.c.l.b16 %v515
  %v1291 = vunpack.c.l.b16 %v516
  %v1292 = vunpack.c.l.b16 %v517
  %v1293 = vunpack.c.l.b16 %v518
  %v1294 = vunpack.c.l.b16 %v519
  %v1295 = vunpack.c.l.b16 %v520
  %v1296 = vunpack.c.l.b16 %v521
  %v1297 = vunpack.c.l.b16 %v522
  %v1298 = vunpack.c.l.b16 %v523
  %v1299 = vunpack.c.l.b16 %v524
  %v1300 = vunpack.c.l.b16 %v525
  %v1301 = vunpack.c.l.b16 %v526
  %v1302 = vunpack.c.l.b16 %v527
  %v1303 = vunpack.c.l.b16 %v528
  %v1304 = vunpack.c.l.b16 %v529
  %v1305 = vunpack.c.l.b16 %v530
  %v1306 = vunpack.c.l.b16 %v531
  %v1307 = vunpack.c.l.b16 %v532
  %v1308 = vunpack.c.l.b16 %v533
  %v1309 = vunpack.c.l.b16 %v534
  %v1310 = vunpack.c.l.b16 %v535
  %v1311 = vunpack.c.l.b16 %v536
  %v1312 = vunpack.c.l.b16 %v537
  %v1313 = vunpack.c.l.b16 %v538
  %v1314 = vunpack.c.l.b16 %v539
  %v1315 = vunpack.c.l.b16 %v540
  %v1316 = vunpack.c.l.b16 %v541
  %v1317 = vunpack.c.l.b16 %v542
  %v1318 = vunpack.c.l.b16 %v543
  %v1319 = vunpack.c.l.b16 %v544
  %v1320 = vunpack.c.l.b16 %v545
  %v1321 = vunpack.c.l.b16 %v546
  %v1322 = vunpack.c.l.b16 %v547
  %v1323 = vunpack.c.l.b16 %v548
  %v1324 = vunpack.c.l.b16 %v549
  %v1325 = vunpack.c.l.b16 %v550
  %v1326 = vunpack.c.l.b16 %v551
  %v1327 = vunpack.c.l.b16 %v552
  %v1328 = vunpack.c.l.b16 %v553
  %v1329 = vunpack.c.l.b16 %v554
  %v1330 = vunpack.c.l.b16 %v555
  %v1331 = vunpack.c.l.b16 %v556
  %v1332 = vunpack.c.l.b16 %v557
  %v1333 = vunpack.c.l.b16 %v558
  %v1334 = vunpack.c.l.b16 %v559
  %v1335 = vunpack.c.l.b16 %v560
  %v1336 = vunpack.c.l.b16 %v561
  %v1337 = vunpack.c.l.b16 %v562
  %v1338 = vunpack.c.l.b16 %v563
  %v1339 = vunpack.c.l.b16 %v564
  %v1340 = vunpack.c.l.b16 %v565
  %v1341 = vunpack.c.l.b16 %v566
  %v1342 = vunpack.c.l.b16 %v567
  %v1343 = vunpack.c.l.b16 %v568
  %v1344 = vunpack.c.l.b16 %v569
  %v1345 = vunpack.c.l.b16 %v570
  %v1346 = vunpack.c.l.b16 %v571
  %v1347 = vunpack.c.l.b16 %v572
  %v1348 = vpack.c.b16 %v965, %v964
  %v1349 = vpack.c.b16 %v967, %v966
  %v1350 = vpack.c.b16 %v969, %v968
  %v1351 = vpack.c.b16 %v971, %v970
  %v1352 = vpack.c.b16 %v973, %v972
  %v1353 = vpack.c.b16 %v975, %v974
  %v1354 = vpack.c.b16 %v977, %v976
  %v1355 = vpack.c.b16 %v979, %v978
  %v1356 = vpack.c.b16 %v981, %v980
  %v1357 = vpack.c.b16 %v983, %v982
  %v1358 = vpack.c.b16 %v985, %v984
  %v1359 = vpack.c.b16 %v987, %v986
  %v1360 = vpack.c.b16 %v989, %v988
  %v1361 = vpack.c.b16 %v991, %v990
  %v1362 = vpack.c.b16 %v993, %v992
  %v1363 = vpack.c.b16 %v995, %v994
  %v1364 = vpack.c.b16 %v997, %v996
  %v1365 = vpack.c.b16 %v999, %v998
  %v1366 = vpack.c.b16 %v1001, %v1000
  %v1367 = vpack.c.b16 %v1003, %v1002
  %v1368 = vpack.c.b16 %v1005, %v1004
  %v1369 = vpack.c.b16 %v1007, %v1006
  %v1370 = vpack.c.b16 %v1009, %v1008
  %v1371 = vpack.c.b16 %v1011, %v1010
  %v1372 = vpack.c.b16 %v1013, %v1012
  %v1373 = vpack.c.b16 %v1015, %v1014
  %v1374 = vpack.c.b16 %v1017, %v1016
  %v1375 = vpack.c.b16 %v1019, %v1018
  %v1376 = vpack.c.b16 %v1021, %v1020
  %v1377 = vpack.c.b16 %v1023, %v1022
  %v1378 = vpack.c.b16 %v1025, %v1024
  %v1379 = vpack.c.b16 %v1027, %v1026
  %v1380 = vpack.c.b16 %v1029, %v1028
  %v1381 = vpack.c.b16 %v1031, %v1030
  %v1382 = vpack.c.b16 %v1033, %v1032
  %v1383 = vpack.c.b16 %v1035, %v1034
  %v1384 = vpack.c.b16 %v1037, %v1036
  %v1385 = vpack.c.b16 %v1039, %v1038
  %v1386 = vpack.c.b16 %v1041, %v1040
  %v1387 = vpack.c.b16 %v1043, %v1042
  %v1388 = vpack.c.b16 %v1045, %v1044
  %v1389 = vpack.c.b16 %v1047, %v1046
  %v1390 = vpack.c.b16 %v1049, %v1048
  %v1391 = vpack.c.b16 %v1051, %v1050
  %v1392 = vpack.c.b16 %v1053, %v1052
  %v1393 = vpack.c.b16 %v1055, %v1054
  %v1394 = vpack.c.b16 %v1057, %v1056
  %v1395 = vpack.c.b16 %v1059, %v1058
  %v1396 = vpack.c.b16 %v1061, %v1060
  %v1397 = vpack.c.b16 %v1063, %v1062
  %v1398 = vpack.c.b16 %v1065, %v1064
  %v1399 = vpack.c.b16 %v1067, %v1066
  %v1400 = vpack.c.b16 %v1069, %v1068
  %v1401 = vpack.c.b16 %v1071, %v1070
  %v1402 = vpack.c.b16 %v1073, %v1072
  %v1403 = vpack.c.b16 %v1075, %v1074
  %v1404 = vpack.c.b16 %v1077, %v1076
  %v1405 = vpack.c.b16 %v1079, %v1078
  %v1406 = vpack.c.b16 %v1081, %v1080
  %v1407 = vpack.c.b16 %v1083, %v1082
  %v1408 = vpack.c.b16 %v1085, %v1084
  %v1409 = vpack.c.b16 %v1087, %v1086
  %v1410 = vpack.c.b16 %v1089, %v1088
  %v1411 = vpack.c.b16 %v1091, %v1090
  %v1412 = vpack.c.b16 %v1093, %v1092
  %v1413 = vpack.c.b16 %v1095, %v1094
  %v1414 = vpack.c.b16 %v1097, %v1096
  %v1415 = vpack.c.b16 %v1099, %v1098
  %v1416 = vpack.c.b16 %v1101, %v1100
  %v1417 = vpack.c.b16 %v1103, %v1102
  %v1418 = vpack.c.b16 %v1105, %v1104
  %v1419 = vpack.c.b16 %v1107, %v1106
  %v1420 = vpack.c.b16 %v1109, %v1108
  %v1421 = vpack.c.b16 %v1111, %v1110
  %v1422 = vpack.c.b16 %v1113, %v1112
  %v1423 = vpack.c.b16 %v1115, %v1114
  %v1424 = vpack.c.b16 %v1117, %v1116
  %v1425 = vpack.c.b16 %v1119, %v1118
  %v1426 = vpack.c.b16 %v1121, %v1120
  %v1427 = vpack.c.b16 %v1123, %v1122
  %v1428 = vpack.c.b16 %v1125, %v1124
  %v1429 = vpack.c.b16 %v1127, %v1126
  %v1430 = vpack.c.b16 %v1129, %v1128
  %v1431 = vpack.c.b16 %v1131, %v1130
  %v1432 = vpack.c.b16 %v1133, %v1132
  %v1433 = vpack.c.b16 %v1135, %v1134
  %v1434 = vpack.c.b16 %v1137, %v1136
  %v1435 = vpack.c.b16 %v1139, %v1138
  %v1436 = vpack.c.b16 %v1141, %v1140
  %v1437 = vpack.c.b16 %v1143, %v1142
  %v1438 = vpack.c.b16 %v1145, %v1144
  %v1439 = vpack.c.b16 %v1147, %v1146
  %v1440 = vpack.c.b16 %v1149, %v1148
  %v1441 = vpack.c.b16 %v1151, %v1150
  %v1442 = vpack.c.b16 %v1153, %v1152
  %v1443 = vpack.c.b16 %v1155, %v1154
  %v1444 = vpack.c.b16 %v1157, %v1156
  %v1445 = vpack.c.b16 %v1159, %v1158
  %v1446 = vpack.c.b16 %v1161, %v1160
  %v1447 = vpack.c.b16 %v1163, %v1162
  %v1448 = vpack.c.b16 %v1165, %v1164
  %v1449 = vpack.c.b16 %v1167, %v1166
  %v1450 = vpack.c.b16 %v1169, %v1168
  %v1451 = vpack.c.b16 %v1171, %v1170
  %v1452 = vpack.c.b16 %v1173, %v1172
  %v1453 = vpack.c.b16 %v1175, %v1174
  %v1454 = vpack.c.b16 %v1177, %v1176
  %v1455 = vpack.c.b16 %v1179, %v1178
  %v1456 = vpack.c.b16 %v1181, %v1180
  %v1457 = vpack.c.b16 %v1183, %v1182
  %v1458 = vpack.c.b16 %v1185, %v1184
  %v1459 = vpack.c.b16 %v1187, %v1186
  %v1460 = vpack.c.b16 %v1189, %v1188
  %v1461 = vpack.c.b16 %v1191, %v1190
  %v1462 = vpack.c.b16 %v1193, %v1192
  %v1463 = vpack.c.b16 %v1195, %v1194
  %v1464 = vpack.c.b16 %v1197, %v1196
  %v1465 = vpack.c.b16 %v1199, %v1198
  %v1466 = vpack.c.b16 %v1201, %v1200
  %v1467 = vpack.c.b16 %v1203, %v1202
  %v1468 = vpack.c.b16 %v1205, %v1204
  %v1469 = vpack.c.b16 %v1207, %v1206
  %v1470 = vpack.c.b16 %v1209, %v1208
  %v1471 = vpack.c.b16 %v1211, %v1210
  %v1472 = vpack.c.b16 %v1213, %v1212
  %v1473 = vpack.c.b16 %v1215, %v1214
  %v1474 = vpack.c.b16 %v1217, %v1216
  %v1475 = vpack.c.b16 %v1219, %v1218
  %v1476 = vpack.c.b16 %v1221, %v1220
  %v1477 = vpack.c.b16 %v1223, %v1222
  %v1478 = vpack.c.b16 %v1225, %v1224
  %v1479 = vpack.c.b16 %v1227, %v1226
  %v1480 = vpack.c.b16 %v1229, %v1228
  %v1481 = vpack.c.b16 %v1231, %v1230
  %v1482 = vpack.c.b16 %v1233, %v1232
  %v1483 = vpack.c.b16 %v1235, %v1234
  %v1484 = vpack.c.b16 %v1237, %v1236
  %v1485 = vpack.c.b16 %v1239, %v1238
  %v1486 = vpack.c.b16 %v1241, %v1240
  %v1487 = vpack.c.b16 %v1243, %v1242
  %v1488 = vpack.c.b16 %v1245, %v1244
  %v1489 = vpack.c.b16 %v1247, %v1246
  %v1490 = vpack.c.b16 %v1249, %v1248
  %v1491 = vpack.c.b16 %v1251, %v1250
  %v1492 = vpack.c.b16 %v1253, %v1252
  %v1493 = vpack.c.b16 %v1255, %v1254
  %v1494 = vpack.c.b16 %v1257, %v1256
  %v1495 = vpack.c.b16 %v1259, %v1258
  %v1496 = vpack.c.b16 %v1261, %v1260
  %v1497 = vpack.c.b16 %v1263, %v1262
  %v1498 = vpack.c.b16 %v1265, %v1264
  %v1499 = vpack.c.b16 %v1267, %v1266
  %v1500 = vpack.c.b16 %v1269, %v1268
  %v1501 = vpack.c.b16 %v1271, %v1270
  %v1502 = vpack.c.b16 %v1273, %v1272
  %v1503 = vpack.c.b16 %v1275, %v1274
  %v1504 = vpack.c.b16 %v1277, %v1276
  %v1505 = vpack.c.b16 %v1279, %v1278
  %v1506 = vpack.c.b16 %v1281, %v1280
  %v1507 = vpack.c.b16 %v1283, %v1282
  %v1508 = vpack.c.b16 %v1285, %v1284
  %v1509 = vpack.c.b16 %v1287, %v1286
  %v1510 = vpack.c.b16 %v1289, %v1288
  %v1511 = vpack.c.b16 %v1291, %v1290
  %v1512 = vpack.c.b16 %v1293, %v1292
  %v1513 = vpack.c.b16 %v1295, %v1294
  %v1514 = vpack.c.b16 %v1297, %v1296
  %v1515 = vpack.c.b16 %v1299, %v1298
  %v1516 = vpack.c.b16 %v1301, %v1300
  %v1517 = vpack.c.b16 %v1303, %v1302
  %v1518 = vpack.c.b16 %v1305, %v1304
  %v1519 = vpack.c.b16 %v1307, %v1306
  %v1520 = vpack.c.b16 %v1309, %v1308
  %v1521 = vpack.c.b16 %v1311, %v1310
  %v1522 = vpack.c.b16 %v1313, %v1312
  %v1523 = vpack.c.b16 %v1315, %v1314
  %v1524 = vpack.c.b16 %v1317, %v1316
  %v1525 = vpack.c.b16 %v1319, %v1318
  %v1526 = vpack.c.b16 %v1321, %v1320
  %v1527 = vpack.c.b16 %v1323, %v1322
  %v1528 = vpack.c.b16 %v1325, %v1324
  %v1529 = vpack.c.b16 %v1327, %v1326
  %v1530 = vpack.c.b16 %v1329, %v1328
  %v1531 = vpack.c.b16 %v1331, %v1330
  %v1532 = vpack.c.b16 %v1333, %v1332
  %v1533 = vpack.c.b16 %v1335, %v1334
  %v1534 = vpack.c.b16 %v1337, %v1336
  %v1535 = vpack.c.b16 %v1339, %v1338
  %v1536 = vpack.c.b16 %v1341, %v1340
  %v1537 = vpack.c.b16 %v1343, %v1342
  %v1538 = vpack.c.b16 %v1345, %v1344
  %v1539 = vpack.c.b16 %v1347, %v1346
  %1732 = vmatprep.subr.bf16.mxu0 0
  %1733 = vmatpush1.bf16.msra.mxu0 %v1348
  %1734 = vmatprep.subr.bf16.mxu0 0
  %1735 = vmatpush1.bf16.msra.mxu0 %v1349
  %1736 = vmatprep.subr.bf16.mxu0 0
  %1737 = vmatpush1.bf16.msra.mxu0 %v1350
  %1738 = vmatprep.subr.bf16.mxu0 0
  %1739 = vmatpush1.bf16.msra.mxu0 %v1351
  %1740 = vmatprep.subr.bf16.mxu0 0
  %1741 = vmatpush1.bf16.msra.mxu0 %v1352
  %1742 = vmatprep.subr.bf16.mxu0 0
  %1743 = vmatpush1.bf16.msra.mxu0 %v1353
  %1744 = vmatprep.subr.bf16.mxu0 0
  %1745 = vmatpush1.bf16.msra.mxu0 %v1354
  %1746 = vmatprep.subr.bf16.mxu0 0
  %1747 = vmatpush1.bf16.msra.mxu0 %v1355
  %1748 = vmatprep.subr.bf16.mxu0 0
  %1749 = vmatpush1.bf16.msra.mxu0 %v1356
  %1750 = vmatprep.subr.bf16.mxu0 0
  %1751 = vmatpush1.bf16.msra.mxu0 %v1357
  %1752 = vmatprep.subr.bf16.mxu0 0
  %1753 = vmatpush1.bf16.msra.mxu0 %v1358
  %1754 = vmatprep.subr.bf16.mxu0 0
  %1755 = vmatpush1.bf16.msra.mxu0 %v1359
  %1756 = vmatprep.subr.bf16.mxu0 0
  %1757 = vmatpush1.bf16.msra.mxu0 %v1360
  %1758 = vmatprep.subr.bf16.mxu0 0
  %1759 = vmatpush1.bf16.msra.mxu0 %v1361
  %1760 = vmatprep.subr.bf16.mxu0 0
  %1761 = vmatpush1.bf16.msra.mxu0 %v1362
  %1762 = vmatprep.subr.bf16.mxu0 0
  %1763 = vmatpush1.bf16.msra.mxu0 %v1363
  %1764 = vmatprep.mubr.bf16.mxu0 %v166
  %1765 = vmatmul.mubr.bf16.gmra.mrb[0].mxu0 %v165
  %v1766 = vpop.f32.mrb[0].mxu0
  %v1767 = vadd.f32 %v578, %v1766
  %v1768 = vpop.f32.mrb[0].mxu0
  %v1769 = vpop.f32.mrb[0].mxu0
  %v1770 = vpop.f32.mrb[0].mxu0
  %1771 = vdwg.mxu0
  %1772 = vmatprep.subr.bf16.mxu0 0
  %1773 = vmatpush1.bf16.msra.mxu0 %v1364
  %1774 = vmatprep.subr.bf16.mxu0 0
  %1775 = vmatpush1.bf16.msra.mxu0 %v1365
  %1776 = vmatprep.subr.bf16.mxu0 0
  %1777 = vmatpush1.bf16.msra.mxu0 %v1366
  %1778 = vmatprep.subr.bf16.mxu0 0
  %1779 = vmatpush1.bf16.msra.mxu0 %v1367
  %1780 = vmatprep.subr.bf16.mxu0 0
  %1781 = vmatpush1.bf16.msra.mxu0 %v1368
  %1782 = vmatprep.subr.bf16.mxu0 0
  %1783 = vmatpush1.bf16.msra.mxu0 %v1369
  %1784 = vmatprep.subr.bf16.mxu0 0
  %1785 = vmatpush1.bf16.msra.mxu0 %v1370
  %1786 = vmatprep.subr.bf16.mxu0 0
  %1787 = vmatpush1.bf16.msra.mxu0 %v1371
  %1788 = vmatprep.subr.bf16.mxu0 0
  %1789 = vmatpush1.bf16.msra.mxu0 %v1372
  %1790 = vmatprep.subr.bf16.mxu0 0
  %1791 = vmatpush1.bf16.msra.mxu0 %v1373
  %1792 = vmatprep.subr.bf16.mxu0 0
  %1793 = vmatpush1.bf16.msra.mxu0 %v1374
  %1794 = vmatprep.subr.bf16.mxu0 0
  %1795 = vmatpush1.bf16.msra.mxu0 %v1375
  %1796 = vmatprep.subr.bf16.mxu0 0
  %1797 = vmatpush1.bf16.msra.mxu0 %v1376
  %1798 = vmatprep.subr.bf16.mxu0 0
  %1799 = vmatpush1.bf16.msra.mxu0 %v1377
  %1800 = vmatprep.subr.bf16.mxu0 0
  %1801 = vmatpush1.bf16.msra.mxu0 %v1378
  %1802 = vmatprep.subr.bf16.mxu0 0
  %1803 = vmatpush1.bf16.msra.mxu0 %v1379
  %1804 = vmatprep.mubr.bf16.mxu0 %v168
  %1805 = vmatmul.mubr.bf16.gmra.mrb[0].mxu0 %v167
  %v1806 = vpop.f32.mrb[0].mxu0
  %v1807 = vadd.f32 %v1767, %v1806
  %v1808 = vpop.f32.mrb[0].mxu0
  %v1809 = vpop.f32.mrb[0].mxu0
  %v1810 = vpop.f32.mrb[0].mxu0
  %1811 = vdwg.mxu0
  %1812 = vmatprep.subr.bf16.mxu0 0
  %1813 = vmatpush1.bf16.msra.mxu0 %v1380
  %1814 = vmatprep.subr.bf16.mxu0 0
  %1815 = vmatpush1.bf16.msra.mxu0 %v1381
  %1816 = vmatprep.subr.bf16.mxu0 0
  %1817 = vmatpush1.bf16.msra.mxu0 %v1382
  %1818 = vmatprep.subr.bf16.mxu0 0
  %1819 = vmatpush1.bf16.msra.mxu0 %v1383
  %1820 = vmatprep.subr.bf16.mxu0 0
  %1821 = vmatpush1.bf16.msra.mxu0 %v1384
  %1822 = vmatprep.subr.bf16.mxu0 0
  %1823 = vmatpush1.bf16.msra.mxu0 %v1385
  %1824 = vmatprep.subr.bf16.mxu0 0
  %1825 = vmatpush1.bf16.msra.mxu0 %v1386
  %1826 = vmatprep.subr.bf16.mxu0 0
  %1827 = vmatpush1.bf16.msra.mxu0 %v1387
  %1828 = vmatprep.subr.bf16.mxu0 0
  %1829 = vmatpush1.bf16.msra.mxu0 %v1388
  %1830 = vmatprep.subr.bf16.mxu0 0
  %1831 = vmatpush1.bf16.msra.mxu0 %v1389
  %1832 = vmatprep.subr.bf16.mxu0 0
  %1833 = vmatpush1.bf16.msra.mxu0 %v1390
  %1834 = vmatprep.subr.bf16.mxu0 0
  %1835 = vmatpush1.bf16.msra.mxu0 %v1391
  %1836 = vmatprep.subr.bf16.mxu0 0
  %1837 = vmatpush1.bf16.msra.mxu0 %v1392
  %1838 = vmatprep.subr.bf16.mxu0 0
  %1839 = vmatpush1.bf16.msra.mxu0 %v1393
  %1840 = vmatprep.subr.bf16.mxu0 0
  %1841 = vmatpush1.bf16.msra.mxu0 %v1394
  %1842 = vmatprep.subr.bf16.mxu0 0
  %1843 = vmatpush1.bf16.msra.mxu0 %v1395
  %1844 = vmatprep.mubr.bf16.mxu0 %v170
  %1845 = vmatmul.mubr.bf16.gmra.mrb[0].mxu0 %v169
  %v1846 = vpop.f32.mrb[0].mxu0
  %v1847 = vadd.f32 %v1807, %v1846
  %v1848 = vpop.f32.mrb[0].mxu0
  %v1849 = vpop.f32.mrb[0].mxu0
  %v1850 = vpop.f32.mrb[0].mxu0
  %1851 = vdwg.mxu0
  %1852 = vmatprep.subr.bf16.mxu0 0
  %1853 = vmatpush1.bf16.msra.mxu0 %v1396
  %1854 = vmatprep.subr.bf16.mxu0 0
  %1855 = vmatpush1.bf16.msra.mxu0 %v1397
  %1856 = vmatprep.subr.bf16.mxu0 0
  %1857 = vmatpush1.bf16.msra.mxu0 %v1398
  %1858 = vmatprep.subr.bf16.mxu0 0
  %1859 = vmatpush1.bf16.msra.mxu0 %v1399
  %1860 = vmatprep.subr.bf16.mxu0 0
  %1861 = vmatpush1.bf16.msra.mxu0 %v1400
  %1862 = vmatprep.subr.bf16.mxu0 0
  %1863 = vmatpush1.bf16.msra.mxu0 %v1401
  %1864 = vmatprep.subr.bf16.mxu0 0
  %1865 = vmatpush1.bf16.msra.mxu0 %v1402
  %1866 = vmatprep.subr.bf16.mxu0 0
  %1867 = vmatpush1.bf16.msra.mxu0 %v1403
  %1868 = vmatprep.subr.bf16.mxu0 0
  %1869 = vmatpush1.bf16.msra.mxu0 %v1404
  %1870 = vmatprep.subr.bf16.mxu0 0
  %1871 = vmatpush1.bf16.msra.mxu0 %v1405
  %1872 = vmatprep.subr.bf16.mxu0 0
  %1873 = vmatpush1.bf16.msra.mxu0 %v1406
  %1874 = vmatprep.subr.bf16.mxu0 0
  %1875 = vmatpush1.bf16.msra.mxu0 %v1407
  %1876 = vmatprep.subr.bf16.mxu0 0
  %1877 = vmatpush1.bf16.msra.mxu0 %v1408
  %1878 = vmatprep.subr.bf16.mxu0 0
  %1879 = vmatpush1.bf16.msra.mxu0 %v1409
  %1880 = vmatprep.subr.bf16.mxu0 0
  %1881 = vmatpush1.bf16.msra.mxu0 %v1410
  %1882 = vmatprep.subr.bf16.mxu0 0
  %1883 = vmatpush1.bf16.msra.mxu0 %v1411
  %1884 = vmatprep.mubr.bf16.mxu0 %v172
  %1885 = vmatmul.mubr.bf16.gmra.mrb[0].mxu0 %v171
  %v1886 = vpop.f32.mrb[0].mxu0
  %v1887 = vadd.f32 %v1847, %v1886
  %v1888 = vpop.f32.mrb[0].mxu0
  %v1889 = vpop.f32.mrb[0].mxu0
  %v1890 = vpop.f32.mrb[0].mxu0
  %1891 = vdwg.mxu0
  %1892 = vmatprep.subr.bf16.mxu0 0
  %1893 = vmatpush1.bf16.msra.mxu0 %v1412
  %1894 = vmatprep.subr.bf16.mxu0 0
  %1895 = vmatpush1.bf16.msra.mxu0 %v1413
  %1896 = vmatprep.subr.bf16.mxu0 0
  %1897 = vmatpush1.bf16.msra.mxu0 %v1414
  %1898 = vmatprep.subr.bf16.mxu0 0
  %1899 = vmatpush1.bf16.msra.mxu0 %v1415
  %1900 = vmatprep.subr.bf16.mxu0 0
  %1901 = vmatpush1.bf16.msra.mxu0 %v1416
  %1902 = vmatprep.subr.bf16.mxu0 0
  %1903 = vmatpush1.bf16.msra.mxu0 %v1417
  %1904 = vmatprep.subr.bf16.mxu0 0
  %1905 = vmatpush1.bf16.msra.mxu0 %v1418
  %1906 = vmatprep.subr.bf16.mxu0 0
  %1907 = vmatpush1.bf16.msra.mxu0 %v1419
  %1908 = vmatprep.subr.bf16.mxu0 0
  %1909 = vmatpush1.bf16.msra.mxu0 %v1420
  %1910 = vmatprep.subr.bf16.mxu0 0
  %1911 = vmatpush1.bf16.msra.mxu0 %v1421
  %1912 = vmatprep.subr.bf16.mxu0 0
  %1913 = vmatpush1.bf16.msra.mxu0 %v1422
  %1914 = vmatprep.subr.bf16.mxu0 0
  %1915 = vmatpush1.bf16.msra.mxu0 %v1423
  %1916 = vmatprep.subr.bf16.mxu0 0
  %1917 = vmatpush1.bf16.msra.mxu0 %v1424
  %1918 = vmatprep.subr.bf16.mxu0 0
  %1919 = vmatpush1.bf16.msra.mxu0 %v1425
  %1920 = vmatprep.subr.bf16.mxu0 0
  %1921 = vmatpush1.bf16.msra.mxu0 %v1426
  %1922 = vmatprep.subr.bf16.mxu0 0
  %1923 = vmatpush1.bf16.msra.mxu0 %v1427
  %1924 = vmatprep.mubr.bf16.mxu0 %v174
  %1925 = vmatmul.mubr.bf16.gmra.mrb[0].mxu0 %v173
  %v1926 = vpop.f32.mrb[0].mxu0
  %v1927 = vadd.f32 %v1887, %v1926
  %v1928 = vpop.f32.mrb[0].mxu0
  %v1929 = vpop.f32.mrb[0].mxu0
  %v1930 = vpop.f32.mrb[0].mxu0
  %1931 = vdwg.mxu0
  %1932 = vmatprep.subr.bf16.mxu0 0
  %1933 = vmatpush1.bf16.msra.mxu0 %v1428
  %1934 = vmatprep.subr.bf16.mxu0 0
  %1935 = vmatpush1.bf16.msra.mxu0 %v1429
  %1936 = vmatprep.subr.bf16.mxu0 0
  %1937 = vmatpush1.bf16.msra.mxu0 %v1430
  %1938 = vmatprep.subr.bf16.mxu0 0
  %1939 = vmatpush1.bf16.msra.mxu0 %v1431
  %1940 = vmatprep.subr.bf16.mxu0 0
  %1941 = vmatpush1.bf16.msra.mxu0 %v1432
  %1942 = vmatprep.subr.bf16.mxu0 0
  %1943 = vmatpush1.bf16.msra.mxu0 %v1433
  %1944 = vmatprep.subr.bf16.mxu0 0
  %1945 = vmatpush1.bf16.msra.mxu0 %v1434
  %1946 = vmatprep.subr.bf16.mxu0 0
  %1947 = vmatpush1.bf16.msra.mxu0 %v1435
  %1948 = vmatprep.subr.bf16.mxu0 0
  %1949 = vmatpush1.bf16.msra.mxu0 %v1436
  %1950 = vmatprep.subr.bf16.mxu0 0
  %1951 = vmatpush1.bf16.msra.mxu0 %v1437
  %1952 = vmatprep.subr.bf16.mxu0 0
  %1953 = vmatpush1.bf16.msra.mxu0 %v1438
  %1954 = vmatprep.subr.bf16.mxu0 0
  %1955 = vmatpush1.bf16.msra.mxu0 %v1439
  %1956 = vmatprep.subr.bf16.mxu0 0
  %1957 = vmatpush1.bf16.msra.mxu0 %v1440
  %1958 = vmatprep.subr.bf16.mxu0 0
  %1959 = vmatpush1.bf16.msra.mxu0 %v1441
  %1960 = vmatprep.subr.bf16.mxu0 0
  %1961 = vmatpush1.bf16.msra.mxu0 %v1442
  %1962 = vmatprep.subr.bf16.mxu0 0
  %1963 = vmatpush1.bf16.msra.mxu0 %v1443
  %1964 = vmatprep.mubr.bf16.mxu0 %v176
  %1965 = vmatmul.mubr.bf16.gmra.mrb[0].mxu0 %v175
  %v1966 = vpop.f32.mrb[0].mxu0
  %v1967 = vadd.f32 %v1927, %v1966
  %v1968 = vpop.f32.mrb[0].mxu0
  %v1969 = vpop.f32.mrb[0].mxu0
  %v1970 = vpop.f32.mrb[0].mxu0
  %1971 = vdwg.mxu0
  %1972 = vmatprep.subr.bf16.mxu0 0
  %1973 = vmatpush1.bf16.msra.mxu0 %v1444
  %1974 = vmatprep.subr.bf16.mxu0 0
  %1975 = vmatpush1.bf16.msra.mxu0 %v1445
  %1976 = vmatprep.subr.bf16.mxu0 0
  %1977 = vmatpush1.bf16.msra.mxu0 %v1446
  %1978 = vmatprep.subr.bf16.mxu0 0
  %1979 = vmatpush1.bf16.msra.mxu0 %v1447
  %1980 = vmatprep.subr.bf16.mxu0 0
  %1981 = vmatpush1.bf16.msra.mxu0 %v1448
  %1982 = vmatprep.subr.bf16.mxu0 0
  %1983 = vmatpush1.bf16.msra.mxu0 %v1449
  %1984 = vmatprep.subr.bf16.mxu0 0
  %1985 = vmatpush1.bf16.msra.mxu0 %v1450
  %1986 = vmatprep.subr.bf16.mxu0 0
  %1987 = vmatpush1.bf16.msra.mxu0 %v1451
  %1988 = vmatprep.subr.bf16.mxu0 0
  %1989 = vmatpush1.bf16.msra.mxu0 %v1452
  %1990 = vmatprep.subr.bf16.mxu0 0
  %1991 = vmatpush1.bf16.msra.mxu0 %v1453
  %1992 = vmatprep.subr.bf16.mxu0 0
  %1993 = vmatpush1.bf16.msra.mxu0 %v1454
  %1994 = vmatprep.subr.bf16.mxu0 0
  %1995 = vmatpush1.bf16.msra.mxu0 %v1455
  %1996 = vmatprep.subr.bf16.mxu0 0
  %1997 = vmatpush1.bf16.msra.mxu0 %v1456
  %1998 = vmatprep.subr.bf16.mxu0 0
  %1999 = vmatpush1.bf16.msra.mxu0 %v1457
  %2000 = vmatprep.subr.bf16.mxu0 0
  %2001 = vmatpush1.bf16.msra.mxu0 %v1458
  %2002 = vmatprep.subr.bf16.mxu0 0
  %2003 = vmatpush1.bf16.msra.mxu0 %v1459
  %2004 = vmatprep.mubr.bf16.mxu0 %v178
  %2005 = vmatmul.mubr.bf16.gmra.mrb[0].mxu0 %v177
  %v2006 = vpop.f32.mrb[0].mxu0
  %v2007 = vadd.f32 %v1967, %v2006
  %v2008 = vpop.f32.mrb[0].mxu0
  %v2009 = vpop.f32.mrb[0].mxu0
  %v2010 = vpop.f32.mrb[0].mxu0
  %2011 = vdwg.mxu0
  %2012 = vmatprep.subr.bf16.mxu0 0
  %2013 = vmatpush1.bf16.msra.mxu0 %v1460
  %2014 = vmatprep.subr.bf16.mxu0 0
  %2015 = vmatpush1.bf16.msra.mxu0 %v1461
  %2016 = vmatprep.subr.bf16.mxu0 0
  %2017 = vmatpush1.bf16.msra.mxu0 %v1462
  %2018 = vmatprep.subr.bf16.mxu0 0
  %2019 = vmatpush1.bf16.msra.mxu0 %v1463
  %2020 = vmatprep.subr.bf16.mxu0 0
  %2021 = vmatpush1.bf16.msra.mxu0 %v1464
  %2022 = vmatprep.subr.bf16.mxu0 0
  %2023 = vmatpush1.bf16.msra.mxu0 %v1465
  %2024 = vmatprep.subr.bf16.mxu0 0
  %2025 = vmatpush1.bf16.msra.mxu0 %v1466
  %2026 = vmatprep.subr.bf16.mxu0 0
  %2027 = vmatpush1.bf16.msra.mxu0 %v1467
  %2028 = vmatprep.subr.bf16.mxu0 0
  %2029 = vmatpush1.bf16.msra.mxu0 %v1468
  %2030 = vmatprep.subr.bf16.mxu0 0
  %2031 = vmatpush1.bf16.msra.mxu0 %v1469
  %2032 = vmatprep.subr.bf16.mxu0 0
  %2033 = vmatpush1.bf16.msra.mxu0 %v1470
  %2034 = vmatprep.subr.bf16.mxu0 0
  %2035 = vmatpush1.bf16.msra.mxu0 %v1471
  %2036 = vmatprep.subr.bf16.mxu0 0
  %2037 = vmatpush1.bf16.msra.mxu0 %v1472
  %2038 = vmatprep.subr.bf16.mxu0 0
  %2039 = vmatpush1.bf16.msra.mxu0 %v1473
  %2040 = vmatprep.subr.bf16.mxu0 0
  %2041 = vmatpush1.bf16.msra.mxu0 %v1474
  %2042 = vmatprep.subr.bf16.mxu0 0
  %2043 = vmatpush1.bf16.msra.mxu0 %v1475
  %2044 = vmatprep.mubr.bf16.mxu0 %v180
  %2045 = vmatmul.mubr.bf16.gmra.mrb[0].mxu0 %v179
  %v2046 = vpop.f32.mrb[0].mxu0
  %v2047 = vadd.f32 %v2007, %v2046
  %v2048 = vpop.f32.mrb[0].mxu0
  %v2049 = vpop.f32.mrb[0].mxu0
  %v2050 = vpop.f32.mrb[0].mxu0
  %2051 = vdwg.mxu0
  %2052 = vmatprep.subr.bf16.mxu0 0
  %2053 = vmatpush1.bf16.msra.mxu0 %v1476
  %2054 = vmatprep.subr.bf16.mxu0 0
  %2055 = vmatpush1.bf16.msra.mxu0 %v1477
  %2056 = vmatprep.subr.bf16.mxu0 0
  %2057 = vmatpush1.bf16.msra.mxu0 %v1478
  %2058 = vmatprep.subr.bf16.mxu0 0
  %2059 = vmatpush1.bf16.msra.mxu0 %v1479
  %2060 = vmatprep.subr.bf16.mxu0 0
  %2061 = vmatpush1.bf16.msra.mxu0 %v1480
  %2062 = vmatprep.subr.bf16.mxu0 0
  %2063 = vmatpush1.bf16.msra.mxu0 %v1481
  %2064 = vmatprep.subr.bf16.mxu0 0
  %2065 = vmatpush1.bf16.msra.mxu0 %v1482
  %2066 = vmatprep.subr.bf16.mxu0 0
  %2067 = vmatpush1.bf16.msra.mxu0 %v1483
  %2068 = vmatprep.subr.bf16.mxu0 0
  %2069 = vmatpush1.bf16.msra.mxu0 %v1484
  %2070 = vmatprep.subr.bf16.mxu0 0
  %2071 = vmatpush1.bf16.msra.mxu0 %v1485
  %2072 = vmatprep.subr.bf16.mxu0 0
  %2073 = vmatpush1.bf16.msra.mxu0 %v1486
  %2074 = vmatprep.subr.bf16.mxu0 0
  %2075 = vmatpush1.bf16.msra.mxu0 %v1487
  %2076 = vmatprep.subr.bf16.mxu0 0
  %2077 = vmatpush1.bf16.msra.mxu0 %v1488
  %2078 = vmatprep.subr.bf16.mxu0 0
  %2079 = vmatpush1.bf16.msra.mxu0 %v1489
  %2080 = vmatprep.subr.bf16.mxu0 0
  %2081 = vmatpush1.bf16.msra.mxu0 %v1490
  %2082 = vmatprep.subr.bf16.mxu0 0
  %2083 = vmatpush1.bf16.msra.mxu0 %v1491
  %2084 = vmatprep.mubr.bf16.mxu0 %v182
  %2085 = vmatmul.mubr.bf16.gmra.mrb[0].mxu0 %v181
  %v2086 = vpop.f32.mrb[0].mxu0
  %v2087 = vadd.f32 %v2047, %v2086
  %v2088 = vpop.f32.mrb[0].mxu0
  %v2089 = vpop.f32.mrb[0].mxu0
  %v2090 = vpop.f32.mrb[0].mxu0
  %2091 = vdwg.mxu0
  %2092 = vmatprep.subr.bf16.mxu0 0
  %2093 = vmatpush1.bf16.msra.mxu0 %v1492
  %2094 = vmatprep.subr.bf16.mxu0 0
  %2095 = vmatpush1.bf16.msra.mxu0 %v1493
  %2096 = vmatprep.subr.bf16.mxu0 0
  %2097 = vmatpush1.bf16.msra.mxu0 %v1494
  %2098 = vmatprep.subr.bf16.mxu0 0
  %2099 = vmatpush1.bf16.msra.mxu0 %v1495
  %2100 = vmatprep.subr.bf16.mxu0 0
  %2101 = vmatpush1.bf16.msra.mxu0 %v1496
  %2102 = vmatprep.subr.bf16.mxu0 0
  %2103 = vmatpush1.bf16.msra.mxu0 %v1497
  %2104 = vmatprep.subr.bf16.mxu0 0
  %2105 = vmatpush1.bf16.msra.mxu0 %v1498
  %2106 = vmatprep.subr.bf16.mxu0 0
  %2107 = vmatpush1.bf16.msra.mxu0 %v1499
  %2108 = vmatprep.subr.bf16.mxu0 0
  %2109 = vmatpush1.bf16.msra.mxu0 %v1500
  %2110 = vmatprep.subr.bf16.mxu0 0
  %2111 = vmatpush1.bf16.msra.mxu0 %v1501
  %2112 = vmatprep.subr.bf16.mxu0 0
  %2113 = vmatpush1.bf16.msra.mxu0 %v1502
  %2114 = vmatprep.subr.bf16.mxu0 0
  %2115 = vmatpush1.bf16.msra.mxu0 %v1503
  %2116 = vmatprep.subr.bf16.mxu0 0
  %2117 = vmatpush1.bf16.msra.mxu0 %v1504
  %2118 = vmatprep.subr.bf16.mxu0 0
  %2119 = vmatpush1.bf16.msra.mxu0 %v1505
  %2120 = vmatprep.subr.bf16.mxu0 0
  %2121 = vmatpush1.bf16.msra.mxu0 %v1506
  %2122 = vmatprep.subr.bf16.mxu0 0
  %2123 = vmatpush1.bf16.msra.mxu0 %v1507
  %2124 = vmatprep.mubr.bf16.mxu0 %v184
  %2125 = vmatmul.mubr.bf16.gmra.mrb[0].mxu0 %v183
  %v2126 = vpop.f32.mrb[0].mxu0
  %v2127 = vadd.f32 %v2087, %v2126
  %v2128 = vpop.f32.mrb[0].mxu0
  %v2129 = vpop.f32.mrb[0].mxu0
  %v2130 = vpop.f32.mrb[0].mxu0
  %2131 = vdwg.mxu0
  %2132 = vmatprep.subr.bf16.mxu0 0
  %2133 = vmatpush1.bf16.msra.mxu0 %v1508
  %2134 = vmatprep.subr.bf16.mxu0 0
  %2135 = vmatpush1.bf16.msra.mxu0 %v1509
  %2136 = vmatprep.subr.bf16.mxu0 0
  %2137 = vmatpush1.bf16.msra.mxu0 %v1510
  %2138 = vmatprep.subr.bf16.mxu0 0
  %2139 = vmatpush1.bf16.msra.mxu0 %v1511
  %2140 = vmatprep.subr.bf16.mxu0 0
  %2141 = vmatpush1.bf16.msra.mxu0 %v1512
  %2142 = vmatprep.subr.bf16.mxu0 0
  %2143 = vmatpush1.bf16.msra.mxu0 %v1513
  %2144 = vmatprep.subr.bf16.mxu0 0
  %2145 = vmatpush1.bf16.msra.mxu0 %v1514
  %2146 = vmatprep.subr.bf16.mxu0 0
  %2147 = vmatpush1.bf16.msra.mxu0 %v1515
  %2148 = vmatprep.subr.bf16.mxu0 0
  %2149 = vmatpush1.bf16.msra.mxu0 %v1516
  %2150 = vmatprep.subr.bf16.mxu0 0
  %2151 = vmatpush1.bf16.msra.mxu0 %v1517
  %2152 = vmatprep.subr.bf16.mxu0 0
  %2153 = vmatpush1.bf16.msra.mxu0 %v1518
  %2154 = vmatprep.subr.bf16.mxu0 0
  %2155 = vmatpush1.bf16.msra.mxu0 %v1519
  %2156 = vmatprep.subr.bf16.mxu0 0
  %2157 = vmatpush1.bf16.msra.mxu0 %v1520
  %2158 = vmatprep.subr.bf16.mxu0 0
  %2159 = vmatpush1.bf16.msra.mxu0 %v1521
  %2160 = vmatprep.subr.bf16.mxu0 0
  %2161 = vmatpush1.bf16.msra.mxu0 %v1522
  %2162 = vmatprep.subr.bf16.mxu0 0
  %2163 = vmatpush1.bf16.msra.mxu0 %v1523
  %2164 = vmatprep.mubr.bf16.mxu0 %v186
  %2165 = vmatmul.mubr.bf16.gmra.mrb[0].mxu0 %v185
  %v2166 = vpop.f32.mrb[0].mxu0
  %v2167 = vadd.f32 %v2127, %v2166
  %v2168 = vpop.f32.mrb[0].mxu0
  %v2169 = vpop.f32.mrb[0].mxu0
  %v2170 = vpop.f32.mrb[0].mxu0
  %2171 = vdwg.mxu0
  %2172 = vmatprep.subr.bf16.mxu0 0
  %2173 = vmatpush1.bf16.msra.mxu0 %v1524
  %2174 = vmatprep.subr.bf16.mxu0 0
  %2175 = vmatpush1.bf16.msra.mxu0 %v1525
  %2176 = vmatprep.subr.bf16.mxu0 0
  %2177 = vmatpush1.bf16.msra.mxu0 %v1526
  %2178 = vmatprep.subr.bf16.mxu0 0
  %2179 = vmatpush1.bf16.msra.mxu0 %v1527
  %2180 = vmatprep.subr.bf16.mxu0 0
  %2181 = vmatpush1.bf16.msra.mxu0 %v1528
  %2182 = vmatprep.subr.bf16.mxu0 0
  %2183 = vmatpush1.bf16.msra.mxu0 %v1529
  %2184 = vmatprep.subr.bf16.mxu0 0
  %2185 = vmatpush1.bf16.msra.mxu0 %v1530
  %2186 = vmatprep.subr.bf16.mxu0 0
  %2187 = vmatpush1.bf16.msra.mxu0 %v1531
  %2188 = vmatprep.subr.bf16.mxu0 0
  %2189 = vmatpush1.bf16.msra.mxu0 %v1532
  %2190 = vmatprep.subr.bf16.mxu0 0
  %2191 = vmatpush1.bf16.msra.mxu0 %v1533
  %2192 = vmatprep.subr.bf16.mxu0 0
  %2193 = vmatpush1.bf16.msra.mxu0 %v1534
  %2194 = vmatprep.subr.bf16.mxu0 0
  %2195 = vmatpush1.bf16.msra.mxu0 %v1535
  %2196 = vmatprep.subr.bf16.mxu0 0
  %2197 = vmatpush1.bf16.msra.mxu0 %v1536
  %2198 = vmatprep.subr.bf16.mxu0 0
  %2199 = vmatpush1.bf16.msra.mxu0 %v1537
  %2200 = vmatprep.subr.bf16.mxu0 0
  %2201 = vmatpush1.bf16.msra.mxu0 %v1538
  %2202 = vmatprep.subr.bf16.mxu0 0
  %2203 = vmatpush1.bf16.msra.mxu0 %v1539
  %2204 = vmatprep.mubr.bf16.mxu0 %v188
  %2205 = vmatmul.mubr.bf16.gmra.mrb[0].mxu0 %v187
  %v2206 = vpop.f32.mrb[0].mxu0
  %v2207 = vadd.f32 %v2167, %v2206
  %v2208 = vpop.f32.mrb[0].mxu0
  %v2209 = vpop.f32.mrb[0].mxu0
  %v2210 = vpop.f32.mrb[0].mxu0
  %2211 = vdwg.mxu0
  %v2212 = vmax.f32 %v2207, 0.0
  %v2213 = vpack.c.bf16 %v2212, %v2212
  %v2214 = vld [vmem:[%s3] sm:$0xf]
  %v2215 = vld [vmem:[%s3 + $0x4] sm:$0xf]
  %v2216 = vld [vmem:[%s3 + $0x8] sm:$0xf]
  %v2217 = vld [vmem:[%s3 + $0xc] sm:$0xf]
  %v2218 = vld [vmem:[%s3 + $0x10] sm:$0xf]
  %v2219 = vld [vmem:[%s3 + $0x14] sm:$0xf]
  %v2220 = vld [vmem:[%s3 + $0x18] sm:$0xf]
  %v2221 = vld [vmem:[%s3 + $0x1c] sm:$0xf]
  %v2222 = vld [vmem:[%s3 + $0x20] sm:$0xf]
  %v2223 = vld [vmem:[%s3 + $0x24] sm:$0xf]
  %v2224 = vld [vmem:[%s3 + $0x28] sm:$0xf]
  %v2225 = vld [vmem:[%s3 + $0x2c] sm:$0xf]
  %v2226 = vld [vmem:[%s3 + $0x30] sm:$0xf]
  %v2227 = vld [vmem:[%s3 + $0x34] sm:$0xf]
  %v2228 = vld [vmem:[%s3 + $0x38] sm:$0xf]
  %v2229 = vld [vmem:[%s3 + $0x3c] sm:$0xf]
  %v2230 = vld [vmem:[%s4] sm:$0x1]
  %v2232 = vlaneseq
  %v2233 = vshrl.u32 %v2232, 7
  %v2234 = vsub.s32 0, %v2233
  %v2235 = vrot.slane %v2230, %v2234
  %v2253 = vunpack.c.l.b16 %v2214
  %v2254 = vunpack.c.l.b16 %v2215
  %v2255 = vunpack.c.l.b16 %v2216
  %v2256 = vunpack.c.l.b16 %v2217
  %v2257 = vunpack.c.l.b16 %v2218
  %v2258 = vunpack.c.l.b16 %v2219
  %v2259 = vunpack.c.l.b16 %v2220
  %v2260 = vunpack.c.l.b16 %v2221
  %v2261 = vunpack.c.l.b16 %v2222
  %v2262 = vunpack.c.l.b16 %v2223
  %v2263 = vunpack.c.l.b16 %v2224
  %v2264 = vunpack.c.l.b16 %v2225
  %v2265 = vunpack.c.l.b16 %v2226
  %v2266 = vunpack.c.l.b16 %v2227
  %v2267 = vunpack.c.l.b16 %v2228
  %v2268 = vunpack.c.l.b16 %v2229
  %v2269 = vpack.c.b16 %v2254, %v2253
  %v2270 = vpack.c.b16 %v2256, %v2255
  %v2271 = vpack.c.b16 %v2258, %v2257
  %v2272 = vpack.c.b16 %v2260, %v2259
  %v2273 = vpack.c.b16 %v2262, %v2261
  %v2274 = vpack.c.b16 %v2264, %v2263
  %v2275 = vpack.c.b16 %v2266, %v2265
  %v2276 = vpack.c.b16 %v2268, %v2267
  %2285 = vmatprep.subr.bf16.mxu0 0
  %2286 = vmatpush1.bf16.msra.mxu0 %v2269
  %2287 = vmatprep.subr.bf16.mxu0 0
  %2288 = vmatpush1.bf16.msra.mxu0 %v2270
  %2289 = vmatprep.subr.bf16.mxu0 0
  %2290 = vmatpush1.bf16.msra.mxu0 %v2271
  %2291 = vmatprep.subr.bf16.mxu0 0
  %2292 = vmatpush1.bf16.msra.mxu0 %v2272
  %2293 = vmatprep.subr.bf16.mxu0 0
  %2294 = vmatpush1.bf16.msra.mxu0 %v2273
  %2295 = vmatprep.subr.bf16.mxu0 0
  %2296 = vmatpush1.bf16.msra.mxu0 %v2274
  %2297 = vmatprep.subr.bf16.mxu0 0
  %2298 = vmatpush1.bf16.msra.mxu0 %v2275
  %2299 = vmatprep.subr.bf16.mxu0 0
  %2300 = vmatpush1.bf16.msra.mxu0 %v2276
  %2301 = vmatprep.subr.bf16.mxu0 0
  %2302 = vmatpush1.bf16.msra.mxu0 0
  %2303 = vmatprep.subr.bf16.mxu0 0
  %2304 = vmatpush1.bf16.msra.mxu0 0
  %2305 = vmatprep.subr.bf16.mxu0 0
  %2306 = vmatpush1.bf16.msra.mxu0 0
  %2307 = vmatprep.subr.bf16.mxu0 0
  %2308 = vmatpush1.bf16.msra.mxu0 0
  %2309 = vmatprep.subr.bf16.mxu0 0
  %2310 = vmatpush1.bf16.msra.mxu0 0
  %2311 = vmatprep.subr.bf16.mxu0 0
  %2312 = vmatpush1.bf16.msra.mxu0 0
  %2313 = vmatprep.subr.bf16.mxu0 0
  %2314 = vmatpush1.bf16.msra.mxu0 0
  %2315 = vmatprep.subr.bf16.mxu0 0
  %2316 = vmatpush1.bf16.msra.mxu0 0
  %2317 = vmatprep.mubr.bf16.mxu0 0
  %2318 = vmatmul.mubr.bf16.gmra.mrb[0].mxu0 %v2213
  %v2319 = vpop.f32.mrb[0].mxu0
  %v2320 = vadd.f32 %v2235, %v2319
  %v2321 = vpop.f32.mrb[0].mxu0
  %v2322 = vpop.f32.mrb[0].mxu0
  %v2323 = vpop.f32.mrb[0].mxu0
  %2324 = vdwg.mxu0
  %v2325 = vmax.f32 %v2320, 0.0
  %v2326 = vpack.c.bf16 %v2325, %v2325
  %v2327 = vld [vmem:[%s5] sm:$0xff]
  %v2328 = vld [vmem:[%s5 + $0x8] sm:$0xff]
  %v2329 = vld [vmem:[%s5 + $0x10] sm:$0xff]
  %v2330 = vld [vmem:[%s5 + $0x18] sm:$0xff]
  %v2331 = vld [vmem:[%s5 + $0x20] sm:$0xff]
  %v2332 = vld [vmem:[%s5 + $0x28] sm:$0xff]
  %v2333 = vld [vmem:[%s5 + $0x60] sm:$0xff]
  %v2334 = vld [vmem:[%s5 + $0x68] sm:$0xff]
  %v2335 = vld [vmem:[%s5 + $0x70] sm:$0xff]
  %v2336 = vld [vmem:[%s5 + $0x78] sm:$0xff]
  %v2337 = vld [vmem:[%s5 + $0x80] sm:$0xff]
  %v2338 = vld [vmem:[%s5 + $0x88] sm:$0xff]
  %v2339 = vld [vmem:[%s5 + $0xc0] sm:$0xff]
  %v2340 = vld [vmem:[%s5 + $0xc8] sm:$0xff]
  %v2341 = vld [vmem:[%s5 + $0xd0] sm:$0xff]
  %v2342 = vld [vmem:[%s5 + $0xd8] sm:$0xff]
  %v2343 = vld [vmem:[%s5 + $0xe0] sm:$0xff]
  %v2344 = vld [vmem:[%s5 + $0xe8] sm:$0xff]
  %v2345 = vld [vmem:[%s5 + $0x120] sm:$0xff]
  %v2346 = vld [vmem:[%s5 + $0x128] sm:$0xff]
  %v2347 = vld [vmem:[%s5 + $0x130] sm:$0xff]
  %v2348 = vld [vmem:[%s5 + $0x138] sm:$0xff]
  %v2349 = vld [vmem:[%s5 + $0x140] sm:$0xff]
  %v2350 = vld [vmem:[%s5 + $0x148] sm:$0xff]
  %v2351 = vld [vmem:[%s5 + $0x180] sm:$0xff]
  %v2352 = vld [vmem:[%s5 + $0x188] sm:$0xff]
  %v2353 = vld [vmem:[%s5 + $0x190] sm:$0xff]
  %v2354 = vld [vmem:[%s5 + $0x198] sm:$0xff]
  %v2355 = vld [vmem:[%s5 + $0x1a0] sm:$0xff]
  %v2356 = vld [vmem:[%s5 + $0x1a8] sm:$0xff]
  %v2357 = vld [vmem:[%s5 + $0x1e0] sm:$0xff]
  %v2358 = vld [vmem:[%s5 + $0x1e8] sm:$0xff]
  %v2359 = vld [vmem:[%s5 + $0x1f0] sm:$0xff]
  %v2360 = vld [vmem:[%s5 + $0x1f8] sm:$0xff]
  %v2361 = vld [vmem:[%s5 + $0x200] sm:$0xff]
  %v2362 = vld [vmem:[%s5 + $0x208] sm:$0xff]
  %v2363 = vld [vmem:[%s5 + $0x240] sm:$0xff]
  %v2364 = vld [vmem:[%s5 + $0x248] sm:$0xff]
  %v2365 = vld [vmem:[%s5 + $0x250] sm:$0xff]
  %v2366 = vld [vmem:[%s5 + $0x258] sm:$0xff]
  %v2367 = vld [vmem:[%s5 + $0x260] sm:$0xff]
  %v2368 = vld [vmem:[%s5 + $0x268] sm:$0xff]
  %v2369 = vld [vmem:[%s5 + $0x2a0] sm:$0xff]
  %v2370 = vld [vmem:[%s5 + $0x2a8] sm:$0xff]
  %v2371 = vld [vmem:[%s5 + $0x2b0] sm:$0xff]
  %v2372 = vld [vmem:[%s5 + $0x2b8] sm:$0xff]
  %v2373 = vld [vmem:[%s5 + $0x2c0] sm:$0xff]
  %v2374 = vld [vmem:[%s5 + $0x2c8] sm:$0xff]
  %v2375 = vld [vmem:[%s5 + $0x300] sm:$0xff]
  %v2376 = vld [vmem:[%s5 + $0x308] sm:$0xff]
  %v2377 = vld [vmem:[%s5 + $0x310] sm:$0xff]
  %v2378 = vld [vmem:[%s5 + $0x318] sm:$0xff]
  %v2379 = vld [vmem:[%s5 + $0x320] sm:$0xff]
  %v2380 = vld [vmem:[%s5 + $0x328] sm:$0xff]
  %v2381 = vld [vmem:[%s5 + $0x360] sm:$0xff]
  %v2382 = vld [vmem:[%s5 + $0x368] sm:$0xff]
  %v2383 = vld [vmem:[%s5 + $0x370] sm:$0xff]
  %v2384 = vld [vmem:[%s5 + $0x378] sm:$0xff]
  %v2385 = vld [vmem:[%s5 + $0x380] sm:$0xff]
  %v2386 = vld [vmem:[%s5 + $0x388] sm:$0xff]
  %v2387 = vld [vmem:[%s5 + $0x3c0] sm:$0xff]
  %v2388 = vld [vmem:[%s5 + $0x3c8] sm:$0xff]
  %v2389 = vld [vmem:[%s5 + $0x3d0] sm:$0xff]
  %v2390 = vld [vmem:[%s5 + $0x3d8] sm:$0xff]
  %v2391 = vld [vmem:[%s5 + $0x3e0] sm:$0xff]
  %v2392 = vld [vmem:[%s5 + $0x3e8] sm:$0xff]
  %v2393 = vld [vmem:[%s5 + $0x420] sm:$0xff]
  %v2394 = vld [vmem:[%s5 + $0x428] sm:$0xff]
  %v2395 = vld [vmem:[%s5 + $0x430] sm:$0xff]
  %v2396 = vld [vmem:[%s5 + $0x438] sm:$0xff]
  %v2397 = vld [vmem:[%s5 + $0x440] sm:$0xff]
  %v2398 = vld [vmem:[%s5 + $0x448] sm:$0xff]
  %v2399 = vld [vmem:[%s5 + $0x480] sm:$0xff]
  %v2400 = vld [vmem:[%s5 + $0x488] sm:$0xff]
  %v2401 = vld [vmem:[%s5 + $0x490] sm:$0xff]
  %v2402 = vld [vmem:[%s5 + $0x498] sm:$0xff]
  %v2403 = vld [vmem:[%s5 + $0x4a0] sm:$0xff]
  %v2404 = vld [vmem:[%s5 + $0x4a8] sm:$0xff]
  %v2405 = vld [vmem:[%s5 + $0x4e0] sm:$0xff]
  %v2406 = vld [vmem:[%s5 + $0x4e8] sm:$0xff]
  %v2407 = vld [vmem:[%s5 + $0x4f0] sm:$0xff]
  %v2408 = vld [vmem:[%s5 + $0x4f8] sm:$0xff]
  %v2409 = vld [vmem:[%s5 + $0x500] sm:$0xff]
  %v2410 = vld [vmem:[%s5 + $0x508] sm:$0xff]
  %v2411 = vld [vmem:[%s5 + $0x540] sm:$0xff]
  %v2412 = vld [vmem:[%s5 + $0x548] sm:$0xff]
  %v2413 = vld [vmem:[%s5 + $0x550] sm:$0xff]
  %v2414 = vld [vmem:[%s5 + $0x558] sm:$0xff]
  %v2415 = vld [vmem:[%s5 + $0x560] sm:$0xff]
  %v2416 = vld [vmem:[%s5 + $0x568] sm:$0xff]
  %v2417 = vld [vmem:[%s5 + $0x5a0] sm:$0xff]
  %v2418 = vld [vmem:[%s5 + $0x5a8] sm:$0xff]
  %v2419 = vld [vmem:[%s5 + $0x5b0] sm:$0xff]
  %v2420 = vld [vmem:[%s5 + $0x5b8] sm:$0xff]
  %v2421 = vld [vmem:[%s5 + $0x5c0] sm:$0xff]
  %v2422 = vld [vmem:[%s5 + $0x5c8] sm:$0xff]
  %v2423 = vld [vmem:[%s6] sm:$0xff]
  %v2424 = vld [vmem:[%s6 + $0x8] sm:$0xf]
  %v2427 = vlaneseq
  %v2428 = vshrl.u32 %v2427, 7
  %v2429 = vsub.s32 0, %v2428
  %v2430 = vrot.slane %v2423, %v2429
  %v2431 = vlaneseq
  %v2432 = vshrl.u32 %v2431, 7
  %v2433 = vsub.s32 1, %v2432
  %v2434 = vrot.slane %v2423, %v2433
  %v2435 = vlaneseq
  %v2436 = vshrl.u32 %v2435, 7
  %v2437 = vsub.s32 2, %v2436
  %v2438 = vrot.slane %v2423, %v2437
  %v2439 = vlaneseq
  %v2440 = vshrl.u32 %v2439, 7
  %v2441 = vsub.s32 3, %v2440
  %v2442 = vrot.slane %v2423, %v2441
  %v2443 = vlaneseq
  %v2444 = vshrl.u32 %v2443, 7
  %v2445 = vsub.s32 4, %v2444
  %v2446 = vrot.slane %v2423, %v2445
  %v2447 = vlaneseq
  %v2448 = vshrl.u32 %v2447, 7
  %v2449 = vsub.s32 5, %v2448
  %v2450 = vrot.slane %v2423, %v2449
  %v2451 = vlaneseq
  %v2452 = vshrl.u32 %v2451, 7
  %v2453 = vsub.s32 6, %v2452
  %v2454 = vrot.slane %v2423, %v2453
  %v2455 = vlaneseq
  %v2456 = vshrl.u32 %v2455, 7
  %v2457 = vsub.s32 7, %v2456
  %v2458 = vrot.slane %v2423, %v2457
  %v2459 = vlaneseq
  %v2460 = vshrl.u32 %v2459, 7
  %v2461 = vsub.s32 0, %v2460
  %v2462 = vrot.slane %v2424, %v2461
  %v2463 = vlaneseq
  %v2464 = vshrl.u32 %v2463, 7
  %v2465 = vsub.s32 1, %v2464
  %v2466 = vrot.slane %v2424, %v2465
  %v2467 = vlaneseq
  %v2468 = vshrl.u32 %v2467, 7
  %v2469 = vsub.s32 2, %v2468
  %v2470 = vrot.slane %v2424, %v2469
  %v2471 = vlaneseq
  %v2472 = vshrl.u32 %v2471, 7
  %v2473 = vsub.s32 3, %v2472
  %v2474 = vrot.slane %v2424, %v2473
  %v2583 = vunpack.c.l.b16 %v2327
  %v2584 = vunpack.c.h.b16 %v2327
  %v2585 = vunpack.c.l.b16 %v2328
  %v2586 = vunpack.c.h.b16 %v2328
  %v2587 = vunpack.c.l.b16 %v2329
  %v2588 = vunpack.c.h.b16 %v2329
  %v2589 = vunpack.c.l.b16 %v2330
  %v2590 = vunpack.c.h.b16 %v2330
  %v2591 = vunpack.c.l.b16 %v2331
  %v2592 = vunpack.c.h.b16 %v2331
  %v2593 = vunpack.c.l.b16 %v2332
  %v2594 = vunpack.c.h.b16 %v2332
  %v2595 = vunpack.c.l.b16 %v2333
  %v2596 = vunpack.c.h.b16 %v2333
  %v2597 = vunpack.c.l.b16 %v2334
  %v2598 = vunpack.c.h.b16 %v2334
  %v2599 = vunpack.c.l.b16 %v2335
  %v2600 = vunpack.c.h.b16 %v2335
  %v2601 = vunpack.c.l.b16 %v2336
  %v2602 = vunpack.c.h.b16 %v2336
  %v2603 = vunpack.c.l.b16 %v2337
  %v2604 = vunpack.c.h.b16 %v2337
  %v2605 = vunpack.c.l.b16 %v2338
  %v2606 = vunpack.c.h.b16 %v2338
  %v2607 = vunpack.c.l.b16 %v2339
  %v2608 = vunpack.c.h.b16 %v2339
  %v2609 = vunpack.c.l.b16 %v2340
  %v2610 = vunpack.c.h.b16 %v2340
  %v2611 = vunpack.c.l.b16 %v2341
  %v2612 = vunpack.c.h.b16 %v2341
  %v2613 = vunpack.c.l.b16 %v2342
  %v2614 = vunpack.c.h.b16 %v2342
  %v2615 = vunpack.c.l.b16 %v2343
  %v2616 = vunpack.c.h.b16 %v2343
  %v2617 = vunpack.c.l.b16 %v2344
  %v2618 = vunpack.c.h.b16 %v2344
  %v2619 = vunpack.c.l.b16 %v2345
  %v2620 = vunpack.c.h.b16 %v2345
  %v2621 = vunpack.c.l.b16 %v2346
  %v2622 = vunpack.c.h.b16 %v2346
  %v2623 = vunpack.c.l.b16 %v2347
  %v2624 = vunpack.c.h.b16 %v2347
  %v2625 = vunpack.c.l.b16 %v2348
  %v2626 = vunpack.c.h.b16 %v2348
  %v2627 = vunpack.c.l.b16 %v2349
  %v2628 = vunpack.c.h.b16 %v2349
  %v2629 = vunpack.c.l.b16 %v2350
  %v2630 = vunpack.c.h.b16 %v2350
  %v2631 = vunpack.c.l.b16 %v2351
  %v2632 = vunpack.c.h.b16 %v2351
  %v2633 = vunpack.c.l.b16 %v2352
  %v2634 = vunpack.c.h.b16 %v2352
  %v2635 = vunpack.c.l.b16 %v2353
  %v2636 = vunpack.c.h.b16 %v2353
  %v2637 = vunpack.c.l.b16 %v2354
  %v2638 = vunpack.c.h.b16 %v2354
  %v2639 = vunpack.c.l.b16 %v2355
  %v2640 = vunpack.c.h.b16 %v2355
  %v2641 = vunpack.c.l.b16 %v2356
  %v2642 = vunpack.c.h.b16 %v2356
  %v2643 = vunpack.c.l.b16 %v2357
  %v2644 = vunpack.c.h.b16 %v2357
  %v2645 = vunpack.c.l.b16 %v2358
  %v2646 = vunpack.c.h.b16 %v2358
  %v2647 = vunpack.c.l.b16 %v2359
  %v2648 = vunpack.c.h.b16 %v2359
  %v2649 = vunpack.c.l.b16 %v2360
  %v2650 = vunpack.c.h.b16 %v2360
  %v2651 = vunpack.c.l.b16 %v2361
  %v2652 = vunpack.c.h.b16 %v2361
  %v2653 = vunpack.c.l.b16 %v2362
  %v2654 = vunpack.c.h.b16 %v2362
  %v2655 = vunpack.c.l.b16 %v2363
  %v2656 = vunpack.c.h.b16 %v2363
  %v2657 = vunpack.c.l.b16 %v2364
  %v2658 = vunpack.c.h.b16 %v2364
  %v2659 = vunpack.c.l.b16 %v2365
  %v2660 = vunpack.c.h.b16 %v2365
  %v2661 = vunpack.c.l.b16 %v2366
  %v2662 = vunpack.c.h.b16 %v2366
  %v2663 = vunpack.c.l.b16 %v2367
  %v2664 = vunpack.c.h.b16 %v2367
  %v2665 = vunpack.c.l.b16 %v2368
  %v2666 = vunpack.c.h.b16 %v2368
  %v2667 = vunpack.c.l.b16 %v2369
  %v2668 = vunpack.c.h.b16 %v2369
  %v2669 = vunpack.c.l.b16 %v2370
  %v2670 = vunpack.c.h.b16 %v2370
  %v2671 = vunpack.c.l.b16 %v2371
  %v2672 = vunpack.c.h.b16 %v2371
  %v2673 = vunpack.c.l.b16 %v2372
  %v2674 = vunpack.c.h.b16 %v2372
  %v2675 = vunpack.c.l.b16 %v2373
  %v2676 = vunpack.c.h.b16 %v2373
  %v2677 = vunpack.c.l.b16 %v2374
  %v2678 = vunpack.c.h.b16 %v2374
  %v2679 = vunpack.c.l.b16 %v2375
  %v2680 = vunpack.c.h.b16 %v2375
  %v2681 = vunpack.c.l.b16 %v2376
  %v2682 = vunpack.c.h.b16 %v2376
  %v2683 = vunpack.c.l.b16 %v2377
  %v2684 = vunpack.c.h.b16 %v2377
  %v2685 = vunpack.c.l.b16 %v2378
  %v2686 = vunpack.c.h.b16 %v2378
  %v2687 = vunpack.c.l.b16 %v2379
  %v2688 = vunpack.c.h.b16 %v2379
  %v2689 = vunpack.c.l.b16 %v2380
  %v2690 = vunpack.c.h.b16 %v2380
  %v2691 = vunpack.c.l.b16 %v2381
  %v2692 = vunpack.c.h.b16 %v2381
  %v2693 = vunpack.c.l.b16 %v2382
  %v2694 = vunpack.c.h.b16 %v2382
  %v2695 = vunpack.c.l.b16 %v2383
  %v2696 = vunpack.c.h.b16 %v2383
  %v2697 = vunpack.c.l.b16 %v2384
  %v2698 = vunpack.c.h.b16 %v2384
  %v2699 = vunpack.c.l.b16 %v2385
  %v2700 = vunpack.c.h.b16 %v2385
  %v2701 = vunpack.c.l.b16 %v2386
  %v2702 = vunpack.c.h.b16 %v2386
  %v2703 = vunpack.c.l.b16 %v2387
  %v2704 = vunpack.c.h.b16 %v2387
  %v2705 = vunpack.c.l.b16 %v2388
  %v2706 = vunpack.c.h.b16 %v2388
  %v2707 = vunpack.c.l.b16 %v2389
  %v2708 = vunpack.c.h.b16 %v2389
  %v2709 = vunpack.c.l.b16 %v2390
  %v2710 = vunpack.c.h.b16 %v2390
  %v2711 = vunpack.c.l.b16 %v2391
  %v2712 = vunpack.c.h.b16 %v2391
  %v2713 = vunpack.c.l.b16 %v2392
  %v2714 = vunpack.c.h.b16 %v2392
  %v2715 = vunpack.c.l.b16 %v2393
  %v2716 = vunpack.c.h.b16 %v2393
  %v2717 = vunpack.c.l.b16 %v2394
  %v2718 = vunpack.c.h.b16 %v2394
  %v2719 = vunpack.c.l.b16 %v2395
  %v2720 = vunpack.c.h.b16 %v2395
  %v2721 = vunpack.c.l.b16 %v2396
  %v2722 = vunpack.c.h.b16 %v2396
  %v2723 = vunpack.c.l.b16 %v2397
  %v2724 = vunpack.c.h.b16 %v2397
  %v2725 = vunpack.c.l.b16 %v2398
  %v2726 = vunpack.c.h.b16 %v2398
  %v2727 = vunpack.c.l.b16 %v2399
  %v2728 = vunpack.c.h.b16 %v2399
  %v2729 = vunpack.c.l.b16 %v2400
  %v2730 = vunpack.c.h.b16 %v2400
  %v2731 = vunpack.c.l.b16 %v2401
  %v2732 = vunpack.c.h.b16 %v2401
  %v2733 = vunpack.c.l.b16 %v2402
  %v2734 = vunpack.c.h.b16 %v2402
  %v2735 = vunpack.c.l.b16 %v2403
  %v2736 = vunpack.c.h.b16 %v2403
  %v2737 = vunpack.c.l.b16 %v2404
  %v2738 = vunpack.c.h.b16 %v2404
  %v2739 = vunpack.c.l.b16 %v2405
  %v2740 = vunpack.c.h.b16 %v2405
  %v2741 = vunpack.c.l.b16 %v2406
  %v2742 = vunpack.c.h.b16 %v2406
  %v2743 = vunpack.c.l.b16 %v2407
  %v2744 = vunpack.c.h.b16 %v2407
  %v2745 = vunpack.c.l.b16 %v2408
  %v2746 = vunpack.c.h.b16 %v2408
  %v2747 = vunpack.c.l.b16 %v2409
  %v2748 = vunpack.c.h.b16 %v2409
  %v2749 = vunpack.c.l.b16 %v2410
  %v2750 = vunpack.c.h.b16 %v2410
  %v2751 = vunpack.c.l.b16 %v2411
  %v2752 = vunpack.c.h.b16 %v2411
  %v2753 = vunpack.c.l.b16 %v2412
  %v2754 = vunpack.c.h.b16 %v2412
  %v2755 = vunpack.c.l.b16 %v2413
  %v2756 = vunpack.c.h.b16 %v2413
  %v2757 = vunpack.c.l.b16 %v2414
  %v2758 = vunpack.c.h.b16 %v2414
  %v2759 = vunpack.c.l.b16 %v2415
  %v2760 = vunpack.c.h.b16 %v2415
  %v2761 = vunpack.c.l.b16 %v2416
  %v2762 = vunpack.c.h.b16 %v2416
  %v2763 = vunpack.c.l.b16 %v2417
  %v2764 = vunpack.c.h.b16 %v2417
  %v2765 = vunpack.c.l.b16 %v2418
  %v2766 = vunpack.c.h.b16 %v2418
  %v2767 = vunpack.c.l.b16 %v2419
  %v2768 = vunpack.c.h.b16 %v2419
  %v2769 = vunpack.c.l.b16 %v2420
  %v2770 = vunpack.c.h.b16 %v2420
  %v2771 = vunpack.c.l.b16 %v2421
  %v2772 = vunpack.c.h.b16 %v2421
  %v2773 = vunpack.c.l.b16 %v2422
  %v2774 = vunpack.c.h.b16 %v2422
  %v2775 = vpack.c.b16 %v2595, %v2583
  %v2776 = vpack.c.b16 %v2596, %v2584
  %v2777 = vpack.c.b16 %v2597, %v2585
  %v2778 = vpack.c.b16 %v2598, %v2586
  %v2779 = vpack.c.b16 %v2599, %v2587
  %v2780 = vpack.c.b16 %v2600, %v2588
  %v2781 = vpack.c.b16 %v2601, %v2589
  %v2782 = vpack.c.b16 %v2602, %v2590
  %v2783 = vpack.c.b16 %v2603, %v2591
  %v2784 = vpack.c.b16 %v2604, %v2592
  %v2785 = vpack.c.b16 %v2605, %v2593
  %v2786 = vpack.c.b16 %v2606, %v2594
  %v2787 = vpack.c.b16 %v2619, %v2607
  %v2788 = vpack.c.b16 %v2620, %v2608
  %v2789 = vpack.c.b16 %v2621, %v2609
  %v2790 = vpack.c.b16 %v2622, %v2610
  %v2791 = vpack.c.b16 %v2623, %v2611
  %v2792 = vpack.c.b16 %v2624, %v2612
  %v2793 = vpack.c.b16 %v2625, %v2613
  %v2794 = vpack.c.b16 %v2626, %v2614
  %v2795 = vpack.c.b16 %v2627, %v2615
  %v2796 = vpack.c.b16 %v2628, %v2616
  %v2797 = vpack.c.b16 %v2629, %v2617
  %v2798 = vpack.c.b16 %v2630, %v2618
  %v2799 = vpack.c.b16 %v2643, %v2631
  %v2800 = vpack.c.b16 %v2644, %v2632
  %v2801 = vpack.c.b16 %v2645, %v2633
  %v2802 = vpack.c.b16 %v2646, %v2634
  %v2803 = vpack.c.b16 %v2647, %v2635
  %v2804 = vpack.c.b16 %v2648, %v2636
  %v2805 = vpack.c.b16 %v2649, %v2637
  %v2806 = vpack.c.b16 %v2650, %v2638
  %v2807 = vpack.c.b16 %v2651, %v2639
  %v2808 = vpack.c.b16 %v2652, %v2640
  %v2809 = vpack.c.b16 %v2653, %v2641
  %v2810 = vpack.c.b16 %v2654, %v2642
  %v2811 = vpack.c.b16 %v2667, %v2655
  %v2812 = vpack.c.b16 %v2668, %v2656
  %v2813 = vpack.c.b16 %v2669, %v2657
  %v2814 = vpack.c.b16 %v2670, %v2658
  %v2815 = vpack.c.b16 %v2671, %v2659
  %v2816 = vpack.c.b16 %v2672, %v2660
  %v2817 = vpack.c.b16 %v2673, %v2661
  %v2818 = vpack.c.b16 %v2674, %v2662
  %v2819 = vpack.c.b16 %v2675, %v2663
  %v2820 = vpack.c.b16 %v2676, %v2664
  %v2821 = vpack.c.b16 %v2677, %v2665
  %v2822 = vpack.c.b16 %v2678, %v2666
  %v2823 = vpack.c.b16 %v2691, %v2679
  %v2824 = vpack.c.b16 %v2692, %v2680
  %v2825 = vpack.c.b16 %v2693, %v2681
  %v2826 = vpack.c.b16 %v2694, %v2682
  %v2827 = vpack.c.b16 %v2695, %v2683
  %v2828 = vpack.c.b16 %v2696, %v2684
  %v2829 = vpack.c.b16 %v2697, %v2685
  %v2830 = vpack.c.b16 %v2698, %v2686
  %v2831 = vpack.c.b16 %v2699, %v2687
  %v2832 = vpack.c.b16 %v2700, %v2688
  %v2833 = vpack.c.b16 %v2701, %v2689
  %v2834 = vpack.c.b16 %v2702, %v2690
  %v2835 = vpack.c.b16 %v2715, %v2703
  %v2836 = vpack.c.b16 %v2716, %v2704
  %v2837 = vpack.c.b16 %v2717, %v2705
  %v2838 = vpack.c.b16 %v2718, %v2706
  %v2839 = vpack.c.b16 %v2719, %v2707
  %v2840 = vpack.c.b16 %v2720, %v2708
  %v2841 = vpack.c.b16 %v2721, %v2709
  %v2842 = vpack.c.b16 %v2722, %v2710
  %v2843 = vpack.c.b16 %v2723, %v2711
  %v2844 = vpack.c.b16 %v2724, %v2712
  %v2845 = vpack.c.b16 %v2725, %v2713
  %v2846 = vpack.c.b16 %v2726, %v2714
  %v2847 = vpack.c.b16 %v2739, %v2727
  %v2848 = vpack.c.b16 %v2740, %v2728
  %v2849 = vpack.c.b16 %v2741, %v2729
  %v2850 = vpack.c.b16 %v2742, %v2730
  %v2851 = vpack.c.b16 %v2743, %v2731
  %v2852 = vpack.c.b16 %v2744, %v2732
  %v2853 = vpack.c.b16 %v2745, %v2733
  %v2854 = vpack.c.b16 %v2746, %v2734
  %v2855 = vpack.c.b16 %v2747, %v2735
  %v2856 = vpack.c.b16 %v2748, %v2736
  %v2857 = vpack.c.b16 %v2749, %v2737
  %v2858 = vpack.c.b16 %v2750, %v2738
  %v2859 = vpack.c.b16 %v2763, %v2751
  %v2860 = vpack.c.b16 %v2764, %v2752
  %v2861 = vpack.c.b16 %v2765, %v2753
  %v2862 = vpack.c.b16 %v2766, %v2754
  %v2863 = vpack.c.b16 %v2767, %v2755
  %v2864 = vpack.c.b16 %v2768, %v2756
  %v2865 = vpack.c.b16 %v2769, %v2757
  %v2866 = vpack.c.b16 %v2770, %v2758
  %v2867 = vpack.c.b16 %v2771, %v2759
  %v2868 = vpack.c.b16 %v2772, %v2760
  %v2869 = vpack.c.b16 %v2773, %v2761
  %v2870 = vpack.c.b16 %v2774, %v2762
  %2967 = vmatprep.subr.bf16.mxu0 %v2776
  %2968 = vmatpush1.bf16.msra.mxu0 %v2775
  %2969 = vmatprep.subr.bf16.mxu0 %v2788
  %2970 = vmatpush1.bf16.msra.mxu0 %v2787
  %2971 = vmatprep.subr.bf16.mxu0 %v2800
  %2972 = vmatpush1.bf16.msra.mxu0 %v2799
  %2973 = vmatprep.subr.bf16.mxu0 %v2812
  %2974 = vmatpush1.bf16.msra.mxu0 %v2811
  %2975 = vmatprep.subr.bf16.mxu0 %v2824
  %2976 = vmatpush1.bf16.msra.mxu0 %v2823
  %2977 = vmatprep.subr.bf16.mxu0 %v2836
  %2978 = vmatpush1.bf16.msra.mxu0 %v2835
  %2979 = vmatprep.subr.bf16.mxu0 %v2848
  %2980 = vmatpush1.bf16.msra.mxu0 %v2847
  %2981 = vmatprep.subr.bf16.mxu0 %v2860
  %2982 = vmatpush1.bf16.msra.mxu0 %v2859
  %2983 = vmatprep.subr.bf16.mxu0 0
  %2984 = vmatpush1.bf16.msra.mxu0 0
  %2985 = vmatprep.subr.bf16.mxu0 0
  %2986 = vmatpush1.bf16.msra.mxu0 0
  %2987 = vmatprep.subr.bf16.mxu0 0
  %2988 = vmatpush1.bf16.msra.mxu0 0
  %2989 = vmatprep.subr.bf16.mxu0 0
  %2990 = vmatpush1.bf16.msra.mxu0 0
  %2991 = vmatprep.subr.bf16.mxu0 0
  %2992 = vmatpush1.bf16.msra.mxu0 0
  %2993 = vmatprep.subr.bf16.mxu0 0
  %2994 = vmatpush1.bf16.msra.mxu0 0
  %2995 = vmatprep.subr.bf16.mxu0 0
  %2996 = vmatpush1.bf16.msra.mxu0 0
  %2997 = vmatprep.subr.bf16.mxu0 0
  %2998 = vmatpush1.bf16.msra.mxu0 0
  %2999 = vmatprep.mubr.bf16.mxu0 0
  %3000 = vmatmul.mubr.bf16.gmra.mrb[0].mxu0 %v2326
  %v3001 = vpop.f32.mrb[0].mxu0
  %v3002 = vadd.f32 %v2430, %v3001
  %v3003 = vpop.f32.mrb[0].mxu0
  %v3004 = vadd.f32 %v2434, %v3003
  %v3005 = vpop.f32.mrb[0].mxu0
  %v3006 = vpop.f32.mrb[0].mxu0
  %3007 = vdwg.mxu0
  %3008 = vmatprep.subr.bf16.mxu0 %v2778
  %3009 = vmatpush1.bf16.msra.mxu0 %v2777
  %3010 = vmatprep.subr.bf16.mxu0 %v2790
  %3011 = vmatpush1.bf16.msra.mxu0 %v2789
  %3012 = vmatprep.subr.bf16.mxu0 %v2802
  %3013 = vmatpush1.bf16.msra.mxu0 %v2801
  %3014 = vmatprep.subr.bf16.mxu0 %v2814
  %3015 = vmatpush1.bf16.msra.mxu0 %v2813
  %3016 = vmatprep.subr.bf16.mxu0 %v2826
  %3017 = vmatpush1.bf16.msra.mxu0 %v2825
  %3018 = vmatprep.subr.bf16.mxu0 %v2838
  %3019 = vmatpush1.bf16.msra.mxu0 %v2837
  %3020 = vmatprep.subr.bf16.mxu0 %v2850
  %3021 = vmatpush1.bf16.msra.mxu0 %v2849
  %3022 = vmatprep.subr.bf16.mxu0 %v2862
  %3023 = vmatpush1.bf16.msra.mxu0 %v2861
  %3024 = vmatprep.subr.bf16.mxu0 0
  %3025 = vmatpush1.bf16.msra.mxu0 0
  %3026 = vmatprep.subr.bf16.mxu0 0
  %3027 = vmatpush1.bf16.msra.mxu0 0
  %3028 = vmatprep.subr.bf16.mxu0 0
  %3029 = vmatpush1.bf16.msra.mxu0 0
  %3030 = vmatprep.subr.bf16.mxu0 0
  %3031 = vmatpush1.bf16.msra.mxu0 0
  %3032 = vmatprep.subr.bf16.mxu0 0
  %3033 = vmatpush1.bf16.msra.mxu0 0
  %3034 = vmatprep.subr.bf16.mxu0 0
  %3035 = vmatpush1.bf16.msra.mxu0 0
  %3036 = vmatprep.subr.bf16.mxu0 0
  %3037 = vmatpush1.bf16.msra.mxu0 0
  %3038 = vmatprep.subr.bf16.mxu0 0
  %3039 = vmatpush1.bf16.msra.mxu0 0
  %3040 = vmatprep.mubr.bf16.mxu0 0
  %3041 = vmatmul.mubr.bf16.gmra.mrb[0].mxu0 %v2326
  %v3042 = vpop.f32.mrb[0].mxu0
  %v3043 = vadd.f32 %v2438, %v3042
  %v3044 = vpop.f32.mrb[0].mxu0
  %v3045 = vadd.f32 %v2442, %v3044
  %v3046 = vpop.f32.mrb[0].mxu0
  %v3047 = vpop.f32.mrb[0].mxu0
  %3048 = vdwg.mxu0
  %3049 = vmatprep.subr.bf16.mxu0 %v2780
  %3050 = vmatpush1.bf16.msra.mxu0 %v2779
  %3051 = vmatprep.subr.bf16.mxu0 %v2792
  %3052 = vmatpush1.bf16.msra.mxu0 %v2791
  %3053 = vmatprep.subr.bf16.mxu0 %v2804
  %3054 = vmatpush1.bf16.msra.mxu0 %v2803
  %3055 = vmatprep.subr.bf16.mxu0 %v2816
  %3056 = vmatpush1.bf16.msra.mxu0 %v2815
  %3057 = vmatprep.subr.bf16.mxu0 %v2828
  %3058 = vmatpush1.bf16.msra.mxu0 %v2827
  %3059 = vmatprep.subr.bf16.mxu0 %v2840
  %3060 = vmatpush1.bf16.msra.mxu0 %v2839
  %3061 = vmatprep.subr.bf16.mxu0 %v2852
  %3062 = vmatpush1.bf16.msra.mxu0 %v2851
  %3063 = vmatprep.subr.bf16.mxu0 %v2864
  %3064 = vmatpush1.bf16.msra.mxu0 %v2863
  %3065 = vmatprep.subr.bf16.mxu0 0
  %3066 = vmatpush1.bf16.msra.mxu0 0
  %3067 = vmatprep.subr.bf16.mxu0 0
  %3068 = vmatpush1.bf16.msra.mxu0 0
  %3069 = vmatprep.subr.bf16.mxu0 0
  %3070 = vmatpush1.bf16.msra.mxu0 0
  %3071 = vmatprep.subr.bf16.mxu0 0
  %3072 = vmatpush1.bf16.msra.mxu0 0
  %3073 = vmatprep.subr.bf16.mxu0 0
  %3074 = vmatpush1.bf16.msra.mxu0 0
  %3075 = vmatprep.subr.bf16.mxu0 0
  %3076 = vmatpush1.bf16.msra.mxu0 0
  %3077 = vmatprep.subr.bf16.mxu0 0
  %3078 = vmatpush1.bf16.msra.mxu0 0
  %3079 = vmatprep.subr.bf16.mxu0 0
  %3080 = vmatpush1.bf16.msra.mxu0 0
  %3081 = vmatprep.mubr.bf16.mxu0 0
  %3082 = vmatmul.mubr.bf16.gmra.mrb[0].mxu0 %v2326
  %v3083 = vpop.f32.mrb[0].mxu0
  %v3084 = vadd.f32 %v2446, %v3083
  %v3085 = vpop.f32.mrb[0].mxu0
  %v3086 = vadd.f32 %v2450, %v3085
  %v3087 = vpop.f32.mrb[0].mxu0
  %v3088 = vpop.f32.mrb[0].mxu0
  %3089 = vdwg.mxu0
  %3090 = vmatprep.subr.bf16.mxu0 %v2782
  %3091 = vmatpush1.bf16.msra.mxu0 %v2781
  %3092 = vmatprep.subr.bf16.mxu0 %v2794
  %3093 = vmatpush1.bf16.msra.mxu0 %v2793
  %3094 = vmatprep.subr.bf16.mxu0 %v2806
  %3095 = vmatpush1.bf16.msra.mxu0 %v2805
  %3096 = vmatprep.subr.bf16.mxu0 %v2818
  %3097 = vmatpush1.bf16.msra.mxu0 %v2817
  %3098 = vmatprep.subr.bf16.mxu0 %v2830
  %3099 = vmatpush1.bf16.msra.mxu0 %v2829
  %3100 = vmatprep.subr.bf16.mxu0 %v2842
  %3101 = vmatpush1.bf16.msra.mxu0 %v2841
  %3102 = vmatprep.subr.bf16.mxu0 %v2854
  %3103 = vmatpush1.bf16.msra.mxu0 %v2853
  %3104 = vmatprep.subr.bf16.mxu0 %v2866
  %3105 = vmatpush1.bf16.msra.mxu0 %v2865
  %3106 = vmatprep.subr.bf16.mxu0 0
  %3107 = vmatpush1.bf16.msra.mxu0 0
  %3108 = vmatprep.subr.bf16.mxu0 0
  %3109 = vmatpush1.bf16.msra.mxu0 0
  %3110 = vmatprep.subr.bf16.mxu0 0
  %3111 = vmatpush1.bf16.msra.mxu0 0
  %3112 = vmatprep.subr.bf16.mxu0 0
  %3113 = vmatpush1.bf16.msra.mxu0 0
  %3114 = vmatprep.subr.bf16.mxu0 0
  %3115 = vmatpush1.bf16.msra.mxu0 0
  %3116 = vmatprep.subr.bf16.mxu0 0
  %3117 = vmatpush1.bf16.msra.mxu0 0
  %3118 = vmatprep.subr.bf16.mxu0 0
  %3119 = vmatpush1.bf16.msra.mxu0 0
  %3120 = vmatprep.subr.bf16.mxu0 0
  %3121 = vmatpush1.bf16.msra.mxu0 0
  %3122 = vmatprep.mubr.bf16.mxu0 0
  %3123 = vmatmul.mubr.bf16.gmra.mrb[0].mxu0 %v2326
  %v3124 = vpop.f32.mrb[0].mxu0
  %v3125 = vadd.f32 %v2454, %v3124
  %v3126 = vpop.f32.mrb[0].mxu0
  %v3127 = vadd.f32 %v2458, %v3126
  %v3128 = vpop.f32.mrb[0].mxu0
  %v3129 = vpop.f32.mrb[0].mxu0
  %3130 = vdwg.mxu0
  %3131 = vmatprep.subr.bf16.mxu0 %v2784
  %3132 = vmatpush1.bf16.msra.mxu0 %v2783
  %3133 = vmatprep.subr.bf16.mxu0 %v2796
  %3134 = vmatpush1.bf16.msra.mxu0 %v2795
  %3135 = vmatprep.subr.bf16.mxu0 %v2808
  %3136 = vmatpush1.bf16.msra.mxu0 %v2807
  %3137 = vmatprep.subr.bf16.mxu0 %v2820
  %3138 = vmatpush1.bf16.msra.mxu0 %v2819
  %3139 = vmatprep.subr.bf16.mxu0 %v2832
  %3140 = vmatpush1.bf16.msra.mxu0 %v2831
  %3141 = vmatprep.subr.bf16.mxu0 %v2844
  %3142 = vmatpush1.bf16.msra.mxu0 %v2843
  %3143 = vmatprep.subr.bf16.mxu0 %v2856
  %3144 = vmatpush1.bf16.msra.mxu0 %v2855
  %3145 = vmatprep.subr.bf16.mxu0 %v2868
  %3146 = vmatpush1.bf16.msra.mxu0 %v2867
  %3147 = vmatprep.subr.bf16.mxu0 0
  %3148 = vmatpush1.bf16.msra.mxu0 0
  %3149 = vmatprep.subr.bf16.mxu0 0
  %3150 = vmatpush1.bf16.msra.mxu0 0
  %3151 = vmatprep.subr.bf16.mxu0 0
  %3152 = vmatpush1.bf16.msra.mxu0 0
  %3153 = vmatprep.subr.bf16.mxu0 0
  %3154 = vmatpush1.bf16.msra.mxu0 0
  %3155 = vmatprep.subr.bf16.mxu0 0
  %3156 = vmatpush1.bf16.msra.mxu0 0
  %3157 = vmatprep.subr.bf16.mxu0 0
  %3158 = vmatpush1.bf16.msra.mxu0 0
  %3159 = vmatprep.subr.bf16.mxu0 0
  %3160 = vmatpush1.bf16.msra.mxu0 0
  %3161 = vmatprep.subr.bf16.mxu0 0
  %3162 = vmatpush1.bf16.msra.mxu0 0
  %3163 = vmatprep.mubr.bf16.mxu0 0
  %3164 = vmatmul.mubr.bf16.gmra.mrb[0].mxu0 %v2326
  %v3165 = vpop.f32.mrb[0].mxu0
  %v3166 = vadd.f32 %v2462, %v3165
  %v3167 = vpop.f32.mrb[0].mxu0
  %v3168 = vadd.f32 %v2466, %v3167
  %v3169 = vpop.f32.mrb[0].mxu0
  %v3170 = vpop.f32.mrb[0].mxu0
  %3171 = vdwg.mxu0
  %3172 = vmatprep.subr.bf16.mxu0 %v2786
  %3173 = vmatpush1.bf16.msra.mxu0 %v2785
  %3174 = vmatprep.subr.bf16.mxu0 %v2798
  %3175 = vmatpush1.bf16.msra.mxu0 %v2797
  %3176 = vmatprep.subr.bf16.mxu0 %v2810
  %3177 = vmatpush1.bf16.msra.mxu0 %v2809
  %3178 = vmatprep.subr.bf16.mxu0 %v2822
  %3179 = vmatpush1.bf16.msra.mxu0 %v2821
  %3180 = vmatprep.subr.bf16.mxu0 %v2834
  %3181 = vmatpush1.bf16.msra.mxu0 %v2833
  %3182 = vmatprep.subr.bf16.mxu0 %v2846
  %3183 = vmatpush1.bf16.msra.mxu0 %v2845
  %3184 = vmatprep.subr.bf16.mxu0 %v2858
  %3185 = vmatpush1.bf16.msra.mxu0 %v2857
  %3186 = vmatprep.subr.bf16.mxu0 %v2870
  %3187 = vmatpush1.bf16.msra.mxu0 %v2869
  %3188 = vmatprep.subr.bf16.mxu0 0
  %3189 = vmatpush1.bf16.msra.mxu0 0
  %3190 = vmatprep.subr.bf16.mxu0 0
  %3191 = vmatpush1.bf16.msra.mxu0 0
  %3192 = vmatprep.subr.bf16.mxu0 0
  %3193 = vmatpush1.bf16.msra.mxu0 0
  %3194 = vmatprep.subr.bf16.mxu0 0
  %3195 = vmatpush1.bf16.msra.mxu0 0
  %3196 = vmatprep.subr.bf16.mxu0 0
  %3197 = vmatpush1.bf16.msra.mxu0 0
  %3198 = vmatprep.subr.bf16.mxu0 0
  %3199 = vmatpush1.bf16.msra.mxu0 0
  %3200 = vmatprep.subr.bf16.mxu0 0
  %3201 = vmatpush1.bf16.msra.mxu0 0
  %3202 = vmatprep.subr.bf16.mxu0 0
  %3203 = vmatpush1.bf16.msra.mxu0 0
  %3204 = vmatprep.mubr.bf16.mxu0 0
  %3205 = vmatmul.mubr.bf16.gmra.mrb[0].mxu0 %v2326
  %v3206 = vpop.f32.mrb[0].mxu0
  %v3207 = vadd.f32 %v2470, %v3206
  %v3208 = vpop.f32.mrb[0].mxu0
  %v3209 = vadd.f32 %v2474, %v3208
  %v3210 = vpop.f32.mrb[0].mxu0
  %v3211 = vpop.f32.mrb[0].mxu0
  %3212 = vdwg.mxu0
  %v3213 = vtanh.pop %v3002
  %v3214 = vtanh.pop %v3004
  %v3215 = vtanh.pop %v3043
  %v3216 = vtanh.pop %v3045
  %v3217 = vtanh.pop %v3084
  %v3218 = vtanh.pop %v3086
  %v3219 = vtanh.pop %v3125
  %v3220 = vtanh.pop %v3127
  %v3221 = vtanh.pop %v3166
  %v3222 = vtanh.pop %v3168
  %v3223 = vtanh.pop %v3207
  %v3224 = vtanh.pop %v3209
  %v3237 = vcombine.low %v3213, %v3214
  %v3238 = vcombine.low %v3215, %v3216
  %v3240 = vunpack.c.l.s4 1983009808
  %v3241 = vunpack.c.0.s8 %v3240
  %v3242 = vlaneseq
  %v3243 = vshrl.u32 %v3242, 7
  %v3244 = vsub.s32 %v3241, %v3243
  %v3245 = vrot.slane %v3237, %v3244
  %v3247 = vunpack.c.l.s4 1983009808
  %v3248 = vunpack.c.0.s8 %v3247
  %v3249 = vlaneseq
  %v3250 = vshrl.u32 %v3249, 7
  %v3251 = vsub.s32 %v3248, %v3250
  %v3252 = vrot.slane %v3238, %v3251
  %v3253 = vcombine.low %v3245, %v3252
  %v3254 = vcombine.low %v3217, %v3218
  %v3255 = vcombine.low %v3219, %v3220
  %v3257 = vunpack.c.l.s4 1983009808
  %v3258 = vunpack.c.0.s8 %v3257
  %v3259 = vlaneseq
  %v3260 = vshrl.u32 %v3259, 7
  %v3261 = vsub.s32 %v3258, %v3260
  %v3262 = vrot.slane %v3254, %v3261
  %v3264 = vunpack.c.l.s4 1983009808
  %v3265 = vunpack.c.0.s8 %v3264
  %v3266 = vlaneseq
  %v3267 = vshrl.u32 %v3266, 7
  %v3268 = vsub.s32 %v3265, %v3267
  %v3269 = vrot.slane %v3255, %v3268
  %v3270 = vcombine.low %v3262, %v3269
  %v3271 = vcombine.low %v3221, %v3222
  %v3272 = vcombine.low %v3223, %v3224
  %v3274 = vunpack.c.l.s4 1983009808
  %v3275 = vunpack.c.0.s8 %v3274
  %v3276 = vlaneseq
  %v3277 = vshrl.u32 %v3276, 7
  %v3278 = vsub.s32 %v3275, %v3277
  %v3279 = vrot.slane %v3271, %v3278
  %v3281 = vunpack.c.l.s4 1983009808
  %v3282 = vunpack.c.0.s8 %v3281
  %v3283 = vlaneseq
  %v3284 = vshrl.u32 %v3283, 7
  %v3285 = vsub.s32 %v3282, %v3284
  %v3286 = vrot.slane %v3272, %v3285
  %v3287 = vcombine.low %v3279, %v3286
  %3291 = vst [vmem:[%s7] sm:$0xff] %v3253
  %3292 = vst [vmem:[%s7 + $0x8] sm:$0xff] %v3270
  %3293 = vst [vmem:[%s7 + $0x10] sm:$0xff] %v3287
  %v3294 = vld [vmem:[%s5 + $0x30] sm:$0xff]
  %v3295 = vld [vmem:[%s5 + $0x38] sm:$0xff]
  %v3296 = vld [vmem:[%s5 + $0x40] sm:$0xff]
  %v3297 = vld [vmem:[%s5 + $0x48] sm:$0xff]
  %v3298 = vld [vmem:[%s5 + $0x50] sm:$0xff]
  %v3299 = vld [vmem:[%s5 + $0x58] sm:$0xff]
  %v3300 = vld [vmem:[%s5 + $0x90] sm:$0xff]
  %v3301 = vld [vmem:[%s5 + $0x98] sm:$0xff]
  %v3302 = vld [vmem:[%s5 + $0xa0] sm:$0xff]
  %v3303 = vld [vmem:[%s5 + $0xa8] sm:$0xff]
  %v3304 = vld [vmem:[%s5 + $0xb0] sm:$0xff]
  %v3305 = vld [vmem:[%s5 + $0xb8] sm:$0xff]
  %v3306 = vld [vmem:[%s5 + $0xf0] sm:$0xff]
  %v3307 = vld [vmem:[%s5 + $0xf8] sm:$0xff]
  %v3308 = vld [vmem:[%s5 + $0x100] sm:$0xff]
  %v3309 = vld [vmem:[%s5 + $0x108] sm:$0xff]
  %v3310 = vld [vmem:[%s5 + $0x110] sm:$0xff]
  %v3311 = vld [vmem:[%s5 + $0x118] sm:$0xff]
  %v3312 = vld [vmem:[%s5 + $0x150] sm:$0xff]
  %v3313 = vld [vmem:[%s5 + $0x158] sm:$0xff]
  %v3314 = vld [vmem:[%s5 + $0x160] sm:$0xff]
  %v3315 = vld [vmem:[%s5 + $0x168] sm:$0xff]
  %v3316 = vld [vmem:[%s5 + $0x170] sm:$0xff]
  %v3317 = vld [vmem:[%s5 + $0x178] sm:$0xff]
  %v3318 = vld [vmem:[%s5 + $0x1b0] sm:$0xff]
  %v3319 = vld [vmem:[%s5 + $0x1b8] sm:$0xff]
  %v3320 = vld [vmem:[%s5 + $0x1c0] sm:$0xff]
  %v3321 = vld [vmem:[%s5 + $0x1c8] sm:$0xff]
  %v3322 = vld [vmem:[%s5 + $0x1d0] sm:$0xff]
  %v3323 = vld [vmem:[%s5 + $0x1d8] sm:$0xff]
  %v3324 = vld [vmem:[%s5 + $0x210] sm:$0xff]
  %v3325 = vld [vmem:[%s5 + $0x218] sm:$0xff]
  %v3326 = vld [vmem:[%s5 + $0x220] sm:$0xff]
  %v3327 = vld [vmem:[%s5 + $0x228] sm:$0xff]
  %v3328 = vld [vmem:[%s5 + $0x230] sm:$0xff]
  %v3329 = vld [vmem:[%s5 + $0x238] sm:$0xff]
  %v3330 = vld [vmem:[%s5 + $0x270] sm:$0xff]
  %v3331 = vld [vmem:[%s5 + $0x278] sm:$0xff]
  %v3332 = vld [vmem:[%s5 + $0x280] sm:$0xff]
  %v3333 = vld [vmem:[%s5 + $0x288] sm:$0xff]
  %v3334 = vld [vmem:[%s5 + $0x290] sm:$0xff]
  %v3335 = vld [vmem:[%s5 + $0x298] sm:$0xff]
  %v3336 = vld [vmem:[%s5 + $0x2d0] sm:$0xff]
  %v3337 = vld [vmem:[%s5 + $0x2d8] sm:$0xff]
  %v3338 = vld [vmem:[%s5 + $0x2e0] sm:$0xff]
  %v3339 = vld [vmem:[%s5 + $0x2e8] sm:$0xff]
  %v3340 = vld [vmem:[%s5 + $0x2f0] sm:$0xff]
  %v3341 = vld [vmem:[%s5 + $0x2f8] sm:$0xff]
  %v3342 = vld [vmem:[%s5 + $0x330] sm:$0xff]
  %v3343 = vld [vmem:[%s5 + $0x338] sm:$0xff]
  %v3344 = vld [vmem:[%s5 + $0x340] sm:$0xff]
  %v3345 = vld [vmem:[%s5 + $0x348] sm:$0xff]
  %v3346 = vld [vmem:[%s5 + $0x350] sm:$0xff]
  %v3347 = vld [vmem:[%s5 + $0x358] sm:$0xff]
  %v3348 = vld [vmem:[%s5 + $0x390] sm:$0xff]
  %v3349 = vld [vmem:[%s5 + $0x398] sm:$0xff]
  %v3350 = vld [vmem:[%s5 + $0x3a0] sm:$0xff]
  %v3351 = vld [vmem:[%s5 + $0x3a8] sm:$0xff]
  %v3352 = vld [vmem:[%s5 + $0x3b0] sm:$0xff]
  %v3353 = vld [vmem:[%s5 + $0x3b8] sm:$0xff]
  %v3354 = vld [vmem:[%s5 + $0x3f0] sm:$0xff]
  %v3355 = vld [vmem:[%s5 + $0x3f8] sm:$0xff]
  %v3356 = vld [vmem:[%s5 + $0x400] sm:$0xff]
  %v3357 = vld [vmem:[%s5 + $0x408] sm:$0xff]
  %v3358 = vld [vmem:[%s5 + $0x410] sm:$0xff]
  %v3359 = vld [vmem:[%s5 + $0x418] sm:$0xff]
  %v3360 = vld [vmem:[%s5 + $0x450] sm:$0xff]
  %v3361 = vld [vmem:[%s5 + $0x458] sm:$0xff]
  %v3362 = vld [vmem:[%s5 + $0x460] sm:$0xff]
  %v3363 = vld [vmem:[%s5 + $0x468] sm:$0xff]
  %v3364 = vld [vmem:[%s5 + $0x470] sm:$0xff]
  %v3365 = vld [vmem:[%s5 + $0x478] sm:$0xff]
  %v3366 = vld [vmem:[%s5 + $0x4b0] sm:$0xff]
  %v3367 = vld [vmem:[%s5 + $0x4b8] sm:$0xff]
  %v3368 = vld [vmem:[%s5 + $0x4c0] sm:$0xff]
  %v3369 = vld [vmem:[%s5 + $0x4c8] sm:$0xff]
  %v3370 = vld [vmem:[%s5 + $0x4d0] sm:$0xff]
  %v3371 = vld [vmem:[%s5 + $0x4d8] sm:$0xff]
  %v3372 = vld [vmem:[%s5 + $0x510] sm:$0xff]
  %v3373 = vld [vmem:[%s5 + $0x518] sm:$0xff]
  %v3374 = vld [vmem:[%s5 + $0x520] sm:$0xff]
  %v3375 = vld [vmem:[%s5 + $0x528] sm:$0xff]
  %v3376 = vld [vmem:[%s5 + $0x530] sm:$0xff]
  %v3377 = vld [vmem:[%s5 + $0x538] sm:$0xff]
  %v3378 = vld [vmem:[%s5 + $0x570] sm:$0xff]
  %v3379 = vld [vmem:[%s5 + $0x578] sm:$0xff]
  %v3380 = vld [vmem:[%s5 + $0x580] sm:$0xff]
  %v3381 = vld [vmem:[%s5 + $0x588] sm:$0xff]
  %v3382 = vld [vmem:[%s5 + $0x590] sm:$0xff]
  %v3383 = vld [vmem:[%s5 + $0x598] sm:$0xff]
  %v3384 = vld [vmem:[%s5 + $0x5d0] sm:$0xff]
  %v3385 = vld [vmem:[%s5 + $0x5d8] sm:$0xff]
  %v3386 = vld [vmem:[%s5 + $0x5e0] sm:$0xff]
  %v3387 = vld [vmem:[%s5 + $0x5e8] sm:$0xff]
  %v3388 = vld [vmem:[%s5 + $0x5f0] sm:$0xff]
  %v3389 = vld [vmem:[%s5 + $0x5f8] sm:$0xff]
  %v3390 = vld [vmem:[%s6 + $0xc] sm:$0xff]
  %v3391 = vld [vmem:[%s6 + $0x14] sm:$0xf]
  %v3394 = vlaneseq
  %v3395 = vshrl.u32 %v3394, 7
  %v3396 = vsub.s32 0, %v3395
  %v3397 = vrot.slane %v3390, %v3396
  %v3398 = vlaneseq
  %v3399 = vshrl.u32 %v3398, 7
  %v3400 = vsub.s32 1, %v3399
  %v3401 = vrot.slane %v3390, %v3400
  %v3402 = vlaneseq
  %v3403 = vshrl.u32 %v3402, 7
  %v3404 = vsub.s32 2, %v3403
  %v3405 = vrot.slane %v3390, %v3404
  %v3406 = vlaneseq
  %v3407 = vshrl.u32 %v3406, 7
  %v3408 = vsub.s32 3, %v3407
  %v3409 = vrot.slane %v3390, %v3408
  %v3410 = vlaneseq
  %v3411 = vshrl.u32 %v3410, 7
  %v3412 = vsub.s32 4, %v3411
  %v3413 = vrot.slane %v3390, %v3412
  %v3414 = vlaneseq
  %v3415 = vshrl.u32 %v3414, 7
  %v3416 = vsub.s32 5, %v3415
  %v3417 = vrot.slane %v3390, %v3416
  %v3418 = vlaneseq
  %v3419 = vshrl.u32 %v3418, 7
  %v3420 = vsub.s32 6, %v3419
  %v3421 = vrot.slane %v3390, %v3420
  %v3422 = vlaneseq
  %v3423 = vshrl.u32 %v3422, 7
  %v3424 = vsub.s32 7, %v3423
  %v3425 = vrot.slane %v3390, %v3424
  %v3426 = vlaneseq
  %v3427 = vshrl.u32 %v3426, 7
  %v3428 = vsub.s32 0, %v3427
  %v3429 = vrot.slane %v3391, %v3428
  %v3430 = vlaneseq
  %v3431 = vshrl.u32 %v3430, 7
  %v3432 = vsub.s32 1, %v3431
  %v3433 = vrot.slane %v3391, %v3432
  %v3434 = vlaneseq
  %v3435 = vshrl.u32 %v3434, 7
  %v3436 = vsub.s32 2, %v3435
  %v3437 = vrot.slane %v3391, %v3436
  %v3438 = vlaneseq
  %v3439 = vshrl.u32 %v3438, 7
  %v3440 = vsub.s32 3, %v3439
  %v3441 = vrot.slane %v3391, %v3440
  %v3550 = vunpack.c.l.b16 %v3294
  %v3551 = vunpack.c.h.b16 %v3294
  %v3552 = vunpack.c.l.b16 %v3295
  %v3553 = vunpack.c.h.b16 %v3295
  %v3554 = vunpack.c.l.b16 %v3296
  %v3555 = vunpack.c.h.b16 %v3296
  %v3556 = vunpack.c.l.b16 %v3297
  %v3557 = vunpack.c.h.b16 %v3297
  %v3558 = vunpack.c.l.b16 %v3298
  %v3559 = vunpack.c.h.b16 %v3298
  %v3560 = vunpack.c.l.b16 %v3299
  %v3561 = vunpack.c.h.b16 %v3299
  %v3562 = vunpack.c.l.b16 %v3300
  %v3563 = vunpack.c.h.b16 %v3300
  %v3564 = vunpack.c.l.b16 %v3301
  %v3565 = vunpack.c.h.b16 %v3301
  %v3566 = vunpack.c.l.b16 %v3302
  %v3567 = vunpack.c.h.b16 %v3302
  %v3568 = vunpack.c.l.b16 %v3303
  %v3569 = vunpack.c.h.b16 %v3303
  %v3570 = vunpack.c.l.b16 %v3304
  %v3571 = vunpack.c.h.b16 %v3304
  %v3572 = vunpack.c.l.b16 %v3305
  %v3573 = vunpack.c.h.b16 %v3305
  %v3574 = vunpack.c.l.b16 %v3306
  %v3575 = vunpack.c.h.b16 %v3306
  %v3576 = vunpack.c.l.b16 %v3307
  %v3577 = vunpack.c.h.b16 %v3307
  %v3578 = vunpack.c.l.b16 %v3308
  %v3579 = vunpack.c.h.b16 %v3308
  %v3580 = vunpack.c.l.b16 %v3309
  %v3581 = vunpack.c.h.b16 %v3309
  %v3582 = vunpack.c.l.b16 %v3310
  %v3583 = vunpack.c.h.b16 %v3310
  %v3584 = vunpack.c.l.b16 %v3311
  %v3585 = vunpack.c.h.b16 %v3311
  %v3586 = vunpack.c.l.b16 %v3312
  %v3587 = vunpack.c.h.b16 %v3312
  %v3588 = vunpack.c.l.b16 %v3313
  %v3589 = vunpack.c.h.b16 %v3313
  %v3590 = vunpack.c.l.b16 %v3314
  %v3591 = vunpack.c.h.b16 %v3314
  %v3592 = vunpack.c.l.b16 %v3315
  %v3593 = vunpack.c.h.b16 %v3315
  %v3594 = vunpack.c.l.b16 %v3316
  %v3595 = vunpack.c.h.b16 %v3316
  %v3596 = vunpack.c.l.b16 %v3317
  %v3597 = vunpack.c.h.b16 %v3317
  %v3598 = vunpack.c.l.b16 %v3318
  %v3599 = vunpack.c.h.b16 %v3318
  %v3600 = vunpack.c.l.b16 %v3319
  %v3601 = vunpack.c.h.b16 %v3319
  %v3602 = vunpack.c.l.b16 %v3320
  %v3603 = vunpack.c.h.b16 %v3320
  %v3604 = vunpack.c.l.b16 %v3321
  %v3605 = vunpack.c.h.b16 %v3321
  %v3606 = vunpack.c.l.b16 %v3322
  %v3607 = vunpack.c.h.b16 %v3322
  %v3608 = vunpack.c.l.b16 %v3323
  %v3609 = vunpack.c.h.b16 %v3323
  %v3610 = vunpack.c.l.b16 %v3324
  %v3611 = vunpack.c.h.b16 %v3324
  %v3612 = vunpack.c.l.b16 %v3325
  %v3613 = vunpack.c.h.b16 %v3325
  %v3614 = vunpack.c.l.b16 %v3326
  %v3615 = vunpack.c.h.b16 %v3326
  %v3616 = vunpack.c.l.b16 %v3327
  %v3617 = vunpack.c.h.b16 %v3327
  %v3618 = vunpack.c.l.b16 %v3328
  %v3619 = vunpack.c.h.b16 %v3328
  %v3620 = vunpack.c.l.b16 %v3329
  %v3621 = vunpack.c.h.b16 %v3329
  %v3622 = vunpack.c.l.b16 %v3330
  %v3623 = vunpack.c.h.b16 %v3330
  %v3624 = vunpack.c.l.b16 %v3331
  %v3625 = vunpack.c.h.b16 %v3331
  %v3626 = vunpack.c.l.b16 %v3332
  %v3627 = vunpack.c.h.b16 %v3332
  %v3628 = vunpack.c.l.b16 %v3333
  %v3629 = vunpack.c.h.b16 %v3333
  %v3630 = vunpack.c.l.b16 %v3334
  %v3631 = vunpack.c.h.b16 %v3334
  %v3632 = vunpack.c.l.b16 %v3335
  %v3633 = vunpack.c.h.b16 %v3335
  %v3634 = vunpack.c.l.b16 %v3336
  %v3635 = vunpack.c.h.b16 %v3336
  %v3636 = vunpack.c.l.b16 %v3337
  %v3637 = vunpack.c.h.b16 %v3337
  %v3638 = vunpack.c.l.b16 %v3338
  %v3639 = vunpack.c.h.b16 %v3338
  %v3640 = vunpack.c.l.b16 %v3339
  %v3641 = vunpack.c.h.b16 %v3339
  %v3642 = vunpack.c.l.b16 %v3340
  %v3643 = vunpack.c.h.b16 %v3340
  %v3644 = vunpack.c.l.b16 %v3341
  %v3645 = vunpack.c.h.b16 %v3341
  %v3646 = vunpack.c.l.b16 %v3342
  %v3647 = vunpack.c.h.b16 %v3342
  %v3648 = vunpack.c.l.b16 %v3343
  %v3649 = vunpack.c.h.b16 %v3343
  %v3650 = vunpack.c.l.b16 %v3344
  %v3651 = vunpack.c.h.b16 %v3344
  %v3652 = vunpack.c.l.b16 %v3345
  %v3653 = vunpack.c.h.b16 %v3345
  %v3654 = vunpack.c.l.b16 %v3346
  %v3655 = vunpack.c.h.b16 %v3346
  %v3656 = vunpack.c.l.b16 %v3347
  %v3657 = vunpack.c.h.b16 %v3347
  %v3658 = vunpack.c.l.b16 %v3348
  %v3659 = vunpack.c.h.b16 %v3348
  %v3660 = vunpack.c.l.b16 %v3349
  %v3661 = vunpack.c.h.b16 %v3349
  %v3662 = vunpack.c.l.b16 %v3350
  %v3663 = vunpack.c.h.b16 %v3350
  %v3664 = vunpack.c.l.b16 %v3351
  %v3665 = vunpack.c.h.b16 %v3351
  %v3666 = vunpack.c.l.b16 %v3352
  %v3667 = vunpack.c.h.b16 %v3352
  %v3668 = vunpack.c.l.b16 %v3353
  %v3669 = vunpack.c.h.b16 %v3353
  %v3670 = vunpack.c.l.b16 %v3354
  %v3671 = vunpack.c.h.b16 %v3354
  %v3672 = vunpack.c.l.b16 %v3355
  %v3673 = vunpack.c.h.b16 %v3355
  %v3674 = vunpack.c.l.b16 %v3356
  %v3675 = vunpack.c.h.b16 %v3356
  %v3676 = vunpack.c.l.b16 %v3357
  %v3677 = vunpack.c.h.b16 %v3357
  %v3678 = vunpack.c.l.b16 %v3358
  %v3679 = vunpack.c.h.b16 %v3358
  %v3680 = vunpack.c.l.b16 %v3359
  %v3681 = vunpack.c.h.b16 %v3359
  %v3682 = vunpack.c.l.b16 %v3360
  %v3683 = vunpack.c.h.b16 %v3360
  %v3684 = vunpack.c.l.b16 %v3361
  %v3685 = vunpack.c.h.b16 %v3361
  %v3686 = vunpack.c.l.b16 %v3362
  %v3687 = vunpack.c.h.b16 %v3362
  %v3688 = vunpack.c.l.b16 %v3363
  %v3689 = vunpack.c.h.b16 %v3363
  %v3690 = vunpack.c.l.b16 %v3364
  %v3691 = vunpack.c.h.b16 %v3364
  %v3692 = vunpack.c.l.b16 %v3365
  %v3693 = vunpack.c.h.b16 %v3365
  %v3694 = vunpack.c.l.b16 %v3366
  %v3695 = vunpack.c.h.b16 %v3366
  %v3696 = vunpack.c.l.b16 %v3367
  %v3697 = vunpack.c.h.b16 %v3367
  %v3698 = vunpack.c.l.b16 %v3368
  %v3699 = vunpack.c.h.b16 %v3368
  %v3700 = vunpack.c.l.b16 %v3369
  %v3701 = vunpack.c.h.b16 %v3369
  %v3702 = vunpack.c.l.b16 %v3370
  %v3703 = vunpack.c.h.b16 %v3370
  %v3704 = vunpack.c.l.b16 %v3371
  %v3705 = vunpack.c.h.b16 %v3371
  %v3706 = vunpack.c.l.b16 %v3372
  %v3707 = vunpack.c.h.b16 %v3372
  %v3708 = vunpack.c.l.b16 %v3373
  %v3709 = vunpack.c.h.b16 %v3373
  %v3710 = vunpack.c.l.b16 %v3374
  %v3711 = vunpack.c.h.b16 %v3374
  %v3712 = vunpack.c.l.b16 %v3375
  %v3713 = vunpack.c.h.b16 %v3375
  %v3714 = vunpack.c.l.b16 %v3376
  %v3715 = vunpack.c.h.b16 %v3376
  %v3716 = vunpack.c.l.b16 %v3377
  %v3717 = vunpack.c.h.b16 %v3377
  %v3718 = vunpack.c.l.b16 %v3378
  %v3719 = vunpack.c.h.b16 %v3378
  %v3720 = vunpack.c.l.b16 %v3379
  %v3721 = vunpack.c.h.b16 %v3379
  %v3722 = vunpack.c.l.b16 %v3380
  %v3723 = vunpack.c.h.b16 %v3380
  %v3724 = vunpack.c.l.b16 %v3381
  %v3725 = vunpack.c.h.b16 %v3381
  %v3726 = vunpack.c.l.b16 %v3382
  %v3727 = vunpack.c.h.b16 %v3382
  %v3728 = vunpack.c.l.b16 %v3383
  %v3729 = vunpack.c.h.b16 %v3383
  %v3730 = vunpack.c.l.b16 %v3384
  %v3731 = vunpack.c.h.b16 %v3384
  %v3732 = vunpack.c.l.b16 %v3385
  %v3733 = vunpack.c.h.b16 %v3385
  %v3734 = vunpack.c.l.b16 %v3386
  %v3735 = vunpack.c.h.b16 %v3386
  %v3736 = vunpack.c.l.b16 %v3387
  %v3737 = vunpack.c.h.b16 %v3387
  %v3738 = vunpack.c.l.b16 %v3388
  %v3739 = vunpack.c.h.b16 %v3388
  %v3740 = vunpack.c.l.b16 %v3389
  %v3741 = vunpack.c.h.b16 %v3389
  %v3742 = vpack.c.b16 %v3562, %v3550
  %v3743 = vpack.c.b16 %v3563, %v3551
  %v3744 = vpack.c.b16 %v3564, %v3552
  %v3745 = vpack.c.b16 %v3565, %v3553
  %v3746 = vpack.c.b16 %v3566, %v3554
  %v3747 = vpack.c.b16 %v3567, %v3555
  %v3748 = vpack.c.b16 %v3568, %v3556
  %v3749 = vpack.c.b16 %v3569, %v3557
  %v3750 = vpack.c.b16 %v3570, %v3558
  %v3751 = vpack.c.b16 %v3571, %v3559
  %v3752 = vpack.c.b16 %v3572, %v3560
  %v3753 = vpack.c.b16 %v3573, %v3561
  %v3754 = vpack.c.b16 %v3586, %v3574
  %v3755 = vpack.c.b16 %v3587, %v3575
  %v3756 = vpack.c.b16 %v3588, %v3576
  %v3757 = vpack.c.b16 %v3589, %v3577
  %v3758 = vpack.c.b16 %v3590, %v3578
  %v3759 = vpack.c.b16 %v3591, %v3579
  %v3760 = vpack.c.b16 %v3592, %v3580
  %v3761 = vpack.c.b16 %v3593, %v3581
  %v3762 = vpack.c.b16 %v3594, %v3582
  %v3763 = vpack.c.b16 %v3595, %v3583
  %v3764 = vpack.c.b16 %v3596, %v3584
  %v3765 = vpack.c.b16 %v3597, %v3585
  %v3766 = vpack.c.b16 %v3610, %v3598
  %v3767 = vpack.c.b16 %v3611, %v3599
  %v3768 = vpack.c.b16 %v3612, %v3600
  %v3769 = vpack.c.b16 %v3613, %v3601
  %v3770 = vpack.c.b16 %v3614, %v3602
  %v3771 = vpack.c.b16 %v3615, %v3603
  %v3772 = vpack.c.b16 %v3616, %v3604
  %v3773 = vpack.c.b16 %v3617, %v3605
  %v3774 = vpack.c.b16 %v3618, %v3606
  %v3775 = vpack.c.b16 %v3619, %v3607
  %v3776 = vpack.c.b16 %v3620, %v3608
  %v3777 = vpack.c.b16 %v3621, %v3609
  %v3778 = vpack.c.b16 %v3634, %v3622
  %v3779 = vpack.c.b16 %v3635, %v3623
  %v3780 = vpack.c.b16 %v3636, %v3624
  %v3781 = vpack.c.b16 %v3637, %v3625
  %v3782 = vpack.c.b16 %v3638, %v3626
  %v3783 = vpack.c.b16 %v3639, %v3627
  %v3784 = vpack.c.b16 %v3640, %v3628
  %v3785 = vpack.c.b16 %v3641, %v3629
  %v3786 = vpack.c.b16 %v3642, %v3630
  %v3787 = vpack.c.b16 %v3643, %v3631
  %v3788 = vpack.c.b16 %v3644, %v3632
  %v3789 = vpack.c.b16 %v3645, %v3633
  %v3790 = vpack.c.b16 %v3658, %v3646
  %v3791 = vpack.c.b16 %v3659, %v3647
  %v3792 = vpack.c.b16 %v3660, %v3648
  %v3793 = vpack.c.b16 %v3661, %v3649
  %v3794 = vpack.c.b16 %v3662, %v3650
  %v3795 = vpack.c.b16 %v3663, %v3651
  %v3796 = vpack.c.b16 %v3664, %v3652
  %v3797 = vpack.c.b16 %v3665, %v3653
  %v3798 = vpack.c.b16 %v3666, %v3654
  %v3799 = vpack.c.b16 %v3667, %v3655
  %v3800 = vpack.c.b16 %v3668, %v3656
  %v3801 = vpack.c.b16 %v3669, %v3657
  %v3802 = vpack.c.b16 %v3682, %v3670
  %v3803 = vpack.c.b16 %v3683, %v3671
  %v3804 = vpack.c.b16 %v3684, %v3672
  %v3805 = vpack.c.b16 %v3685, %v3673
  %v3806 = vpack.c.b16 %v3686, %v3674
  %v3807 = vpack.c.b16 %v3687, %v3675
  %v3808 = vpack.c.b16 %v3688, %v3676
  %v3809 = vpack.c.b16 %v3689, %v3677
  %v3810 = vpack.c.b16 %v3690, %v3678
  %v3811 = vpack.c.b16 %v3691, %v3679
  %v3812 = vpack.c.b16 %v3692, %v3680
  %v3813 = vpack.c.b16 %v3693, %v3681
  %v3814 = vpack.c.b16 %v3706, %v3694
  %v3815 = vpack.c.b16 %v3707, %v3695
  %v3816 = vpack.c.b16 %v3708, %v3696
  %v3817 = vpack.c.b16 %v3709, %v3697
  %v3818 = vpack.c.b16 %v3710, %v3698
  %v3819 = vpack.c.b16 %v3711, %v3699
  %v3820 = vpack.c.b16 %v3712, %v3700
  %v3821 = vpack.c.b16 %v3713, %v3701
  %v3822 = vpack.c.b16 %v3714, %v3702
  %v3823 = vpack.c.b16 %v3715, %v3703
  %v3824 = vpack.c.b16 %v3716, %v3704
  %v3825 = vpack.c.b16 %v3717, %v3705
  %v3826 = vpack.c.b16 %v3730, %v3718
  %v3827 = vpack.c.b16 %v3731, %v3719
  %v3828 = vpack.c.b16 %v3732, %v3720
  %v3829 = vpack.c.b16 %v3733, %v3721
  %v3830 = vpack.c.b16 %v3734, %v3722
  %v3831 = vpack.c.b16 %v3735, %v3723
  %v3832 = vpack.c.b16 %v3736, %v3724
  %v3833 = vpack.c.b16 %v3737, %v3725
  %v3834 = vpack.c.b16 %v3738, %v3726
  %v3835 = vpack.c.b16 %v3739, %v3727
  %v3836 = vpack.c.b16 %v3740, %v3728
  %v3837 = vpack.c.b16 %v3741, %v3729
  %3934 = vmatprep.subr.bf16.mxu0 %v3743
  %3935 = vmatpush1.bf16.msra.mxu0 %v3742
  %3936 = vmatprep.subr.bf16.mxu0 %v3755
  %3937 = vmatpush1.bf16.msra.mxu0 %v3754
  %3938 = vmatprep.subr.bf16.mxu0 %v3767
  %3939 = vmatpush1.bf16.msra.mxu0 %v3766
  %3940 = vmatprep.subr.bf16.mxu0 %v3779
  %3941 = vmatpush1.bf16.msra.mxu0 %v3778
  %3942 = vmatprep.subr.bf16.mxu0 %v3791
  %3943 = vmatpush1.bf16.msra.mxu0 %v3790
  %3944 = vmatprep.subr.bf16.mxu0 %v3803
  %3945 = vmatpush1.bf16.msra.mxu0 %v3802
  %3946 = vmatprep.subr.bf16.mxu0 %v3815
  %3947 = vmatpush1.bf16.msra.mxu0 %v3814
  %3948 = vmatprep.subr.bf16.mxu0 %v3827
  %3949 = vmatpush1.bf16.msra.mxu0 %v3826
  %3950 = vmatprep.subr.bf16.mxu0 0
  %3951 = vmatpush1.bf16.msra.mxu0 0
  %3952 = vmatprep.subr.bf16.mxu0 0
  %3953 = vmatpush1.bf16.msra.mxu0 0
  %3954 = vmatprep.subr.bf16.mxu0 0
  %3955 = vmatpush1.bf16.msra.mxu0 0
  %3956 = vmatprep.subr.bf16.mxu0 0
  %3957 = vmatpush1.bf16.msra.mxu0 0
  %3958 = vmatprep.subr.bf16.mxu0 0
  %3959 = vmatpush1.bf16.msra.mxu0 0
  %3960 = vmatprep.subr.bf16.mxu0 0
  %3961 = vmatpush1.bf16.msra.mxu0 0
  %3962 = vmatprep.subr.bf16.mxu0 0
  %3963 = vmatpush1.bf16.msra.mxu0 0
  %3964 = vmatprep.subr.bf16.mxu0 0
  %3965 = vmatpush1.bf16.msra.mxu0 0
  %3966 = vmatprep.mubr.bf16.mxu0 0
  %3967 = vmatmul.mubr.bf16.gmra.mrb[0].mxu0 %v2326
  %v3968 = vpop.f32.mrb[0].mxu0
  %v3969 = vadd.f32 %v3397, %v3968
  %v3970 = vpop.f32.mrb[0].mxu0
  %v3971 = vadd.f32 %v3401, %v3970
  %v3972 = vpop.f32.mrb[0].mxu0
  %v3973 = vpop.f32.mrb[0].mxu0
  %3974 = vdwg.mxu0
  %3975 = vmatprep.subr.bf16.mxu0 %v3745
  %3976 = vmatpush1.bf16.msra.mxu0 %v3744
  %3977 = vmatprep.subr.bf16.mxu0 %v3757
  %3978 = vmatpush1.bf16.msra.mxu0 %v3756
  %3979 = vmatprep.subr.bf16.mxu0 %v3769
  %3980 = vmatpush1.bf16.msra.mxu0 %v3768
  %3981 = vmatprep.subr.bf16.mxu0 %v3781
  %3982 = vmatpush1.bf16.msra.mxu0 %v3780
  %3983 = vmatprep.subr.bf16.mxu0 %v3793
  %3984 = vmatpush1.bf16.msra.mxu0 %v3792
  %3985 = vmatprep.subr.bf16.mxu0 %v3805
  %3986 = vmatpush1.bf16.msra.mxu0 %v3804
  %3987 = vmatprep.subr.bf16.mxu0 %v3817
  %3988 = vmatpush1.bf16.msra.mxu0 %v3816
  %3989 = vmatprep.subr.bf16.mxu0 %v3829
  %3990 = vmatpush1.bf16.msra.mxu0 %v3828
  %3991 = vmatprep.subr.bf16.mxu0 0
  %3992 = vmatpush1.bf16.msra.mxu0 0
  %3993 = vmatprep.subr.bf16.mxu0 0
  %3994 = vmatpush1.bf16.msra.mxu0 0
  %3995 = vmatprep.subr.bf16.mxu0 0
  %3996 = vmatpush1.bf16.msra.mxu0 0
  %3997 = vmatprep.subr.bf16.mxu0 0
  %3998 = vmatpush1.bf16.msra.mxu0 0
  %3999 = vmatprep.subr.bf16.mxu0 0
  %4000 = vmatpush1.bf16.msra.mxu0 0
  %4001 = vmatprep.subr.bf16.mxu0 0
  %4002 = vmatpush1.bf16.msra.mxu0 0
  %4003 = vmatprep.subr.bf16.mxu0 0
  %4004 = vmatpush1.bf16.msra.mxu0 0
  %4005 = vmatprep.subr.bf16.mxu0 0
  %4006 = vmatpush1.bf16.msra.mxu0 0
  %4007 = vmatprep.mubr.bf16.mxu0 0
  %4008 = vmatmul.mubr.bf16.gmra.mrb[0].mxu0 %v2326
  %v4009 = vpop.f32.mrb[0].mxu0
  %v4010 = vadd.f32 %v3405, %v4009
  %v4011 = vpop.f32.mrb[0].mxu0
  %v4012 = vadd.f32 %v3409, %v4011
  %v4013 = vpop.f32.mrb[0].mxu0
  %v4014 = vpop.f32.mrb[0].mxu0
  %4015 = vdwg.mxu0
  %4016 = vmatprep.subr.bf16.mxu0 %v3747
  %4017 = vmatpush1.bf16.msra.mxu0 %v3746
  %4018 = vmatprep.subr.bf16.mxu0 %v3759
  %4019 = vmatpush1.bf16.msra.mxu0 %v3758
  %4020 = vmatprep.subr.bf16.mxu0 %v3771
  %4021 = vmatpush1.bf16.msra.mxu0 %v3770
  %4022 = vmatprep.subr.bf16.mxu0 %v3783
  %4023 = vmatpush1.bf16.msra.mxu0 %v3782
  %4024 = vmatprep.subr.bf16.mxu0 %v3795
  %4025 = vmatpush1.bf16.msra.mxu0 %v3794
  %4026 = vmatprep.subr.bf16.mxu0 %v3807
  %4027 = vmatpush1.bf16.msra.mxu0 %v3806
  %4028 = vmatprep.subr.bf16.mxu0 %v3819
  %4029 = vmatpush1.bf16.msra.mxu0 %v3818
  %4030 = vmatprep.subr.bf16.mxu0 %v3831
  %4031 = vmatpush1.bf16.msra.mxu0 %v3830
  %4032 = vmatprep.subr.bf16.mxu0 0
  %4033 = vmatpush1.bf16.msra.mxu0 0
  %4034 = vmatprep.subr.bf16.mxu0 0
  %4035 = vmatpush1.bf16.msra.mxu0 0
  %4036 = vmatprep.subr.bf16.mxu0 0
  %4037 = vmatpush1.bf16.msra.mxu0 0
  %4038 = vmatprep.subr.bf16.mxu0 0
  %4039 = vmatpush1.bf16.msra.mxu0 0
  %4040 = vmatprep.subr.bf16.mxu0 0
  %4041 = vmatpush1.bf16.msra.mxu0 0
  %4042 = vmatprep.subr.bf16.mxu0 0
  %4043 = vmatpush1.bf16.msra.mxu0 0
  %4044 = vmatprep.subr.bf16.mxu0 0
  %4045 = vmatpush1.bf16.msra.mxu0 0
  %4046 = vmatprep.subr.bf16.mxu0 0
  %4047 = vmatpush1.bf16.msra.mxu0 0
  %4048 = vmatprep.mubr.bf16.mxu0 0
  %4049 = vmatmul.mubr.bf16.gmra.mrb[0].mxu0 %v2326
  %v4050 = vpop.f32.mrb[0].mxu0
  %v4051 = vadd.f32 %v3413, %v4050
  %v4052 = vpop.f32.mrb[0].mxu0
  %v4053 = vadd.f32 %v3417, %v4052
  %v4054 = vpop.f32.mrb[0].mxu0
  %v4055 = vpop.f32.mrb[0].mxu0
  %4056 = vdwg.mxu0
  %4057 = vmatprep.subr.bf16.mxu0 %v3749
  %4058 = vmatpush1.bf16.msra.mxu0 %v3748
  %4059 = vmatprep.subr.bf16.mxu0 %v3761
  %4060 = vmatpush1.bf16.msra.mxu0 %v3760
  %4061 = vmatprep.subr.bf16.mxu0 %v3773
  %4062 = vmatpush1.bf16.msra.mxu0 %v3772
  %4063 = vmatprep.subr.bf16.mxu0 %v3785
  %4064 = vmatpush1.bf16.msra.mxu0 %v3784
  %4065 = vmatprep.subr.bf16.mxu0 %v3797
  %4066 = vmatpush1.bf16.msra.mxu0 %v3796
  %4067 = vmatprep.subr.bf16.mxu0 %v3809
  %4068 = vmatpush1.bf16.msra.mxu0 %v3808
  %4069 = vmatprep.subr.bf16.mxu0 %v3821
  %4070 = vmatpush1.bf16.msra.mxu0 %v3820
  %4071 = vmatprep.subr.bf16.mxu0 %v3833
  %4072 = vmatpush1.bf16.msra.mxu0 %v3832
  %4073 = vmatprep.subr.bf16.mxu0 0
  %4074 = vmatpush1.bf16.msra.mxu0 0
  %4075 = vmatprep.subr.bf16.mxu0 0
  %4076 = vmatpush1.bf16.msra.mxu0 0
  %4077 = vmatprep.subr.bf16.mxu0 0
  %4078 = vmatpush1.bf16.msra.mxu0 0
  %4079 = vmatprep.subr.bf16.mxu0 0
  %4080 = vmatpush1.bf16.msra.mxu0 0
  %4081 = vmatprep.subr.bf16.mxu0 0
  %4082 = vmatpush1.bf16.msra.mxu0 0
  %4083 = vmatprep.subr.bf16.mxu0 0
  %4084 = vmatpush1.bf16.msra.mxu0 0
  %4085 = vmatprep.subr.bf16.mxu0 0
  %4086 = vmatpush1.bf16.msra.mxu0 0
  %4087 = vmatprep.subr.bf16.mxu0 0
  %4088 = vmatpush1.bf16.msra.mxu0 0
  %4089 = vmatprep.mubr.bf16.mxu0 0
  %4090 = vmatmul.mubr.bf16.gmra.mrb[0].mxu0 %v2326
  %v4091 = vpop.f32.mrb[0].mxu0
  %v4092 = vadd.f32 %v3421, %v4091
  %v4093 = vpop.f32.mrb[0].mxu0
  %v4094 = vadd.f32 %v3425, %v4093
  %v4095 = vpop.f32.mrb[0].mxu0
  %v4096 = vpop.f32.mrb[0].mxu0
  %4097 = vdwg.mxu0
  %4098 = vmatprep.subr.bf16.mxu0 %v3751
  %4099 = vmatpush1.bf16.msra.mxu0 %v3750
  %4100 = vmatprep.subr.bf16.mxu0 %v3763
  %4101 = vmatpush1.bf16.msra.mxu0 %v3762
  %4102 = vmatprep.subr.bf16.mxu0 %v3775
  %4103 = vmatpush1.bf16.msra.mxu0 %v3774
  %4104 = vmatprep.subr.bf16.mxu0 %v3787
  %4105 = vmatpush1.bf16.msra.mxu0 %v3786
  %4106 = vmatprep.subr.bf16.mxu0 %v3799
  %4107 = vmatpush1.bf16.msra.mxu0 %v3798
  %4108 = vmatprep.subr.bf16.mxu0 %v3811
  %4109 = vmatpush1.bf16.msra.mxu0 %v3810
  %4110 = vmatprep.subr.bf16.mxu0 %v3823
  %4111 = vmatpush1.bf16.msra.mxu0 %v3822
  %4112 = vmatprep.subr.bf16.mxu0 %v3835
  %4113 = vmatpush1.bf16.msra.mxu0 %v3834
  %4114 = vmatprep.subr.bf16.mxu0 0
  %4115 = vmatpush1.bf16.msra.mxu0 0
  %4116 = vmatprep.subr.bf16.mxu0 0
  %4117 = vmatpush1.bf16.msra.mxu0 0
  %4118 = vmatprep.subr.bf16.mxu0 0
  %4119 = vmatpush1.bf16.msra.mxu0 0
  %4120 = vmatprep.subr.bf16.mxu0 0
  %4121 = vmatpush1.bf16.msra.mxu0 0
  %4122 = vmatprep.subr.bf16.mxu0 0
  %4123 = vmatpush1.bf16.msra.mxu0 0
  %4124 = vmatprep.subr.bf16.mxu0 0
  %4125 = vmatpush1.bf16.msra.mxu0 0
  %4126 = vmatprep.subr.bf16.mxu0 0
  %4127 = vmatpush1.bf16.msra.mxu0 0
  %4128 = vmatprep.subr.bf16.mxu0 0
  %4129 = vmatpush1.bf16.msra.mxu0 0
  %4130 = vmatprep.mubr.bf16.mxu0 0
  %4131 = vmatmul.mubr.bf16.gmra.mrb[0].mxu0 %v2326
  %v4132 = vpop.f32.mrb[0].mxu0
  %v4133 = vadd.f32 %v3429, %v4132
  %v4134 = vpop.f32.mrb[0].mxu0
  %v4135 = vadd.f32 %v3433, %v4134
  %v4136 = vpop.f32.mrb[0].mxu0
  %v4137 = vpop.f32.mrb[0].mxu0
  %4138 = vdwg.mxu0
  %4139 = vmatprep.subr.bf16.mxu0 %v3753
  %4140 = vmatpush1.bf16.msra.mxu0 %v3752
  %4141 = vmatprep.subr.bf16.mxu0 %v3765
  %4142 = vmatpush1.bf16.msra.mxu0 %v3764
  %4143 = vmatprep.subr.bf16.mxu0 %v3777
  %4144 = vmatpush1.bf16.msra.mxu0 %v3776
  %4145 = vmatprep.subr.bf16.mxu0 %v3789
  %4146 = vmatpush1.bf16.msra.mxu0 %v3788
  %4147 = vmatprep.subr.bf16.mxu0 %v3801
  %4148 = vmatpush1.bf16.msra.mxu0 %v3800
  %4149 = vmatprep.subr.bf16.mxu0 %v3813
  %4150 = vmatpush1.bf16.msra.mxu0 %v3812
  %4151 = vmatprep.subr.bf16.mxu0 %v3825
  %4152 = vmatpush1.bf16.msra.mxu0 %v3824
  %4153 = vmatprep.subr.bf16.mxu0 %v3837
  %4154 = vmatpush1.bf16.msra.mxu0 %v3836
  %4155 = vmatprep.subr.bf16.mxu0 0
  %4156 = vmatpush1.bf16.msra.mxu0 0
  %4157 = vmatprep.subr.bf16.mxu0 0
  %4158 = vmatpush1.bf16.msra.mxu0 0
  %4159 = vmatprep.subr.bf16.mxu0 0
  %4160 = vmatpush1.bf16.msra.mxu0 0
  %4161 = vmatprep.subr.bf16.mxu0 0
  %4162 = vmatpush1.bf16.msra.mxu0 0
  %4163 = vmatprep.subr.bf16.mxu0 0
  %4164 = vmatpush1.bf16.msra.mxu0 0
  %4165 = vmatprep.subr.bf16.mxu0 0
  %4166 = vmatpush1.bf16.msra.mxu0 0
  %4167 = vmatprep.subr.bf16.mxu0 0
  %4168 = vmatpush1.bf16.msra.mxu0 0
  %4169 = vmatprep.subr.bf16.mxu0 0
  %4170 = vmatpush1.bf16.msra.mxu0 0
  %4171 = vmatprep.mubr.bf16.mxu0 0
  %4172 = vmatmul.mubr.bf16.gmra.mrb[0].mxu0 %v2326
  %v4173 = vpop.f32.mrb[0].mxu0
  %v4174 = vadd.f32 %v3437, %v4173
  %v4175 = vpop.f32.mrb[0].mxu0
  %v4176 = vadd.f32 %v3441, %v4175
  %v4177 = vpop.f32.mrb[0].mxu0
  %v4178 = vpop.f32.mrb[0].mxu0
  %4179 = vdwg.mxu0
  %v4180 = vtanh.pop %v3969
  %v4181 = vtanh.pop %v3971
  %v4182 = vtanh.pop %v4010
  %v4183 = vtanh.pop %v4012
  %v4184 = vtanh.pop %v4051
  %v4185 = vtanh.pop %v4053
  %v4186 = vtanh.pop %v4092
  %v4187 = vtanh.pop %v4094
  %v4188 = vtanh.pop %v4133
  %v4189 = vtanh.pop %v4135
  %v4190 = vtanh.pop %v4174
  %v4191 = vtanh.pop %v4176
  %v4204 = vcombine.low %v4180, %v4181
  %v4205 = vcombine.low %v4182, %v4183
  %v4207 = vunpack.c.l.s4 1983009808
  %v4208 = vunpack.c.0.s8 %v4207
  %v4209 = vlaneseq
  %v4210 = vshrl.u32 %v4209, 7
  %v4211 = vsub.s32 %v4208, %v4210
  %v4212 = vrot.slane %v4204, %v4211
  %v4214 = vunpack.c.l.s4 1983009808
  %v4215 = vunpack.c.0.s8 %v4214
  %v4216 = vlaneseq
  %v4217 = vshrl.u32 %v4216, 7
  %v4218 = vsub.s32 %v4215, %v4217
  %v4219 = vrot.slane %v4205, %v4218
  %v4220 = vcombine.low %v4212, %v4219
  %v4221 = vcombine.low %v4184, %v4185
  %v4222 = vcombine.low %v4186, %v4187
  %v4224 = vunpack.c.l.s4 1983009808
  %v4225 = vunpack.c.0.s8 %v4224
  %v4226 = vlaneseq
  %v4227 = vshrl.u32 %v4226, 7
  %v4228 = vsub.s32 %v4225, %v4227
  %v4229 = vrot.slane %v4221, %v4228
  %v4231 = vunpack.c.l.s4 1983009808
  %v4232 = vunpack.c.0.s8 %v4231
  %v4233 = vlaneseq
  %v4234 = vshrl.u32 %v4233, 7
  %v4235 = vsub.s32 %v4232, %v4234
  %v4236 = vrot.slane %v4222, %v4235
  %v4237 = vcombine.low %v4229, %v4236
  %v4238 = vcombine.low %v4188, %v4189
  %v4239 = vcombine.low %v4190, %v4191
  %v4241 = vunpack.c.l.s4 1983009808
  %v4242 = vunpack.c.0.s8 %v4241
  %v4243 = vlaneseq
  %v4244 = vshrl.u32 %v4243, 7
  %v4245 = vsub.s32 %v4242, %v4244
  %v4246 = vrot.slane %v4238, %v4245
  %v4248 = vunpack.c.l.s4 1983009808
  %v4249 = vunpack.c.0.s8 %v4248
  %v4250 = vlaneseq
  %v4251 = vshrl.u32 %v4250, 7
  %v4252 = vsub.s32 %v4249, %v4251
  %v4253 = vrot.slane %v4239, %v4252
  %v4254 = vcombine.low %v4246, %v4253
  %4258 = vst [vmem:[%s7 + $0x18] sm:$0xff] %v4220
  %4259 = vst [vmem:[%s7 + $0x20] sm:$0xff] %v4237
  %4260 = vst [vmem:[%s7 + $0x28] sm:$0xff] %v4254
  // Predicated region
  $region30: #{score_based_model_forward.1} parent=0 // pred_check
    _
  $region31: #{score_based_model_forward.1} parent=0 // pred_check_branch
    %4262 = sbr.rel (0) target = $region33
  $region32: #{score_based_model_forward.1} parent=0 // pred_region
    _
  $region33: #{score_based_model_forward.1} parent=0 // pred_fallthru
    _
  // Predicated region
  $region34: #{score_based_model_forward.1} parent=0 // pred_check
    _
  $region35: #{score_based_model_forward.1} parent=0 // pred_check_branch
    %4264 = sbr.rel (0) target = $region37
  $region36: #{score_based_model_forward.1} parent=0 // pred_region
    _
  $region37: #{score_based_model_forward.1} parent=0 // pred_fallthru
    _

</llo_original>
